<compile_context>
chip_gen: v6e
topology: v6e:2x2x1
jax: 0.10.0
libtpu: 0.0.40
codegen_flags: <defaults>
</compile_context>

<pallas_src>
import functools

import numpy as np
import jax
import jax.numpy as jnp
from jax.experimental import pallas as pl
from jax.experimental.pallas import tpu as pltpu


def _round_up(x, m):
    return (x + m - 1) // m * m


def _make_tap_masks(D, H, W):
    """(27, D*H*W) float32 validity masks; tap index = kd*9 + kh*3 + kw."""
    d = np.arange(D)[:, None, None]
    h = np.arange(H)[None, :, None]
    w = np.arange(W)[None, None, :]
    masks = np.zeros((27, D * H * W), np.float32)
    t = 0
    for kd in range(3):
        for kh in range(3):
            for kw in range(3):
                dd, dh, dw = kd - 1, kh - 1, kw - 1
                valid = ((d + dd >= 0) & (d + dd < D) &
                         (h + dh >= 0) & (h + dh < H) &
                         (w + dw >= 0) & (w + dw < W))
                masks[t] = valid.reshape(-1).astype(np.float32)
                t += 1
    return jnp.asarray(masks)


# ----------------------------------------------------------------------------
# Fused FlowNet_bk kernel (one batch element per grid step)
# ----------------------------------------------------------------------------
def _flownet_kernel(mask_ref, x_ref, w_ref, b_ref, o_ref, patches_ref,
                    *, D, H, W, CP, KP):
    # mask_ref    : (27, S)        border-validity masks per tap
    # x_ref       : (1, CP, S)     padded-channel input, channels-first
    # w_ref       : (5, CP, KP)    per-layer weights, K index = tap*CP + cin
    # b_ref       : (5, CP, 1)     per-layer biases
    # o_ref       : (1, CP, S)     padded-channel output
    # patches_ref : (KP, S)        VMEM im2col scratch (reused by all layers)
    S = D * H * W
    HW = H * W

    # Zero the K-padding rows once; taps only ever write rows [0, 27*CP).
    if KP > 27 * CP:
        patches_ref[27 * CP:, :] = jnp.zeros((KP - 27 * CP, S), jnp.float32)

    def conv(x_act, layer, relu):
        # Build the (27*CP, S) im2col matrix with XLU rolls + border masks,
        # then a single (CP, KP) x (KP, S) MXU matmul.
        for kd in range(3):
            for kh in range(3):
                for kw in range(3):
                    dd, dh, dw = kd - 1, kh - 1, kw - 1
                    tap = kd * 9 + kh * 3 + kw
                    off = dd * HW + dh * W + dw
                    if off == 0:
                        vals = x_act                     # center tap: mask==1
                    else:
                        rolled = pltpu.roll(x_act, shift=(-off) % S, axis=1)
                        vals = rolled * mask_ref[tap:tap + 1, :]
                    patches_ref[tap * CP:(tap + 1) * CP, :] = vals
        y = jnp.dot(w_ref[layer], patches_ref[...],
                    preferred_element_type=jnp.float32)
        y = y + b_ref[layer]                             # bias (CP, 1) bcast
        if relu:
            y = jnp.maximum(y, 0.0)
        return y

    x0 = x_ref[0]                                        # (CP, S)
    a = conv(x0, 0, True)                                # fuse conv0 + ReLU
    a = conv(a, 1, True)                                 # fuse conv1 + ReLU
    r = conv(a, 2, True)                                 # res conv0  + ReLU
    r = conv(r, 3, True)                                 # res conv1  + ReLU
    a = a + r                                            # residual add (VPU)
    y = conv(a, 4, False)                                # offset layer
    o_ref[0] = y.astype(o_ref.dtype)


# ----------------------------------------------------------------------------
# Weight packing:  (Cout, Cin, 3,3,3) -> (CP, KP) with K = tap*CP + cin
# ----------------------------------------------------------------------------
def _pack_conv(w, b, CP, KP):
    Cout, Cin = w.shape[0], w.shape[1]
    wt = jnp.transpose(w, (0, 2, 3, 4, 1)).reshape(Cout, 27, Cin)
    wt = jnp.pad(wt, ((0, CP - Cout), (0, 0), (0, CP - Cin)))
    wt = wt.reshape(CP, 27 * CP)
    wt = jnp.pad(wt, ((0, 0), (0, KP - 27 * CP)))
    bp = jnp.pad(b, (0, CP - Cout)).reshape(CP, 1)
    return wt, bp


# ----------------------------------------------------------------------------
# FlowNet_bk forward (parameters are plain JAX arrays, PyTorch conv layout)
# ----------------------------------------------------------------------------
def init_flownet_bk_params(key, in_channels, out_channels=3):
    med = in_channels // 2
    keys = jax.random.split(key, 10)

    def conv_params(kw, kb, cin, cout):
        w = 0.1 * jax.random.normal(kw, (cout, cin, 3, 3, 3), jnp.float32)
        b = 0.01 * jax.random.normal(kb, (cout,), jnp.float32)
        return w, b

    p = {}
    p["fuse0_w"], p["fuse0_b"] = conv_params(keys[0], keys[1], in_channels, med)
    p["fuse1_w"], p["fuse1_b"] = conv_params(keys[2], keys[3], med, med)
    p["res0_w"], p["res0_b"] = conv_params(keys[4], keys[5], med, med)
    p["res1_w"], p["res1_b"] = conv_params(keys[6], keys[7], med, med)
    p["off_w"], p["off_b"] = conv_params(keys[8], keys[9], med, out_channels)
    return p


def flownet_bk_forward(params, x1_ncdhw, x2_ncdhw):
    """x1, x2: (N, C, D, H, W) like the PyTorch module; returns (N, 3, D, H, W)."""
    N, C1, D, H, W = x1_ncdhw.shape
    in_ch = C1 + x2_ncdhw.shape[1]
    med = in_ch // 2
    out_ch = params["off_w"].shape[0]
    S = D * H * W
    CP = _round_up(max(in_ch, med, out_ch), 8)       # padded channel count
    KP = _round_up(27 * CP, 128)                      # padded contraction

    # NCDHW cat -> (N, C, D*H*W): a free, contiguous reshape (no transpose).
    x = jnp.concatenate([x1_ncdhw, x2_ncdhw], axis=1).reshape(N, in_ch, S)
    if CP > in_ch:
        x = jnp.pad(x, ((0, 0), (0, CP - in_ch), (0, 0)))

    packed = [_pack_conv(params[name + "_w"], params[name + "_b"], CP, KP)
              for name in ("fuse0", "fuse1", "res0", "res1", "off")]
    w_all = jnp.stack([p[0] for p in packed])         # (5, CP, KP)
    b_all = jnp.stack([p[1] for p in packed])         # (5, CP, 1)
    masks = _make_tap_masks(D, H, W)                  # (27, S)

    kernel = functools.partial(_flownet_kernel, D=D, H=H, W=W, CP=CP, KP=KP)

    flops = 2 * N * 5 * CP * KP * S
    bytes_accessed = 4 * (N * CP * S * 2 + w_all.size + b_all.size + masks.size)

    out = pl.pallas_call(
        kernel,
        out_shape=jax.ShapeDtypeStruct((N, CP, S), x.dtype),
        grid=(N,),
        in_specs=[
            pl.BlockSpec((27, S), lambda n: (0, 0)),
            pl.BlockSpec((1, CP, S), lambda n: (n, 0, 0)),
            pl.BlockSpec((5, CP, KP), lambda n: (0, 0, 0)),
            pl.BlockSpec((5, CP, 1), lambda n: (0, 0, 0)),
        ],
        out_specs=pl.BlockSpec((1, CP, S), lambda n: (n, 0, 0)),
        scratch_shapes=[pltpu.VMEM((KP, S), jnp.float32)],
        compiler_params=pltpu.CompilerParams(
            dimension_semantics=("parallel",)),
        cost_estimate=pl.CostEstimate(
            flops=flops, transcendentals=0, bytes_accessed=bytes_accessed),
    )(masks, x, w_all, b_all)

    # (N, CP, S) -> (N, out_ch, D, H, W): drop channel padding, free reshape.
    return out[:, :out_ch, :].reshape(N, out_ch, D, H, W)


# ----------------------------------------------------------------------------
# Pure-JAX reference (correctness sanity check)
# ----------------------------------------------------------------------------
def _conv3d_ref(x, w, b):
    w_dhwio = jnp.transpose(w, (2, 3, 4, 1, 0))
    y = jax.lax.conv_general_dilated(
        x, w_dhwio, window_strides=(1, 1, 1), padding="SAME",
        dimension_numbers=("NDHWC", "DHWIO", "NDHWC"))
    return y + b


def _flownet_bk_ref(params, x1_ncdhw, x2_ncdhw):
    x1 = jnp.transpose(x1_ncdhw, (0, 2, 3, 4, 1))
    x2 = jnp.transpose(x2_ncdhw, (0, 2, 3, 4, 1))
    x = jnp.concatenate([x1, x2], axis=-1)
    x = jax.nn.relu(_conv3d_ref(x, params["fuse0_w"], params["fuse0_b"]))
    x = jax.nn.relu(_conv3d_ref(x, params["fuse1_w"], params["fuse1_b"]))
    r = jax.nn.relu(_conv3d_ref(x, params["res0_w"], params["res0_b"]))
    r = jax.nn.relu(_conv3d_ref(r, params["res1_w"], params["res1_b"]))
    x = x + r
    x = _conv3d_ref(x, params["off_w"], params["off_b"])
    return jnp.transpose(x, (0, 4, 1, 2, 3))


# ----------------------------------------------------------------------------
if __name__ == "__main__":
    # Small shapes: in_channels=8 (x1/x2 carry 4 channels each), D=4, H=W=8.
    N, C_half, D, H, W = 2, 4, 4, 8, 8
    in_channels = 2 * C_half
    out_channels = 3

    key = jax.random.PRNGKey(0)
    k_params, k_x1, k_x2 = jax.random.split(key, 3)

    params = init_flownet_bk_params(k_params, in_channels, out_channels)
    x1 = jax.random.normal(k_x1, (N, C_half, D, H, W), jnp.float32)
    x2 = jax.random.normal(k_x2, (N, C_half, D, H, W), jnp.float32)

    fwd = jax.jit(flownet_bk_forward)
    out = jax.block_until_ready(fwd(params, x1, x2))

    assert out.shape == (N, out_channels, D, H, W), out.shape

    ref = jax.block_until_ready(_flownet_bk_ref(params, x1, x2))
    max_err = float(jnp.max(jnp.abs(out - ref)))
    assert max_err < 2e-3, f"mismatch vs reference: {max_err}"

    print("KERNEL_OK")
</pallas_src>

<mosaic_0001>
module attributes {stable_mosaic.version = 11 : i64} {
  func.func @_flownet_kernel(%arg0: i32, %arg1: memref<27x256xf32, #tpu.memory_space<vmem>>, %arg2: memref<1x8x256xf32, #tpu.memory_space<vmem>>, %arg3: memref<5x8x256xf32, #tpu.memory_space<vmem>>, %arg4: memref<5x8x1xf32, #tpu.memory_space<vmem>>, %arg5: memref<1x8x256xf32, #tpu.memory_space<vmem>>, %arg6: memref<256x256xf32, #tpu.memory_space<vmem>>) attributes {dimension_semantics = [#tpu.dimension_semantics<parallel>], iteration_bounds = array<i64: 2>, scalar_prefetch = 0 : i64, scratch_operands = 1 : i64, tpu.core_type = #tpu.core_type<tc>, window_params = [{pipeline_mode = #tpu.pipeline_mode<synchronous>, transform_indices = @transform_0, window_bounds = array<i64: 27, 256>}, {transform_indices = @transform_1, window_bounds = array<i64: 1, 8, 256>}, {pipeline_mode = #tpu.pipeline_mode<synchronous>, transform_indices = @transform_2, window_bounds = array<i64: 5, 8, 256>}, {pipeline_mode = #tpu.pipeline_mode<synchronous>, transform_indices = @transform_3, window_bounds = array<i64: 5, 8, 1>}, {transform_indices = @transform_4, window_bounds = array<i64: 1, 8, 256>}]} {
    %cst = arith.constant 0.000000e+00 : f32
    %0 = vector.broadcast %cst : f32 to vector<40x256xf32>
    %c216 = arith.constant 216 : index
    %c0 = arith.constant 0 : index
    %1 = vector.load %arg6[%c216, %c0] : memref<256x256xf32, #tpu.memory_space<vmem>>, vector<40x256xf32>
    tpu.vector_store %arg6[%c216, %c0], %0 {strides = array<i32>} : memref<256x256xf32, #tpu.memory_space<vmem>>, vector<40x256xf32>,
    %c0_0 = arith.constant 0 : index
    %c0_1 = arith.constant 0 : index
    %c0_2 = arith.constant 0 : index
    %2 = vector.load %arg2[%c0_0, %c0_1, %c0_2] : memref<1x8x256xf32, #tpu.memory_space<vmem>>, vector<1x8x256xf32>
    %3 = vector.shape_cast %2 : vector<1x8x256xf32> to vector<8x256xf32>
    %c73_i32 = arith.constant 73 : i32
    %4 = tpu.dynamic_rotate %3 by %c73_i32 dim 1 : vector<8x256xf32>, i32 -> vector<8x256xf32>
    %c0_3 = arith.constant 0 : index
    %c0_4 = arith.constant 0 : index
    %5 = vector.load %arg1[%c0_3, %c0_4] : memref<27x256xf32, #tpu.memory_space<vmem>>, vector<1x256xf32>
    %6 = vector.broadcast %5 : vector<1x256xf32> to vector<8x256xf32>
    %7 = arith.mulf %4, %6 : vector<8x256xf32>
    %c0_5 = arith.constant 0 : index
    %c0_6 = arith.constant 0 : index
    %8 = vector.load %arg6[%c0_5, %c0_6] : memref<256x256xf32, #tpu.memory_space<vmem>>, vector<8x256xf32>
    tpu.vector_store %arg6[%c0_5, %c0_6], %7 {strides = array<i32>} : memref<256x256xf32, #tpu.memory_space<vmem>>, vector<8x256xf32>,
    %c72_i32 = arith.constant 72 : i32
    %9 = tpu.dynamic_rotate %3 by %c72_i32 dim 1 : vector<8x256xf32>, i32 -> vector<8x256xf32>
    %c1 = arith.constant 1 : index
    %c0_7 = arith.constant 0 : index
    %10 = vector.load %arg1[%c1, %c0_7] : memref<27x256xf32, #tpu.memory_space<vmem>>, vector<1x256xf32>
    %11 = vector.broadcast %10 : vector<1x256xf32> to vector<8x256xf32>
    %12 = arith.mulf %9, %11 : vector<8x256xf32>
    %c8 = arith.constant 8 : index
    %c0_8 = arith.constant 0 : index
    %13 = vector.load %arg6[%c8, %c0_8] : memref<256x256xf32, #tpu.memory_space<vmem>>, vector<8x256xf32>
    tpu.vector_store %arg6[%c8, %c0_8], %12 {strides = array<i32>} : memref<256x256xf32, #tpu.memory_space<vmem>>, vector<8x256xf32>,
    %c71_i32 = arith.constant 71 : i32
    %14 = tpu.dynamic_rotate %3 by %c71_i32 dim 1 : vector<8x256xf32>, i32 -> vector<8x256xf32>
    %c2 = arith.constant 2 : index
    %c0_9 = arith.constant 0 : index
    %15 = vector.load %arg1[%c2, %c0_9] : memref<27x256xf32, #tpu.memory_space<vmem>>, vector<1x256xf32>
    %16 = vector.broadcast %15 : vector<1x256xf32> to vector<8x256xf32>
    %17 = arith.mulf %14, %16 : vector<8x256xf32>
    %c16 = arith.constant 16 : index
    %c0_10 = arith.constant 0 : index
    %18 = vector.load %arg6[%c16, %c0_10] : memref<256x256xf32, #tpu.memory_space<vmem>>, vector<8x256xf32>
    tpu.vector_store %arg6[%c16, %c0_10], %17 {strides = array<i32>} : memref<256x256xf32, #tpu.memory_space<vmem>>, vector<8x256xf32>,
    %c65_i32 = arith.constant 65 : i32
    %19 = tpu.dynamic_rotate %3 by %c65_i32 dim 1 : vector<8x256xf32>, i32 -> vector<8x256xf32>
    %c3 = arith.constant 3 : index
    %c0_11 = arith.constant 0 : index
    %20 = vector.load %arg1[%c3, %c0_11] : memref<27x256xf32, #tpu.memory_space<vmem>>, vector<1x256xf32>
    %21 = vector.broadcast %20 : vector<1x256xf32> to vector<8x256xf32>
    %22 = arith.mulf %19, %21 : vector<8x256xf32>
    %c24 = arith.constant 24 : index
    %c0_12 = arith.constant 0 : index
    %23 = vector.load %arg6[%c24, %c0_12] : memref<256x256xf32, #tpu.memory_space<vmem>>, vector<8x256xf32>
    tpu.vector_store %arg6[%c24, %c0_12], %22 {strides = array<i32>} : memref<256x256xf32, #tpu.memory_space<vmem>>, vector<8x256xf32>,
    %c64_i32 = arith.constant 64 : i32
    %24 = tpu.dynamic_rotate %3 by %c64_i32 dim 1 : vector<8x256xf32>, i32 -> vector<8x256xf32>
    %c4 = arith.constant 4 : index
    %c0_13 = arith.constant 0 : index
    %25 = vector.load %arg1[%c4, %c0_13] : memref<27x256xf32, #tpu.memory_space<vmem>>, vector<1x256xf32>
    %26 = vector.broadcast %25 : vector<1x256xf32> to vector<8x256xf32>
    %27 = arith.mulf %24, %26 : vector<8x256xf32>
    %c32 = arith.constant 32 : index
    %c0_14 = arith.constant 0 : index
    %28 = vector.load %arg6[%c32, %c0_14] : memref<256x256xf32, #tpu.memory_space<vmem>>, vector<8x256xf32>
    tpu.vector_store %arg6[%c32, %c0_14], %27 {strides = array<i32>} : memref<256x256xf32, #tpu.memory_space<vmem>>, vector<8x256xf32>,
    %c63_i32 = arith.constant 63 : i32
    %29 = tpu.dynamic_rotate %3 by %c63_i32 dim 1 : vector<8x256xf32>, i32 -> vector<8x256xf32>
    %c5 = arith.constant 5 : index
    %c0_15 = arith.constant 0 : index
    %30 = vector.load %arg1[%c5, %c0_15] : memref<27x256xf32, #tpu.memory_space<vmem>>, vector<1x256xf32>
    %31 = vector.broadcast %30 : vector<1x256xf32> to vector<8x256xf32>
    %32 = arith.mulf %29, %31 : vector<8x256xf32>
    %c40 = arith.constant 40 : index
    %c0_16 = arith.constant 0 : index
    %33 = vector.load %arg6[%c40, %c0_16] : memref<256x256xf32, #tpu.memory_space<vmem>>, vector<8x256xf32>
    tpu.vector_store %arg6[%c40, %c0_16], %32 {strides = array<i32>} : memref<256x256xf32, #tpu.memory_space<vmem>>, vector<8x256xf32>,
    %c57_i32 = arith.constant 57 : i32
    %34 = tpu.dynamic_rotate %3 by %c57_i32 dim 1 : vector<8x256xf32>, i32 -> vector<8x256xf32>
    %c6 = arith.constant 6 : index
    %c0_17 = arith.constant 0 : index
    %35 = vector.load %arg1[%c6, %c0_17] : memref<27x256xf32, #tpu.memory_space<vmem>>, vector<1x256xf32>
    %36 = vector.broadcast %35 : vector<1x256xf32> to vector<8x256xf32>
    %37 = arith.mulf %34, %36 : vector<8x256xf32>
    %c48 = arith.constant 48 : index
    %c0_18 = arith.constant 0 : index
    %38 = vector.load %arg6[%c48, %c0_18] : memref<256x256xf32, #tpu.memory_space<vmem>>, vector<8x256xf32>
    tpu.vector_store %arg6[%c48, %c0_18], %37 {strides = array<i32>} : memref<256x256xf32, #tpu.memory_space<vmem>>, vector<8x256xf32>,
    %c56_i32 = arith.constant 56 : i32
    %39 = tpu.dynamic_rotate %3 by %c56_i32 dim 1 : vector<8x256xf32>, i32 -> vector<8x256xf32>
    %c7 = arith.constant 7 : index
    %c0_19 = arith.constant 0 : index
    %40 = vector.load %arg1[%c7, %c0_19] : memref<27x256xf32, #tpu.memory_space<vmem>>, vector<1x256xf32>
    %41 = vector.broadcast %40 : vector<1x256xf32> to vector<8x256xf32>
    %42 = arith.mulf %39, %41 : vector<8x256xf32>
    %c56 = arith.constant 56 : index
    %c0_20 = arith.constant 0 : index
    %43 = vector.load %arg6[%c56, %c0_20] : memref<256x256xf32, #tpu.memory_space<vmem>>, vector<8x256xf32>
    tpu.vector_store %arg6[%c56, %c0_20], %42 {strides = array<i32>} : memref<256x256xf32, #tpu.memory_space<vmem>>, vector<8x256xf32>,
    %c55_i32 = arith.constant 55 : i32
    %44 = tpu.dynamic_rotate %3 by %c55_i32 dim 1 : vector<8x256xf32>, i32 -> vector<8x256xf32>
    %c8_21 = arith.constant 8 : index
    %c0_22 = arith.constant 0 : index
    %45 = vector.load %arg1[%c8_21, %c0_22] : memref<27x256xf32, #tpu.memory_space<vmem>>, vector<1x256xf32>
    %46 = vector.broadcast %45 : vector<1x256xf32> to vector<8x256xf32>
    %47 = arith.mulf %44, %46 : vector<8x256xf32>
    %c64 = arith.constant 64 : index
    %c0_23 = arith.constant 0 : index
    %48 = vector.load %arg6[%c64, %c0_23] : memref<256x256xf32, #tpu.memory_space<vmem>>, vector<8x256xf32>
    tpu.vector_store %arg6[%c64, %c0_23], %47 {strides = array<i32>} : memref<256x256xf32, #tpu.memory_space<vmem>>, vector<8x256xf32>,
    %c9_i32 = arith.constant 9 : i32
    %49 = tpu.dynamic_rotate %3 by %c9_i32 dim 1 : vector<8x256xf32>, i32 -> vector<8x256xf32>
    %c9 = arith.constant 9 : index
    %c0_24 = arith.constant 0 : index
    %50 = vector.load %arg1[%c9, %c0_24] : memref<27x256xf32, #tpu.memory_space<vmem>>, vector<1x256xf32>
    %51 = vector.broadcast %50 : vector<1x256xf32> to vector<8x256xf32>
    %52 = arith.mulf %49, %51 : vector<8x256xf32>
    %c72 = arith.constant 72 : index
    %c0_25 = arith.constant 0 : index
    %53 = vector.load %arg6[%c72, %c0_25] : memref<256x256xf32, #tpu.memory_space<vmem>>, vector<8x256xf32>
    tpu.vector_store %arg6[%c72, %c0_25], %52 {strides = array<i32>} : memref<256x256xf32, #tpu.memory_space<vmem>>, vector<8x256xf32>,
    %c8_i32 = arith.constant 8 : i32
    %54 = tpu.dynamic_rotate %3 by %c8_i32 dim 1 : vector<8x256xf32>, i32 -> vector<8x256xf32>
    %c10 = arith.constant 10 : index
    %c0_26 = arith.constant 0 : index
    %55 = vector.load %arg1[%c10, %c0_26] : memref<27x256xf32, #tpu.memory_space<vmem>>, vector<1x256xf32>
    %56 = vector.broadcast %55 : vector<1x256xf32> to vector<8x256xf32>
    %57 = arith.mulf %54, %56 : vector<8x256xf32>
    %c80 = arith.constant 80 : index
    %c0_27 = arith.constant 0 : index
    %58 = vector.load %arg6[%c80, %c0_27] : memref<256x256xf32, #tpu.memory_space<vmem>>, vector<8x256xf32>
    tpu.vector_store %arg6[%c80, %c0_27], %57 {strides = array<i32>} : memref<256x256xf32, #tpu.memory_space<vmem>>, vector<8x256xf32>,
    %c7_i32 = arith.constant 7 : i32
    %59 = tpu.dynamic_rotate %3 by %c7_i32 dim 1 : vector<8x256xf32>, i32 -> vector<8x256xf32>
    %c11 = arith.constant 11 : index
    %c0_28 = arith.constant 0 : index
    %60 = vector.load %arg1[%c11, %c0_28] : memref<27x256xf32, #tpu.memory_space<vmem>>, vector<1x256xf32>
    %61 = vector.broadcast %60 : vector<1x256xf32> to vector<8x256xf32>
    %62 = arith.mulf %59, %61 : vector<8x256xf32>
    %c88 = arith.constant 88 : index
    %c0_29 = arith.constant 0 : index
    %63 = vector.load %arg6[%c88, %c0_29] : memref<256x256xf32, #tpu.memory_space<vmem>>, vector<8x256xf32>
    tpu.vector_store %arg6[%c88, %c0_29], %62 {strides = array<i32>} : memref<256x256xf32, #tpu.memory_space<vmem>>, vector<8x256xf32>,
    %c1_i32 = arith.constant 1 : i32
    %64 = tpu.dynamic_rotate %3 by %c1_i32 dim 1 : vector<8x256xf32>, i32 -> vector<8x256xf32>
    %c12 = arith.constant 12 : index
    %c0_30 = arith.constant 0 : index
    %65 = vector.load %arg1[%c12, %c0_30] : memref<27x256xf32, #tpu.memory_space<vmem>>, vector<1x256xf32>
    %66 = vector.broadcast %65 : vector<1x256xf32> to vector<8x256xf32>
    %67 = arith.mulf %64, %66 : vector<8x256xf32>
    %c96 = arith.constant 96 : index
    %c0_31 = arith.constant 0 : index
    %68 = vector.load %arg6[%c96, %c0_31] : memref<256x256xf32, #tpu.memory_space<vmem>>, vector<8x256xf32>
    tpu.vector_store %arg6[%c96, %c0_31], %67 {strides = array<i32>} : memref<256x256xf32, #tpu.memory_space<vmem>>, vector<8x256xf32>,
    %c104 = arith.constant 104 : index
    %c0_32 = arith.constant 0 : index
    %69 = vector.load %arg6[%c104, %c0_32] : memref<256x256xf32, #tpu.memory_space<vmem>>, vector<8x256xf32>
    tpu.vector_store %arg6[%c104, %c0_32], %3 {strides = array<i32>} : memref<256x256xf32, #tpu.memory_space<vmem>>, vector<8x256xf32>,
    %c255_i32 = arith.constant 255 : i32
    %70 = tpu.dynamic_rotate %3 by %c255_i32 dim 1 : vector<8x256xf32>, i32 -> vector<8x256xf32>
    %c14 = arith.constant 14 : index
    %c0_33 = arith.constant 0 : index
    %71 = vector.load %arg1[%c14, %c0_33] : memref<27x256xf32, #tpu.memory_space<vmem>>, vector<1x256xf32>
    %72 = vector.broadcast %71 : vector<1x256xf32> to vector<8x256xf32>
    %73 = arith.mulf %70, %72 : vector<8x256xf32>
    %c112 = arith.constant 112 : index
    %c0_34 = arith.constant 0 : index
    %74 = vector.load %arg6[%c112, %c0_34] : memref<256x256xf32, #tpu.memory_space<vmem>>, vector<8x256xf32>
    tpu.vector_store %arg6[%c112, %c0_34], %73 {strides = array<i32>} : memref<256x256xf32, #tpu.memory_space<vmem>>, vector<8x256xf32>,
    %c249_i32 = arith.constant 249 : i32
    %75 = tpu.dynamic_rotate %3 by %c249_i32 dim 1 : vector<8x256xf32>, i32 -> vector<8x256xf32>
    %c15 = arith.constant 15 : index
    %c0_35 = arith.constant 0 : index
    %76 = vector.load %arg1[%c15, %c0_35] : memref<27x256xf32, #tpu.memory_space<vmem>>, vector<1x256xf32>
    %77 = vector.broadcast %76 : vector<1x256xf32> to vector<8x256xf32>
    %78 = arith.mulf %75, %77 : vector<8x256xf32>
    %c120 = arith.constant 120 : index
    %c0_36 = arith.constant 0 : index
    %79 = vector.load %arg6[%c120, %c0_36] : memref<256x256xf32, #tpu.memory_space<vmem>>, vector<8x256xf32>
    tpu.vector_store %arg6[%c120, %c0_36], %78 {strides = array<i32>} : memref<256x256xf32, #tpu.memory_space<vmem>>, vector<8x256xf32>,
    %c248_i32 = arith.constant 248 : i32
    %80 = tpu.dynamic_rotate %3 by %c248_i32 dim 1 : vector<8x256xf32>, i32 -> vector<8x256xf32>
    %c16_37 = arith.constant 16 : index
    %c0_38 = arith.constant 0 : index
    %81 = vector.load %arg1[%c16_37, %c0_38] : memref<27x256xf32, #tpu.memory_space<vmem>>, vector<1x256xf32>
    %82 = vector.broadcast %81 : vector<1x256xf32> to vector<8x256xf32>
    %83 = arith.mulf %80, %82 : vector<8x256xf32>
    %c128 = arith.constant 128 : index
    %c0_39 = arith.constant 0 : index
    %84 = vector.load %arg6[%c128, %c0_39] : memref<256x256xf32, #tpu.memory_space<vmem>>, vector<8x256xf32>
    tpu.vector_store %arg6[%c128, %c0_39], %83 {strides = array<i32>} : memref<256x256xf32, #tpu.memory_space<vmem>>, vector<8x256xf32>,
    %c247_i32 = arith.constant 247 : i32
    %85 = tpu.dynamic_rotate %3 by %c247_i32 dim 1 : vector<8x256xf32>, i32 -> vector<8x256xf32>
    %c17 = arith.constant 17 : index
    %c0_40 = arith.constant 0 : index
    %86 = vector.load %arg1[%c17, %c0_40] : memref<27x256xf32, #tpu.memory_space<vmem>>, vector<1x256xf32>
    %87 = vector.broadcast %86 : vector<1x256xf32> to vector<8x256xf32>
    %88 = arith.mulf %85, %87 : vector<8x256xf32>
    %c136 = arith.constant 136 : index
    %c0_41 = arith.constant 0 : index
    %89 = vector.load %arg6[%c136, %c0_41] : memref<256x256xf32, #tpu.memory_space<vmem>>, vector<8x256xf32>
    tpu.vector_store %arg6[%c136, %c0_41], %88 {strides = array<i32>} : memref<256x256xf32, #tpu.memory_space<vmem>>, vector<8x256xf32>,
    %c201_i32 = arith.constant 201 : i32
    %90 = tpu.dynamic_rotate %3 by %c201_i32 dim 1 : vector<8x256xf32>, i32 -> vector<8x256xf32>
    %c18 = arith.constant 18 : index
    %c0_42 = arith.constant 0 : index
    %91 = vector.load %arg1[%c18, %c0_42] : memref<27x256xf32, #tpu.memory_space<vmem>>, vector<1x256xf32>
    %92 = vector.broadcast %91 : vector<1x256xf32> to vector<8x256xf32>
    %93 = arith.mulf %90, %92 : vector<8x256xf32>
    %c144 = arith.constant 144 : index
    %c0_43 = arith.constant 0 : index
    %94 = vector.load %arg6[%c144, %c0_43] : memref<256x256xf32, #tpu.memory_space<vmem>>, vector<8x256xf32>
    tpu.vector_store %arg6[%c144, %c0_43], %93 {strides = array<i32>} : memref<256x256xf32, #tpu.memory_space<vmem>>, vector<8x256xf32>,
    %c200_i32 = arith.constant 200 : i32
    %95 = tpu.dynamic_rotate %3 by %c200_i32 dim 1 : vector<8x256xf32>, i32 -> vector<8x256xf32>
    %c19 = arith.constant 19 : index
    %c0_44 = arith.constant 0 : index
    %96 = vector.load %arg1[%c19, %c0_44] : memref<27x256xf32, #tpu.memory_space<vmem>>, vector<1x256xf32>
    %97 = vector.broadcast %96 : vector<1x256xf32> to vector<8x256xf32>
    %98 = arith.mulf %95, %97 : vector<8x256xf32>
    %c152 = arith.constant 152 : index
    %c0_45 = arith.constant 0 : index
    %99 = vector.load %arg6[%c152, %c0_45] : memref<256x256xf32, #tpu.memory_space<vmem>>, vector<8x256xf32>
    tpu.vector_store %arg6[%c152, %c0_45], %98 {strides = array<i32>} : memref<256x256xf32, #tpu.memory_space<vmem>>, vector<8x256xf32>,
    %c199_i32 = arith.constant 199 : i32
    %100 = tpu.dynamic_rotate %3 by %c199_i32 dim 1 : vector<8x256xf32>, i32 -> vector<8x256xf32>
    %c20 = arith.constant 20 : index
    %c0_46 = arith.constant 0 : index
    %101 = vector.load %arg1[%c20, %c0_46] : memref<27x256xf32, #tpu.memory_space<vmem>>, vector<1x256xf32>
    %102 = vector.broadcast %101 : vector<1x256xf32> to vector<8x256xf32>
    %103 = arith.mulf %100, %102 : vector<8x256xf32>
    %c160 = arith.constant 160 : index
    %c0_47 = arith.constant 0 : index
    %104 = vector.load %arg6[%c160, %c0_47] : memref<256x256xf32, #tpu.memory_space<vmem>>, vector<8x256xf32>
    tpu.vector_store %arg6[%c160, %c0_47], %103 {strides = array<i32>} : memref<256x256xf32, #tpu.memory_space<vmem>>, vector<8x256xf32>,
    %c193_i32 = arith.constant 193 : i32
    %105 = tpu.dynamic_rotate %3 by %c193_i32 dim 1 : vector<8x256xf32>, i32 -> vector<8x256xf32>
    %c21 = arith.constant 21 : index
    %c0_48 = arith.constant 0 : index
    %106 = vector.load %arg1[%c21, %c0_48] : memref<27x256xf32, #tpu.memory_space<vmem>>, vector<1x256xf32>
    %107 = vector.broadcast %106 : vector<1x256xf32> to vector<8x256xf32>
    %108 = arith.mulf %105, %107 : vector<8x256xf32>
    %c168 = arith.constant 168 : index
    %c0_49 = arith.constant 0 : index
    %109 = vector.load %arg6[%c168, %c0_49] : memref<256x256xf32, #tpu.memory_space<vmem>>, vector<8x256xf32>
    tpu.vector_store %arg6[%c168, %c0_49], %108 {strides = array<i32>} : memref<256x256xf32, #tpu.memory_space<vmem>>, vector<8x256xf32>,
    %c192_i32 = arith.constant 192 : i32
    %110 = tpu.dynamic_rotate %3 by %c192_i32 dim 1 : vector<8x256xf32>, i32 -> vector<8x256xf32>
    %c22 = arith.constant 22 : index
    %c0_50 = arith.constant 0 : index
    %111 = vector.load %arg1[%c22, %c0_50] : memref<27x256xf32, #tpu.memory_space<vmem>>, vector<1x256xf32>
    %112 = vector.broadcast %111 : vector<1x256xf32> to vector<8x256xf32>
    %113 = arith.mulf %110, %112 : vector<8x256xf32>
    %c176 = arith.constant 176 : index
    %c0_51 = arith.constant 0 : index
    %114 = vector.load %arg6[%c176, %c0_51] : memref<256x256xf32, #tpu.memory_space<vmem>>, vector<8x256xf32>
    tpu.vector_store %arg6[%c176, %c0_51], %113 {strides = array<i32>} : memref<256x256xf32, #tpu.memory_space<vmem>>, vector<8x256xf32>,
    %c191_i32 = arith.constant 191 : i32
    %115 = tpu.dynamic_rotate %3 by %c191_i32 dim 1 : vector<8x256xf32>, i32 -> vector<8x256xf32>
    %c23 = arith.constant 23 : index
    %c0_52 = arith.constant 0 : index
    %116 = vector.load %arg1[%c23, %c0_52] : memref<27x256xf32, #tpu.memory_space<vmem>>, vector<1x256xf32>
    %117 = vector.broadcast %116 : vector<1x256xf32> to vector<8x256xf32>
    %118 = arith.mulf %115, %117 : vector<8x256xf32>
    %c184 = arith.constant 184 : index
    %c0_53 = arith.constant 0 : index
    %119 = vector.load %arg6[%c184, %c0_53] : memref<256x256xf32, #tpu.memory_space<vmem>>, vector<8x256xf32>
    tpu.vector_store %arg6[%c184, %c0_53], %118 {strides = array<i32>} : memref<256x256xf32, #tpu.memory_space<vmem>>, vector<8x256xf32>,
    %c185_i32 = arith.constant 185 : i32
    %120 = tpu.dynamic_rotate %3 by %c185_i32 dim 1 : vector<8x256xf32>, i32 -> vector<8x256xf32>
    %c24_54 = arith.constant 24 : index
    %c0_55 = arith.constant 0 : index
    %121 = vector.load %arg1[%c24_54, %c0_55] : memref<27x256xf32, #tpu.memory_space<vmem>>, vector<1x256xf32>
    %122 = vector.broadcast %121 : vector<1x256xf32> to vector<8x256xf32>
    %123 = arith.mulf %120, %122 : vector<8x256xf32>
    %c192 = arith.constant 192 : index
    %c0_56 = arith.constant 0 : index
    %124 = vector.load %arg6[%c192, %c0_56] : memref<256x256xf32, #tpu.memory_space<vmem>>, vector<8x256xf32>
    tpu.vector_store %arg6[%c192, %c0_56], %123 {strides = array<i32>} : memref<256x256xf32, #tpu.memory_space<vmem>>, vector<8x256xf32>,
    %c184_i32 = arith.constant 184 : i32
    %125 = tpu.dynamic_rotate %3 by %c184_i32 dim 1 : vector<8x256xf32>, i32 -> vector<8x256xf32>
    %c25 = arith.constant 25 : index
    %c0_57 = arith.constant 0 : index
    %126 = vector.load %arg1[%c25, %c0_57] : memref<27x256xf32, #tpu.memory_space<vmem>>, vector<1x256xf32>
    %127 = vector.broadcast %126 : vector<1x256xf32> to vector<8x256xf32>
    %128 = arith.mulf %125, %127 : vector<8x256xf32>
    %c200 = arith.constant 200 : index
    %c0_58 = arith.constant 0 : index
    %129 = vector.load %arg6[%c200, %c0_58] : memref<256x256xf32, #tpu.memory_space<vmem>>, vector<8x256xf32>
    tpu.vector_store %arg6[%c200, %c0_58], %128 {strides = array<i32>} : memref<256x256xf32, #tpu.memory_space<vmem>>, vector<8x256xf32>,
    %c183_i32 = arith.constant 183 : i32
    %130 = tpu.dynamic_rotate %3 by %c183_i32 dim 1 : vector<8x256xf32>, i32 -> vector<8x256xf32>
    %c26 = arith.constant 26 : index
    %c0_59 = arith.constant 0 : index
    %131 = vector.load %arg1[%c26, %c0_59] : memref<27x256xf32, #tpu.memory_space<vmem>>, vector<1x256xf32>
    %132 = vector.broadcast %131 : vector<1x256xf32> to vector<8x256xf32>
    %133 = arith.mulf %130, %132 : vector<8x256xf32>
    %c208 = arith.constant 208 : index
    %c0_60 = arith.constant 0 : index
    %134 = vector.load %arg6[%c208, %c0_60] : memref<256x256xf32, #tpu.memory_space<vmem>>, vector<8x256xf32>
    tpu.vector_store %arg6[%c208, %c0_60], %133 {strides = array<i32>} : memref<256x256xf32, #tpu.memory_space<vmem>>, vector<8x256xf32>,
    %c0_61 = arith.constant 0 : index
    %c0_62 = arith.constant 0 : index
    %c0_63 = arith.constant 0 : index
    %135 = vector.load %arg3[%c0_61, %c0_62, %c0_63] : memref<5x8x256xf32, #tpu.memory_space<vmem>>, vector<1x8x256xf32>
    %136 = vector.shape_cast %135 : vector<1x8x256xf32> to vector<8x256xf32>
    %c0_64 = arith.constant 0 : index
    %c0_65 = arith.constant 0 : index
    %137 = vector.load %arg6[%c0_64, %c0_65] : memref<256x256xf32, #tpu.memory_space<vmem>>, vector<256x256xf32>
    %cst_66 = arith.constant dense<0.000000e+00> : vector<8x256xf32>
    %138 = tpu.matmul %136, %137, %cst_66 {dimension_numbers = #tpu.dot_dimension_numbers<[1], [0], [0], [1], [0, 0, 1, 1], [], []>} : vector<8x256xf32>, vector<256x256xf32>, vector<8x256xf32> -> vector<8x256xf32>
    %c0_67 = arith.constant 0 : index
    %c0_68 = arith.constant 0 : index
    %c0_69 = arith.constant 0 : index
    %139 = vector.load %arg4[%c0_67, %c0_68, %c0_69] : memref<5x8x1xf32, #tpu.memory_space<vmem>>, vector<1x8x1xf32>
    %140 = vector.shape_cast %139 : vector<1x8x1xf32> to vector<8x1xf32>
    %141 = vector.broadcast %140 : vector<8x1xf32> to vector<8x256xf32>
    %142 = arith.addf %138, %141 : vector<8x256xf32>
    %cst_70 = arith.constant 0.000000e+00 : f32
    %143 = vector.broadcast %cst_70 : f32 to vector<8x256xf32>
    %144 = arith.maximumf %142, %143 : vector<8x256xf32>
    %c73_i32_71 = arith.constant 73 : i32
    %145 = tpu.dynamic_rotate %144 by %c73_i32_71 dim 1 : vector<8x256xf32>, i32 -> vector<8x256xf32>
    %c0_72 = arith.constant 0 : index
    %c0_73 = arith.constant 0 : index
    %146 = vector.load %arg1[%c0_72, %c0_73] : memref<27x256xf32, #tpu.memory_space<vmem>>, vector<1x256xf32>
    %147 = vector.broadcast %146 : vector<1x256xf32> to vector<8x256xf32>
    %148 = arith.mulf %145, %147 : vector<8x256xf32>
    %c0_74 = arith.constant 0 : index
    %c0_75 = arith.constant 0 : index
    %149 = vector.load %arg6[%c0_74, %c0_75] : memref<256x256xf32, #tpu.memory_space<vmem>>, vector<8x256xf32>
    tpu.vector_store %arg6[%c0_74, %c0_75], %148 {strides = array<i32>} : memref<256x256xf32, #tpu.memory_space<vmem>>, vector<8x256xf32>,
    %c72_i32_76 = arith.constant 72 : i32
    %150 = tpu.dynamic_rotate %144 by %c72_i32_76 dim 1 : vector<8x256xf32>, i32 -> vector<8x256xf32>
    %c1_77 = arith.constant 1 : index
    %c0_78 = arith.constant 0 : index
    %151 = vector.load %arg1[%c1_77, %c0_78] : memref<27x256xf32, #tpu.memory_space<vmem>>, vector<1x256xf32>
    %152 = vector.broadcast %151 : vector<1x256xf32> to vector<8x256xf32>
    %153 = arith.mulf %150, %152 : vector<8x256xf32>
    %c8_79 = arith.constant 8 : index
    %c0_80 = arith.constant 0 : index
    %154 = vector.load %arg6[%c8_79, %c0_80] : memref<256x256xf32, #tpu.memory_space<vmem>>, vector<8x256xf32>
    tpu.vector_store %arg6[%c8_79, %c0_80], %153 {strides = array<i32>} : memref<256x256xf32, #tpu.memory_space<vmem>>, vector<8x256xf32>,
    %c71_i32_81 = arith.constant 71 : i32
    %155 = tpu.dynamic_rotate %144 by %c71_i32_81 dim 1 : vector<8x256xf32>, i32 -> vector<8x256xf32>
    %c2_82 = arith.constant 2 : index
    %c0_83 = arith.constant 0 : index
    %156 = vector.load %arg1[%c2_82, %c0_83] : memref<27x256xf32, #tpu.memory_space<vmem>>, vector<1x256xf32>
    %157 = vector.broadcast %156 : vector<1x256xf32> to vector<8x256xf32>
    %158 = arith.mulf %155, %157 : vector<8x256xf32>
    %c16_84 = arith.constant 16 : index
    %c0_85 = arith.constant 0 : index
    %159 = vector.load %arg6[%c16_84, %c0_85] : memref<256x256xf32, #tpu.memory_space<vmem>>, vector<8x256xf32>
    tpu.vector_store %arg6[%c16_84, %c0_85], %158 {strides = array<i32>} : memref<256x256xf32, #tpu.memory_space<vmem>>, vector<8x256xf32>,
    %c65_i32_86 = arith.constant 65 : i32
    %160 = tpu.dynamic_rotate %144 by %c65_i32_86 dim 1 : vector<8x256xf32>, i32 -> vector<8x256xf32>
    %c3_87 = arith.constant 3 : index
    %c0_88 = arith.constant 0 : index
    %161 = vector.load %arg1[%c3_87, %c0_88] : memref<27x256xf32, #tpu.memory_space<vmem>>, vector<1x256xf32>
    %162 = vector.broadcast %161 : vector<1x256xf32> to vector<8x256xf32>
    %163 = arith.mulf %160, %162 : vector<8x256xf32>
    %c24_89 = arith.constant 24 : index
    %c0_90 = arith.constant 0 : index
    %164 = vector.load %arg6[%c24_89, %c0_90] : memref<256x256xf32, #tpu.memory_space<vmem>>, vector<8x256xf32>
    tpu.vector_store %arg6[%c24_89, %c0_90], %163 {strides = array<i32>} : memref<256x256xf32, #tpu.memory_space<vmem>>, vector<8x256xf32>,
    %c64_i32_91 = arith.constant 64 : i32
    %165 = tpu.dynamic_rotate %144 by %c64_i32_91 dim 1 : vector<8x256xf32>, i32 -> vector<8x256xf32>
    %c4_92 = arith.constant 4 : index
    %c0_93 = arith.constant 0 : index
    %166 = vector.load %arg1[%c4_92, %c0_93] : memref<27x256xf32, #tpu.memory_space<vmem>>, vector<1x256xf32>
    %167 = vector.broadcast %166 : vector<1x256xf32> to vector<8x256xf32>
    %168 = arith.mulf %165, %167 : vector<8x256xf32>
    %c32_94 = arith.constant 32 : index
    %c0_95 = arith.constant 0 : index
    %169 = vector.load %arg6[%c32_94, %c0_95] : memref<256x256xf32, #tpu.memory_space<vmem>>, vector<8x256xf32>
    tpu.vector_store %arg6[%c32_94, %c0_95], %168 {strides = array<i32>} : memref<256x256xf32, #tpu.memory_space<vmem>>, vector<8x256xf32>,
    %c63_i32_96 = arith.constant 63 : i32
    %170 = tpu.dynamic_rotate %144 by %c63_i32_96 dim 1 : vector<8x256xf32>, i32 -> vector<8x256xf32>
    %c5_97 = arith.constant 5 : index
    %c0_98 = arith.constant 0 : index
    %171 = vector.load %arg1[%c5_97, %c0_98] : memref<27x256xf32, #tpu.memory_space<vmem>>, vector<1x256xf32>
    %172 = vector.broadcast %171 : vector<1x256xf32> to vector<8x256xf32>
    %173 = arith.mulf %170, %172 : vector<8x256xf32>
    %c40_99 = arith.constant 40 : index
    %c0_100 = arith.constant 0 : index
    %174 = vector.load %arg6[%c40_99, %c0_100] : memref<256x256xf32, #tpu.memory_space<vmem>>, vector<8x256xf32>
    tpu.vector_store %arg6[%c40_99, %c0_100], %173 {strides = array<i32>} : memref<256x256xf32, #tpu.memory_space<vmem>>, vector<8x256xf32>,
    %c57_i32_101 = arith.constant 57 : i32
    %175 = tpu.dynamic_rotate %144 by %c57_i32_101 dim 1 : vector<8x256xf32>, i32 -> vector<8x256xf32>
    %c6_102 = arith.constant 6 : index
    %c0_103 = arith.constant 0 : index
    %176 = vector.load %arg1[%c6_102, %c0_103] : memref<27x256xf32, #tpu.memory_space<vmem>>, vector<1x256xf32>
    %177 = vector.broadcast %176 : vector<1x256xf32> to vector<8x256xf32>
    %178 = arith.mulf %175, %177 : vector<8x256xf32>
    %c48_104 = arith.constant 48 : index
    %c0_105 = arith.constant 0 : index
    %179 = vector.load %arg6[%c48_104, %c0_105] : memref<256x256xf32, #tpu.memory_space<vmem>>, vector<8x256xf32>
    tpu.vector_store %arg6[%c48_104, %c0_105], %178 {strides = array<i32>} : memref<256x256xf32, #tpu.memory_space<vmem>>, vector<8x256xf32>,
    %c56_i32_106 = arith.constant 56 : i32
    %180 = tpu.dynamic_rotate %144 by %c56_i32_106 dim 1 : vector<8x256xf32>, i32 -> vector<8x256xf32>
    %c7_107 = arith.constant 7 : index
    %c0_108 = arith.constant 0 : index
    %181 = vector.load %arg1[%c7_107, %c0_108] : memref<27x256xf32, #tpu.memory_space<vmem>>, vector<1x256xf32>
    %182 = vector.broadcast %181 : vector<1x256xf32> to vector<8x256xf32>
    %183 = arith.mulf %180, %182 : vector<8x256xf32>
    %c56_109 = arith.constant 56 : index
    %c0_110 = arith.constant 0 : index
    %184 = vector.load %arg6[%c56_109, %c0_110] : memref<256x256xf32, #tpu.memory_space<vmem>>, vector<8x256xf32>
    tpu.vector_store %arg6[%c56_109, %c0_110], %183 {strides = array<i32>} : memref<256x256xf32, #tpu.memory_space<vmem>>, vector<8x256xf32>,
    %c55_i32_111 = arith.constant 55 : i32
    %185 = tpu.dynamic_rotate %144 by %c55_i32_111 dim 1 : vector<8x256xf32>, i32 -> vector<8x256xf32>
    %c8_112 = arith.constant 8 : index
    %c0_113 = arith.constant 0 : index
    %186 = vector.load %arg1[%c8_112, %c0_113] : memref<27x256xf32, #tpu.memory_space<vmem>>, vector<1x256xf32>
    %187 = vector.broadcast %186 : vector<1x256xf32> to vector<8x256xf32>
    %188 = arith.mulf %185, %187 : vector<8x256xf32>
    %c64_114 = arith.constant 64 : index
    %c0_115 = arith.constant 0 : index
    %189 = vector.load %arg6[%c64_114, %c0_115] : memref<256x256xf32, #tpu.memory_space<vmem>>, vector<8x256xf32>
    tpu.vector_store %arg6[%c64_114, %c0_115], %188 {strides = array<i32>} : memref<256x256xf32, #tpu.memory_space<vmem>>, vector<8x256xf32>,
    %c9_i32_116 = arith.constant 9 : i32
    %190 = tpu.dynamic_rotate %144 by %c9_i32_116 dim 1 : vector<8x256xf32>, i32 -> vector<8x256xf32>
    %c9_117 = arith.constant 9 : index
    %c0_118 = arith.constant 0 : index
    %191 = vector.load %arg1[%c9_117, %c0_118] : memref<27x256xf32, #tpu.memory_space<vmem>>, vector<1x256xf32>
    %192 = vector.broadcast %191 : vector<1x256xf32> to vector<8x256xf32>
    %193 = arith.mulf %190, %192 : vector<8x256xf32>
    %c72_119 = arith.constant 72 : index
    %c0_120 = arith.constant 0 : index
    %194 = vector.load %arg6[%c72_119, %c0_120] : memref<256x256xf32, #tpu.memory_space<vmem>>, vector<8x256xf32>
    tpu.vector_store %arg6[%c72_119, %c0_120], %193 {strides = array<i32>} : memref<256x256xf32, #tpu.memory_space<vmem>>, vector<8x256xf32>,
    %c8_i32_121 = arith.constant 8 : i32
    %195 = tpu.dynamic_rotate %144 by %c8_i32_121 dim 1 : vector<8x256xf32>, i32 -> vector<8x256xf32>
    %c10_122 = arith.constant 10 : index
    %c0_123 = arith.constant 0 : index
    %196 = vector.load %arg1[%c10_122, %c0_123] : memref<27x256xf32, #tpu.memory_space<vmem>>, vector<1x256xf32>
    %197 = vector.broadcast %196 : vector<1x256xf32> to vector<8x256xf32>
    %198 = arith.mulf %195, %197 : vector<8x256xf32>
    %c80_124 = arith.constant 80 : index
    %c0_125 = arith.constant 0 : index
    %199 = vector.load %arg6[%c80_124, %c0_125] : memref<256x256xf32, #tpu.memory_space<vmem>>, vector<8x256xf32>
    tpu.vector_store %arg6[%c80_124, %c0_125], %198 {strides = array<i32>} : memref<256x256xf32, #tpu.memory_space<vmem>>, vector<8x256xf32>,
    %c7_i32_126 = arith.constant 7 : i32
    %200 = tpu.dynamic_rotate %144 by %c7_i32_126 dim 1 : vector<8x256xf32>, i32 -> vector<8x256xf32>
    %c11_127 = arith.constant 11 : index
    %c0_128 = arith.constant 0 : index
    %201 = vector.load %arg1[%c11_127, %c0_128] : memref<27x256xf32, #tpu.memory_space<vmem>>, vector<1x256xf32>
    %202 = vector.broadcast %201 : vector<1x256xf32> to vector<8x256xf32>
    %203 = arith.mulf %200, %202 : vector<8x256xf32>
    %c88_129 = arith.constant 88 : index
    %c0_130 = arith.constant 0 : index
    %204 = vector.load %arg6[%c88_129, %c0_130] : memref<256x256xf32, #tpu.memory_space<vmem>>, vector<8x256xf32>
    tpu.vector_store %arg6[%c88_129, %c0_130], %203 {strides = array<i32>} : memref<256x256xf32, #tpu.memory_space<vmem>>, vector<8x256xf32>,
    %c1_i32_131 = arith.constant 1 : i32
    %205 = tpu.dynamic_rotate %144 by %c1_i32_131 dim 1 : vector<8x256xf32>, i32 -> vector<8x256xf32>
    %c12_132 = arith.constant 12 : index
    %c0_133 = arith.constant 0 : index
    %206 = vector.load %arg1[%c12_132, %c0_133] : memref<27x256xf32, #tpu.memory_space<vmem>>, vector<1x256xf32>
    %207 = vector.broadcast %206 : vector<1x256xf32> to vector<8x256xf32>
    %208 = arith.mulf %205, %207 : vector<8x256xf32>
    %c96_134 = arith.constant 96 : index
    %c0_135 = arith.constant 0 : index
    %209 = vector.load %arg6[%c96_134, %c0_135] : memref<256x256xf32, #tpu.memory_space<vmem>>, vector<8x256xf32>
    tpu.vector_store %arg6[%c96_134, %c0_135], %208 {strides = array<i32>} : memref<256x256xf32, #tpu.memory_space<vmem>>, vector<8x256xf32>,
    %c104_136 = arith.constant 104 : index
    %c0_137 = arith.constant 0 : index
    %210 = vector.load %arg6[%c104_136, %c0_137] : memref<256x256xf32, #tpu.memory_space<vmem>>, vector<8x256xf32>
    tpu.vector_store %arg6[%c104_136, %c0_137], %144 {strides = array<i32>} : memref<256x256xf32, #tpu.memory_space<vmem>>, vector<8x256xf32>,
    %c255_i32_138 = arith.constant 255 : i32
    %211 = tpu.dynamic_rotate %144 by %c255_i32_138 dim 1 : vector<8x256xf32>, i32 -> vector<8x256xf32>
    %c14_139 = arith.constant 14 : index
    %c0_140 = arith.constant 0 : index
    %212 = vector.load %arg1[%c14_139, %c0_140] : memref<27x256xf32, #tpu.memory_space<vmem>>, vector<1x256xf32>
    %213 = vector.broadcast %212 : vector<1x256xf32> to vector<8x256xf32>
    %214 = arith.mulf %211, %213 : vector<8x256xf32>
    %c112_141 = arith.constant 112 : index
    %c0_142 = arith.constant 0 : index
    %215 = vector.load %arg6[%c112_141, %c0_142] : memref<256x256xf32, #tpu.memory_space<vmem>>, vector<8x256xf32>
    tpu.vector_store %arg6[%c112_141, %c0_142], %214 {strides = array<i32>} : memref<256x256xf32, #tpu.memory_space<vmem>>, vector<8x256xf32>,
    %c249_i32_143 = arith.constant 249 : i32
    %216 = tpu.dynamic_rotate %144 by %c249_i32_143 dim 1 : vector<8x256xf32>, i32 -> vector<8x256xf32>
    %c15_144 = arith.constant 15 : index
    %c0_145 = arith.constant 0 : index
    %217 = vector.load %arg1[%c15_144, %c0_145] : memref<27x256xf32, #tpu.memory_space<vmem>>, vector<1x256xf32>
    %218 = vector.broadcast %217 : vector<1x256xf32> to vector<8x256xf32>
    %219 = arith.mulf %216, %218 : vector<8x256xf32>
    %c120_146 = arith.constant 120 : index
    %c0_147 = arith.constant 0 : index
    %220 = vector.load %arg6[%c120_146, %c0_147] : memref<256x256xf32, #tpu.memory_space<vmem>>, vector<8x256xf32>
    tpu.vector_store %arg6[%c120_146, %c0_147], %219 {strides = array<i32>} : memref<256x256xf32, #tpu.memory_space<vmem>>, vector<8x256xf32>,
    %c248_i32_148 = arith.constant 248 : i32
    %221 = tpu.dynamic_rotate %144 by %c248_i32_148 dim 1 : vector<8x256xf32>, i32 -> vector<8x256xf32>
    %c16_149 = arith.constant 16 : index
    %c0_150 = arith.constant 0 : index
    %222 = vector.load %arg1[%c16_149, %c0_150] : memref<27x256xf32, #tpu.memory_space<vmem>>, vector<1x256xf32>
    %223 = vector.broadcast %222 : vector<1x256xf32> to vector<8x256xf32>
    %224 = arith.mulf %221, %223 : vector<8x256xf32>
    %c128_151 = arith.constant 128 : index
    %c0_152 = arith.constant 0 : index
    %225 = vector.load %arg6[%c128_151, %c0_152] : memref<256x256xf32, #tpu.memory_space<vmem>>, vector<8x256xf32>
    tpu.vector_store %arg6[%c128_151, %c0_152], %224 {strides = array<i32>} : memref<256x256xf32, #tpu.memory_space<vmem>>, vector<8x256xf32>,
    %c247_i32_153 = arith.constant 247 : i32
    %226 = tpu.dynamic_rotate %144 by %c247_i32_153 dim 1 : vector<8x256xf32>, i32 -> vector<8x256xf32>
    %c17_154 = arith.constant 17 : index
    %c0_155 = arith.constant 0 : index
    %227 = vector.load %arg1[%c17_154, %c0_155] : memref<27x256xf32, #tpu.memory_space<vmem>>, vector<1x256xf32>
    %228 = vector.broadcast %227 : vector<1x256xf32> to vector<8x256xf32>
    %229 = arith.mulf %226, %228 : vector<8x256xf32>
    %c136_156 = arith.constant 136 : index
    %c0_157 = arith.constant 0 : index
    %230 = vector.load %arg6[%c136_156, %c0_157] : memref<256x256xf32, #tpu.memory_space<vmem>>, vector<8x256xf32>
    tpu.vector_store %arg6[%c136_156, %c0_157], %229 {strides = array<i32>} : memref<256x256xf32, #tpu.memory_space<vmem>>, vector<8x256xf32>,
    %c201_i32_158 = arith.constant 201 : i32
    %231 = tpu.dynamic_rotate %144 by %c201_i32_158 dim 1 : vector<8x256xf32>, i32 -> vector<8x256xf32>
    %c18_159 = arith.constant 18 : index
    %c0_160 = arith.constant 0 : index
    %232 = vector.load %arg1[%c18_159, %c0_160] : memref<27x256xf32, #tpu.memory_space<vmem>>, vector<1x256xf32>
    %233 = vector.broadcast %232 : vector<1x256xf32> to vector<8x256xf32>
    %234 = arith.mulf %231, %233 : vector<8x256xf32>
    %c144_161 = arith.constant 144 : index
    %c0_162 = arith.constant 0 : index
    %235 = vector.load %arg6[%c144_161, %c0_162] : memref<256x256xf32, #tpu.memory_space<vmem>>, vector<8x256xf32>
    tpu.vector_store %arg6[%c144_161, %c0_162], %234 {strides = array<i32>} : memref<256x256xf32, #tpu.memory_space<vmem>>, vector<8x256xf32>,
    %c200_i32_163 = arith.constant 200 : i32
    %236 = tpu.dynamic_rotate %144 by %c200_i32_163 dim 1 : vector<8x256xf32>, i32 -> vector<8x256xf32>
    %c19_164 = arith.constant 19 : index
    %c0_165 = arith.constant 0 : index
    %237 = vector.load %arg1[%c19_164, %c0_165] : memref<27x256xf32, #tpu.memory_space<vmem>>, vector<1x256xf32>
    %238 = vector.broadcast %237 : vector<1x256xf32> to vector<8x256xf32>
    %239 = arith.mulf %236, %238 : vector<8x256xf32>
    %c152_166 = arith.constant 152 : index
    %c0_167 = arith.constant 0 : index
    %240 = vector.load %arg6[%c152_166, %c0_167] : memref<256x256xf32, #tpu.memory_space<vmem>>, vector<8x256xf32>
    tpu.vector_store %arg6[%c152_166, %c0_167], %239 {strides = array<i32>} : memref<256x256xf32, #tpu.memory_space<vmem>>, vector<8x256xf32>,
    %c199_i32_168 = arith.constant 199 : i32
    %241 = tpu.dynamic_rotate %144 by %c199_i32_168 dim 1 : vector<8x256xf32>, i32 -> vector<8x256xf32>
    %c20_169 = arith.constant 20 : index
    %c0_170 = arith.constant 0 : index
    %242 = vector.load %arg1[%c20_169, %c0_170] : memref<27x256xf32, #tpu.memory_space<vmem>>, vector<1x256xf32>
    %243 = vector.broadcast %242 : vector<1x256xf32> to vector<8x256xf32>
    %244 = arith.mulf %241, %243 : vector<8x256xf32>
    %c160_171 = arith.constant 160 : index
    %c0_172 = arith.constant 0 : index
    %245 = vector.load %arg6[%c160_171, %c0_172] : memref<256x256xf32, #tpu.memory_space<vmem>>, vector<8x256xf32>
    tpu.vector_store %arg6[%c160_171, %c0_172], %244 {strides = array<i32>} : memref<256x256xf32, #tpu.memory_space<vmem>>, vector<8x256xf32>,
    %c193_i32_173 = arith.constant 193 : i32
    %246 = tpu.dynamic_rotate %144 by %c193_i32_173 dim 1 : vector<8x256xf32>, i32 -> vector<8x256xf32>
    %c21_174 = arith.constant 21 : index
    %c0_175 = arith.constant 0 : index
    %247 = vector.load %arg1[%c21_174, %c0_175] : memref<27x256xf32, #tpu.memory_space<vmem>>, vector<1x256xf32>
    %248 = vector.broadcast %247 : vector<1x256xf32> to vector<8x256xf32>
    %249 = arith.mulf %246, %248 : vector<8x256xf32>
    %c168_176 = arith.constant 168 : index
    %c0_177 = arith.constant 0 : index
    %250 = vector.load %arg6[%c168_176, %c0_177] : memref<256x256xf32, #tpu.memory_space<vmem>>, vector<8x256xf32>
    tpu.vector_store %arg6[%c168_176, %c0_177], %249 {strides = array<i32>} : memref<256x256xf32, #tpu.memory_space<vmem>>, vector<8x256xf32>,
    %c192_i32_178 = arith.constant 192 : i32
    %251 = tpu.dynamic_rotate %144 by %c192_i32_178 dim 1 : vector<8x256xf32>, i32 -> vector<8x256xf32>
    %c22_179 = arith.constant 22 : index
    %c0_180 = arith.constant 0 : index
    %252 = vector.load %arg1[%c22_179, %c0_180] : memref<27x256xf32, #tpu.memory_space<vmem>>, vector<1x256xf32>
    %253 = vector.broadcast %252 : vector<1x256xf32> to vector<8x256xf32>
    %254 = arith.mulf %251, %253 : vector<8x256xf32>
    %c176_181 = arith.constant 176 : index
    %c0_182 = arith.constant 0 : index
    %255 = vector.load %arg6[%c176_181, %c0_182] : memref<256x256xf32, #tpu.memory_space<vmem>>, vector<8x256xf32>
    tpu.vector_store %arg6[%c176_181, %c0_182], %254 {strides = array<i32>} : memref<256x256xf32, #tpu.memory_space<vmem>>, vector<8x256xf32>,
    %c191_i32_183 = arith.constant 191 : i32
    %256 = tpu.dynamic_rotate %144 by %c191_i32_183 dim 1 : vector<8x256xf32>, i32 -> vector<8x256xf32>
    %c23_184 = arith.constant 23 : index
    %c0_185 = arith.constant 0 : index
    %257 = vector.load %arg1[%c23_184, %c0_185] : memref<27x256xf32, #tpu.memory_space<vmem>>, vector<1x256xf32>
    %258 = vector.broadcast %257 : vector<1x256xf32> to vector<8x256xf32>
    %259 = arith.mulf %256, %258 : vector<8x256xf32>
    %c184_186 = arith.constant 184 : index
    %c0_187 = arith.constant 0 : index
    %260 = vector.load %arg6[%c184_186, %c0_187] : memref<256x256xf32, #tpu.memory_space<vmem>>, vector<8x256xf32>
    tpu.vector_store %arg6[%c184_186, %c0_187], %259 {strides = array<i32>} : memref<256x256xf32, #tpu.memory_space<vmem>>, vector<8x256xf32>,
    %c185_i32_188 = arith.constant 185 : i32
    %261 = tpu.dynamic_rotate %144 by %c185_i32_188 dim 1 : vector<8x256xf32>, i32 -> vector<8x256xf32>
    %c24_189 = arith.constant 24 : index
    %c0_190 = arith.constant 0 : index
    %262 = vector.load %arg1[%c24_189, %c0_190] : memref<27x256xf32, #tpu.memory_space<vmem>>, vector<1x256xf32>
    %263 = vector.broadcast %262 : vector<1x256xf32> to vector<8x256xf32>
    %264 = arith.mulf %261, %263 : vector<8x256xf32>
    %c192_191 = arith.constant 192 : index
    %c0_192 = arith.constant 0 : index
    %265 = vector.load %arg6[%c192_191, %c0_192] : memref<256x256xf32, #tpu.memory_space<vmem>>, vector<8x256xf32>
    tpu.vector_store %arg6[%c192_191, %c0_192], %264 {strides = array<i32>} : memref<256x256xf32, #tpu.memory_space<vmem>>, vector<8x256xf32>,
    %c184_i32_193 = arith.constant 184 : i32
    %266 = tpu.dynamic_rotate %144 by %c184_i32_193 dim 1 : vector<8x256xf32>, i32 -> vector<8x256xf32>
    %c25_194 = arith.constant 25 : index
    %c0_195 = arith.constant 0 : index
    %267 = vector.load %arg1[%c25_194, %c0_195] : memref<27x256xf32, #tpu.memory_space<vmem>>, vector<1x256xf32>
    %268 = vector.broadcast %267 : vector<1x256xf32> to vector<8x256xf32>
    %269 = arith.mulf %266, %268 : vector<8x256xf32>
    %c200_196 = arith.constant 200 : index
    %c0_197 = arith.constant 0 : index
    %270 = vector.load %arg6[%c200_196, %c0_197] : memref<256x256xf32, #tpu.memory_space<vmem>>, vector<8x256xf32>
    tpu.vector_store %arg6[%c200_196, %c0_197], %269 {strides = array<i32>} : memref<256x256xf32, #tpu.memory_space<vmem>>, vector<8x256xf32>,
    %c183_i32_198 = arith.constant 183 : i32
    %271 = tpu.dynamic_rotate %144 by %c183_i32_198 dim 1 : vector<8x256xf32>, i32 -> vector<8x256xf32>
    %c26_199 = arith.constant 26 : index
    %c0_200 = arith.constant 0 : index
    %272 = vector.load %arg1[%c26_199, %c0_200] : memref<27x256xf32, #tpu.memory_space<vmem>>, vector<1x256xf32>
    %273 = vector.broadcast %272 : vector<1x256xf32> to vector<8x256xf32>
    %274 = arith.mulf %271, %273 : vector<8x256xf32>
    %c208_201 = arith.constant 208 : index
    %c0_202 = arith.constant 0 : index
    %275 = vector.load %arg6[%c208_201, %c0_202] : memref<256x256xf32, #tpu.memory_space<vmem>>, vector<8x256xf32>
    tpu.vector_store %arg6[%c208_201, %c0_202], %274 {strides = array<i32>} : memref<256x256xf32, #tpu.memory_space<vmem>>, vector<8x256xf32>,
    %c1_203 = arith.constant 1 : index
    %c0_204 = arith.constant 0 : index
    %c0_205 = arith.constant 0 : index
    %276 = vector.load %arg3[%c1_203, %c0_204, %c0_205] : memref<5x8x256xf32, #tpu.memory_space<vmem>>, vector<1x8x256xf32>
    %277 = vector.shape_cast %276 : vector<1x8x256xf32> to vector<8x256xf32>
    %c0_206 = arith.constant 0 : index
    %c0_207 = arith.constant 0 : index
    %278 = vector.load %arg6[%c0_206, %c0_207] : memref<256x256xf32, #tpu.memory_space<vmem>>, vector<256x256xf32>
    %cst_208 = arith.constant dense<0.000000e+00> : vector<8x256xf32>
    %279 = tpu.matmul %277, %278, %cst_208 {dimension_numbers = #tpu.dot_dimension_numbers<[1], [0], [0], [1], [0, 0, 1, 1], [], []>} : vector<8x256xf32>, vector<256x256xf32>, vector<8x256xf32> -> vector<8x256xf32>
    %c1_209 = arith.constant 1 : index
    %c0_210 = arith.constant 0 : index
    %c0_211 = arith.constant 0 : index
    %280 = vector.load %arg4[%c1_209, %c0_210, %c0_211] : memref<5x8x1xf32, #tpu.memory_space<vmem>>, vector<1x8x1xf32>
    %281 = vector.shape_cast %280 : vector<1x8x1xf32> to vector<8x1xf32>
    %282 = vector.broadcast %281 : vector<8x1xf32> to vector<8x256xf32>
    %283 = arith.addf %279, %282 : vector<8x256xf32>
    %cst_212 = arith.constant 0.000000e+00 : f32
    %284 = vector.broadcast %cst_212 : f32 to vector<8x256xf32>
    %285 = arith.maximumf %283, %284 : vector<8x256xf32>
    %c73_i32_213 = arith.constant 73 : i32
    %286 = tpu.dynamic_rotate %285 by %c73_i32_213 dim 1 : vector<8x256xf32>, i32 -> vector<8x256xf32>
    %c0_214 = arith.constant 0 : index
    %c0_215 = arith.constant 0 : index
    %287 = vector.load %arg1[%c0_214, %c0_215] : memref<27x256xf32, #tpu.memory_space<vmem>>, vector<1x256xf32>
    %288 = vector.broadcast %287 : vector<1x256xf32> to vector<8x256xf32>
    %289 = arith.mulf %286, %288 : vector<8x256xf32>
    %c0_216 = arith.constant 0 : index
    %c0_217 = arith.constant 0 : index
    %290 = vector.load %arg6[%c0_216, %c0_217] : memref<256x256xf32, #tpu.memory_space<vmem>>, vector<8x256xf32>
    tpu.vector_store %arg6[%c0_216, %c0_217], %289 {strides = array<i32>} : memref<256x256xf32, #tpu.memory_space<vmem>>, vector<8x256xf32>,
    %c72_i32_218 = arith.constant 72 : i32
    %291 = tpu.dynamic_rotate %285 by %c72_i32_218 dim 1 : vector<8x256xf32>, i32 -> vector<8x256xf32>
    %c1_219 = arith.constant 1 : index
    %c0_220 = arith.constant 0 : index
    %292 = vector.load %arg1[%c1_219, %c0_220] : memref<27x256xf32, #tpu.memory_space<vmem>>, vector<1x256xf32>
    %293 = vector.broadcast %292 : vector<1x256xf32> to vector<8x256xf32>
    %294 = arith.mulf %291, %293 : vector<8x256xf32>
    %c8_221 = arith.constant 8 : index
    %c0_222 = arith.constant 0 : index
    %295 = vector.load %arg6[%c8_221, %c0_222] : memref<256x256xf32, #tpu.memory_space<vmem>>, vector<8x256xf32>
    tpu.vector_store %arg6[%c8_221, %c0_222], %294 {strides = array<i32>} : memref<256x256xf32, #tpu.memory_space<vmem>>, vector<8x256xf32>,
    %c71_i32_223 = arith.constant 71 : i32
    %296 = tpu.dynamic_rotate %285 by %c71_i32_223 dim 1 : vector<8x256xf32>, i32 -> vector<8x256xf32>
    %c2_224 = arith.constant 2 : index
    %c0_225 = arith.constant 0 : index
    %297 = vector.load %arg1[%c2_224, %c0_225] : memref<27x256xf32, #tpu.memory_space<vmem>>, vector<1x256xf32>
    %298 = vector.broadcast %297 : vector<1x256xf32> to vector<8x256xf32>
    %299 = arith.mulf %296, %298 : vector<8x256xf32>
    %c16_226 = arith.constant 16 : index
    %c0_227 = arith.constant 0 : index
    %300 = vector.load %arg6[%c16_226, %c0_227] : memref<256x256xf32, #tpu.memory_space<vmem>>, vector<8x256xf32>
    tpu.vector_store %arg6[%c16_226, %c0_227], %299 {strides = array<i32>} : memref<256x256xf32, #tpu.memory_space<vmem>>, vector<8x256xf32>,
    %c65_i32_228 = arith.constant 65 : i32
    %301 = tpu.dynamic_rotate %285 by %c65_i32_228 dim 1 : vector<8x256xf32>, i32 -> vector<8x256xf32>
    %c3_229 = arith.constant 3 : index
    %c0_230 = arith.constant 0 : index
    %302 = vector.load %arg1[%c3_229, %c0_230] : memref<27x256xf32, #tpu.memory_space<vmem>>, vector<1x256xf32>
    %303 = vector.broadcast %302 : vector<1x256xf32> to vector<8x256xf32>
    %304 = arith.mulf %301, %303 : vector<8x256xf32>
    %c24_231 = arith.constant 24 : index
    %c0_232 = arith.constant 0 : index
    %305 = vector.load %arg6[%c24_231, %c0_232] : memref<256x256xf32, #tpu.memory_space<vmem>>, vector<8x256xf32>
    tpu.vector_store %arg6[%c24_231, %c0_232], %304 {strides = array<i32>} : memref<256x256xf32, #tpu.memory_space<vmem>>, vector<8x256xf32>,
    %c64_i32_233 = arith.constant 64 : i32
    %306 = tpu.dynamic_rotate %285 by %c64_i32_233 dim 1 : vector<8x256xf32>, i32 -> vector<8x256xf32>
    %c4_234 = arith.constant 4 : index
    %c0_235 = arith.constant 0 : index
    %307 = vector.load %arg1[%c4_234, %c0_235] : memref<27x256xf32, #tpu.memory_space<vmem>>, vector<1x256xf32>
    %308 = vector.broadcast %307 : vector<1x256xf32> to vector<8x256xf32>
    %309 = arith.mulf %306, %308 : vector<8x256xf32>
    %c32_236 = arith.constant 32 : index
    %c0_237 = arith.constant 0 : index
    %310 = vector.load %arg6[%c32_236, %c0_237] : memref<256x256xf32, #tpu.memory_space<vmem>>, vector<8x256xf32>
    tpu.vector_store %arg6[%c32_236, %c0_237], %309 {strides = array<i32>} : memref<256x256xf32, #tpu.memory_space<vmem>>, vector<8x256xf32>,
    %c63_i32_238 = arith.constant 63 : i32
    %311 = tpu.dynamic_rotate %285 by %c63_i32_238 dim 1 : vector<8x256xf32>, i32 -> vector<8x256xf32>
    %c5_239 = arith.constant 5 : index
    %c0_240 = arith.constant 0 : index
    %312 = vector.load %arg1[%c5_239, %c0_240] : memref<27x256xf32, #tpu.memory_space<vmem>>, vector<1x256xf32>
    %313 = vector.broadcast %312 : vector<1x256xf32> to vector<8x256xf32>
    %314 = arith.mulf %311, %313 : vector<8x256xf32>
    %c40_241 = arith.constant 40 : index
    %c0_242 = arith.constant 0 : index
    %315 = vector.load %arg6[%c40_241, %c0_242] : memref<256x256xf32, #tpu.memory_space<vmem>>, vector<8x256xf32>
    tpu.vector_store %arg6[%c40_241, %c0_242], %314 {strides = array<i32>} : memref<256x256xf32, #tpu.memory_space<vmem>>, vector<8x256xf32>,
    %c57_i32_243 = arith.constant 57 : i32
    %316 = tpu.dynamic_rotate %285 by %c57_i32_243 dim 1 : vector<8x256xf32>, i32 -> vector<8x256xf32>
    %c6_244 = arith.constant 6 : index
    %c0_245 = arith.constant 0 : index
    %317 = vector.load %arg1[%c6_244, %c0_245] : memref<27x256xf32, #tpu.memory_space<vmem>>, vector<1x256xf32>
    %318 = vector.broadcast %317 : vector<1x256xf32> to vector<8x256xf32>
    %319 = arith.mulf %316, %318 : vector<8x256xf32>
    %c48_246 = arith.constant 48 : index
    %c0_247 = arith.constant 0 : index
    %320 = vector.load %arg6[%c48_246, %c0_247] : memref<256x256xf32, #tpu.memory_space<vmem>>, vector<8x256xf32>
    tpu.vector_store %arg6[%c48_246, %c0_247], %319 {strides = array<i32>} : memref<256x256xf32, #tpu.memory_space<vmem>>, vector<8x256xf32>,
    %c56_i32_248 = arith.constant 56 : i32
    %321 = tpu.dynamic_rotate %285 by %c56_i32_248 dim 1 : vector<8x256xf32>, i32 -> vector<8x256xf32>
    %c7_249 = arith.constant 7 : index
    %c0_250 = arith.constant 0 : index
    %322 = vector.load %arg1[%c7_249, %c0_250] : memref<27x256xf32, #tpu.memory_space<vmem>>, vector<1x256xf32>
    %323 = vector.broadcast %322 : vector<1x256xf32> to vector<8x256xf32>
    %324 = arith.mulf %321, %323 : vector<8x256xf32>
    %c56_251 = arith.constant 56 : index
    %c0_252 = arith.constant 0 : index
    %325 = vector.load %arg6[%c56_251, %c0_252] : memref<256x256xf32, #tpu.memory_space<vmem>>, vector<8x256xf32>
    tpu.vector_store %arg6[%c56_251, %c0_252], %324 {strides = array<i32>} : memref<256x256xf32, #tpu.memory_space<vmem>>, vector<8x256xf32>,
    %c55_i32_253 = arith.constant 55 : i32
    %326 = tpu.dynamic_rotate %285 by %c55_i32_253 dim 1 : vector<8x256xf32>, i32 -> vector<8x256xf32>
    %c8_254 = arith.constant 8 : index
    %c0_255 = arith.constant 0 : index
    %327 = vector.load %arg1[%c8_254, %c0_255] : memref<27x256xf32, #tpu.memory_space<vmem>>, vector<1x256xf32>
    %328 = vector.broadcast %327 : vector<1x256xf32> to vector<8x256xf32>
    %329 = arith.mulf %326, %328 : vector<8x256xf32>
    %c64_256 = arith.constant 64 : index
    %c0_257 = arith.constant 0 : index
    %330 = vector.load %arg6[%c64_256, %c0_257] : memref<256x256xf32, #tpu.memory_space<vmem>>, vector<8x256xf32>
    tpu.vector_store %arg6[%c64_256, %c0_257], %329 {strides = array<i32>} : memref<256x256xf32, #tpu.memory_space<vmem>>, vector<8x256xf32>,
    %c9_i32_258 = arith.constant 9 : i32
    %331 = tpu.dynamic_rotate %285 by %c9_i32_258 dim 1 : vector<8x256xf32>, i32 -> vector<8x256xf32>
    %c9_259 = arith.constant 9 : index
    %c0_260 = arith.constant 0 : index
    %332 = vector.load %arg1[%c9_259, %c0_260] : memref<27x256xf32, #tpu.memory_space<vmem>>, vector<1x256xf32>
    %333 = vector.broadcast %332 : vector<1x256xf32> to vector<8x256xf32>
    %334 = arith.mulf %331, %333 : vector<8x256xf32>
    %c72_261 = arith.constant 72 : index
    %c0_262 = arith.constant 0 : index
    %335 = vector.load %arg6[%c72_261, %c0_262] : memref<256x256xf32, #tpu.memory_space<vmem>>, vector<8x256xf32>
    tpu.vector_store %arg6[%c72_261, %c0_262], %334 {strides = array<i32>} : memref<256x256xf32, #tpu.memory_space<vmem>>, vector<8x256xf32>,
    %c8_i32_263 = arith.constant 8 : i32
    %336 = tpu.dynamic_rotate %285 by %c8_i32_263 dim 1 : vector<8x256xf32>, i32 -> vector<8x256xf32>
    %c10_264 = arith.constant 10 : index
    %c0_265 = arith.constant 0 : index
    %337 = vector.load %arg1[%c10_264, %c0_265] : memref<27x256xf32, #tpu.memory_space<vmem>>, vector<1x256xf32>
    %338 = vector.broadcast %337 : vector<1x256xf32> to vector<8x256xf32>
    %339 = arith.mulf %336, %338 : vector<8x256xf32>
    %c80_266 = arith.constant 80 : index
    %c0_267 = arith.constant 0 : index
    %340 = vector.load %arg6[%c80_266, %c0_267] : memref<256x256xf32, #tpu.memory_space<vmem>>, vector<8x256xf32>
    tpu.vector_store %arg6[%c80_266, %c0_267], %339 {strides = array<i32>} : memref<256x256xf32, #tpu.memory_space<vmem>>, vector<8x256xf32>,
    %c7_i32_268 = arith.constant 7 : i32
    %341 = tpu.dynamic_rotate %285 by %c7_i32_268 dim 1 : vector<8x256xf32>, i32 -> vector<8x256xf32>
    %c11_269 = arith.constant 11 : index
    %c0_270 = arith.constant 0 : index
    %342 = vector.load %arg1[%c11_269, %c0_270] : memref<27x256xf32, #tpu.memory_space<vmem>>, vector<1x256xf32>
    %343 = vector.broadcast %342 : vector<1x256xf32> to vector<8x256xf32>
    %344 = arith.mulf %341, %343 : vector<8x256xf32>
    %c88_271 = arith.constant 88 : index
    %c0_272 = arith.constant 0 : index
    %345 = vector.load %arg6[%c88_271, %c0_272] : memref<256x256xf32, #tpu.memory_space<vmem>>, vector<8x256xf32>
    tpu.vector_store %arg6[%c88_271, %c0_272], %344 {strides = array<i32>} : memref<256x256xf32, #tpu.memory_space<vmem>>, vector<8x256xf32>,
    %c1_i32_273 = arith.constant 1 : i32
    %346 = tpu.dynamic_rotate %285 by %c1_i32_273 dim 1 : vector<8x256xf32>, i32 -> vector<8x256xf32>
    %c12_274 = arith.constant 12 : index
    %c0_275 = arith.constant 0 : index
    %347 = vector.load %arg1[%c12_274, %c0_275] : memref<27x256xf32, #tpu.memory_space<vmem>>, vector<1x256xf32>
    %348 = vector.broadcast %347 : vector<1x256xf32> to vector<8x256xf32>
    %349 = arith.mulf %346, %348 : vector<8x256xf32>
    %c96_276 = arith.constant 96 : index
    %c0_277 = arith.constant 0 : index
    %350 = vector.load %arg6[%c96_276, %c0_277] : memref<256x256xf32, #tpu.memory_space<vmem>>, vector<8x256xf32>
    tpu.vector_store %arg6[%c96_276, %c0_277], %349 {strides = array<i32>} : memref<256x256xf32, #tpu.memory_space<vmem>>, vector<8x256xf32>,
    %c104_278 = arith.constant 104 : index
    %c0_279 = arith.constant 0 : index
    %351 = vector.load %arg6[%c104_278, %c0_279] : memref<256x256xf32, #tpu.memory_space<vmem>>, vector<8x256xf32>
    tpu.vector_store %arg6[%c104_278, %c0_279], %285 {strides = array<i32>} : memref<256x256xf32, #tpu.memory_space<vmem>>, vector<8x256xf32>,
    %c255_i32_280 = arith.constant 255 : i32
    %352 = tpu.dynamic_rotate %285 by %c255_i32_280 dim 1 : vector<8x256xf32>, i32 -> vector<8x256xf32>
    %c14_281 = arith.constant 14 : index
    %c0_282 = arith.constant 0 : index
    %353 = vector.load %arg1[%c14_281, %c0_282] : memref<27x256xf32, #tpu.memory_space<vmem>>, vector<1x256xf32>
    %354 = vector.broadcast %353 : vector<1x256xf32> to vector<8x256xf32>
    %355 = arith.mulf %352, %354 : vector<8x256xf32>
    %c112_283 = arith.constant 112 : index
    %c0_284 = arith.constant 0 : index
    %356 = vector.load %arg6[%c112_283, %c0_284] : memref<256x256xf32, #tpu.memory_space<vmem>>, vector<8x256xf32>
    tpu.vector_store %arg6[%c112_283, %c0_284], %355 {strides = array<i32>} : memref<256x256xf32, #tpu.memory_space<vmem>>, vector<8x256xf32>,
    %c249_i32_285 = arith.constant 249 : i32
    %357 = tpu.dynamic_rotate %285 by %c249_i32_285 dim 1 : vector<8x256xf32>, i32 -> vector<8x256xf32>
    %c15_286 = arith.constant 15 : index
    %c0_287 = arith.constant 0 : index
    %358 = vector.load %arg1[%c15_286, %c0_287] : memref<27x256xf32, #tpu.memory_space<vmem>>, vector<1x256xf32>
    %359 = vector.broadcast %358 : vector<1x256xf32> to vector<8x256xf32>
    %360 = arith.mulf %357, %359 : vector<8x256xf32>
    %c120_288 = arith.constant 120 : index
    %c0_289 = arith.constant 0 : index
    %361 = vector.load %arg6[%c120_288, %c0_289] : memref<256x256xf32, #tpu.memory_space<vmem>>, vector<8x256xf32>
    tpu.vector_store %arg6[%c120_288, %c0_289], %360 {strides = array<i32>} : memref<256x256xf32, #tpu.memory_space<vmem>>, vector<8x256xf32>,
    %c248_i32_290 = arith.constant 248 : i32
    %362 = tpu.dynamic_rotate %285 by %c248_i32_290 dim 1 : vector<8x256xf32>, i32 -> vector<8x256xf32>
    %c16_291 = arith.constant 16 : index
    %c0_292 = arith.constant 0 : index
    %363 = vector.load %arg1[%c16_291, %c0_292] : memref<27x256xf32, #tpu.memory_space<vmem>>, vector<1x256xf32>
    %364 = vector.broadcast %363 : vector<1x256xf32> to vector<8x256xf32>
    %365 = arith.mulf %362, %364 : vector<8x256xf32>
    %c128_293 = arith.constant 128 : index
    %c0_294 = arith.constant 0 : index
    %366 = vector.load %arg6[%c128_293, %c0_294] : memref<256x256xf32, #tpu.memory_space<vmem>>, vector<8x256xf32>
    tpu.vector_store %arg6[%c128_293, %c0_294], %365 {strides = array<i32>} : memref<256x256xf32, #tpu.memory_space<vmem>>, vector<8x256xf32>,
    %c247_i32_295 = arith.constant 247 : i32
    %367 = tpu.dynamic_rotate %285 by %c247_i32_295 dim 1 : vector<8x256xf32>, i32 -> vector<8x256xf32>
    %c17_296 = arith.constant 17 : index
    %c0_297 = arith.constant 0 : index
    %368 = vector.load %arg1[%c17_296, %c0_297] : memref<27x256xf32, #tpu.memory_space<vmem>>, vector<1x256xf32>
    %369 = vector.broadcast %368 : vector<1x256xf32> to vector<8x256xf32>
    %370 = arith.mulf %367, %369 : vector<8x256xf32>
    %c136_298 = arith.constant 136 : index
    %c0_299 = arith.constant 0 : index
    %371 = vector.load %arg6[%c136_298, %c0_299] : memref<256x256xf32, #tpu.memory_space<vmem>>, vector<8x256xf32>
    tpu.vector_store %arg6[%c136_298, %c0_299], %370 {strides = array<i32>} : memref<256x256xf32, #tpu.memory_space<vmem>>, vector<8x256xf32>,
    %c201_i32_300 = arith.constant 201 : i32
    %372 = tpu.dynamic_rotate %285 by %c201_i32_300 dim 1 : vector<8x256xf32>, i32 -> vector<8x256xf32>
    %c18_301 = arith.constant 18 : index
    %c0_302 = arith.constant 0 : index
    %373 = vector.load %arg1[%c18_301, %c0_302] : memref<27x256xf32, #tpu.memory_space<vmem>>, vector<1x256xf32>
    %374 = vector.broadcast %373 : vector<1x256xf32> to vector<8x256xf32>
    %375 = arith.mulf %372, %374 : vector<8x256xf32>
    %c144_303 = arith.constant 144 : index
    %c0_304 = arith.constant 0 : index
    %376 = vector.load %arg6[%c144_303, %c0_304] : memref<256x256xf32, #tpu.memory_space<vmem>>, vector<8x256xf32>
    tpu.vector_store %arg6[%c144_303, %c0_304], %375 {strides = array<i32>} : memref<256x256xf32, #tpu.memory_space<vmem>>, vector<8x256xf32>,
    %c200_i32_305 = arith.constant 200 : i32
    %377 = tpu.dynamic_rotate %285 by %c200_i32_305 dim 1 : vector<8x256xf32>, i32 -> vector<8x256xf32>
    %c19_306 = arith.constant 19 : index
    %c0_307 = arith.constant 0 : index
    %378 = vector.load %arg1[%c19_306, %c0_307] : memref<27x256xf32, #tpu.memory_space<vmem>>, vector<1x256xf32>
    %379 = vector.broadcast %378 : vector<1x256xf32> to vector<8x256xf32>
    %380 = arith.mulf %377, %379 : vector<8x256xf32>
    %c152_308 = arith.constant 152 : index
    %c0_309 = arith.constant 0 : index
    %381 = vector.load %arg6[%c152_308, %c0_309] : memref<256x256xf32, #tpu.memory_space<vmem>>, vector<8x256xf32>
    tpu.vector_store %arg6[%c152_308, %c0_309], %380 {strides = array<i32>} : memref<256x256xf32, #tpu.memory_space<vmem>>, vector<8x256xf32>,
    %c199_i32_310 = arith.constant 199 : i32
    %382 = tpu.dynamic_rotate %285 by %c199_i32_310 dim 1 : vector<8x256xf32>, i32 -> vector<8x256xf32>
    %c20_311 = arith.constant 20 : index
    %c0_312 = arith.constant 0 : index
    %383 = vector.load %arg1[%c20_311, %c0_312] : memref<27x256xf32, #tpu.memory_space<vmem>>, vector<1x256xf32>
    %384 = vector.broadcast %383 : vector<1x256xf32> to vector<8x256xf32>
    %385 = arith.mulf %382, %384 : vector<8x256xf32>
    %c160_313 = arith.constant 160 : index
    %c0_314 = arith.constant 0 : index
    %386 = vector.load %arg6[%c160_313, %c0_314] : memref<256x256xf32, #tpu.memory_space<vmem>>, vector<8x256xf32>
    tpu.vector_store %arg6[%c160_313, %c0_314], %385 {strides = array<i32>} : memref<256x256xf32, #tpu.memory_space<vmem>>, vector<8x256xf32>,
    %c193_i32_315 = arith.constant 193 : i32
    %387 = tpu.dynamic_rotate %285 by %c193_i32_315 dim 1 : vector<8x256xf32>, i32 -> vector<8x256xf32>
    %c21_316 = arith.constant 21 : index
    %c0_317 = arith.constant 0 : index
    %388 = vector.load %arg1[%c21_316, %c0_317] : memref<27x256xf32, #tpu.memory_space<vmem>>, vector<1x256xf32>
    %389 = vector.broadcast %388 : vector<1x256xf32> to vector<8x256xf32>
    %390 = arith.mulf %387, %389 : vector<8x256xf32>
    %c168_318 = arith.constant 168 : index
    %c0_319 = arith.constant 0 : index
    %391 = vector.load %arg6[%c168_318, %c0_319] : memref<256x256xf32, #tpu.memory_space<vmem>>, vector<8x256xf32>
    tpu.vector_store %arg6[%c168_318, %c0_319], %390 {strides = array<i32>} : memref<256x256xf32, #tpu.memory_space<vmem>>, vector<8x256xf32>,
    %c192_i32_320 = arith.constant 192 : i32
    %392 = tpu.dynamic_rotate %285 by %c192_i32_320 dim 1 : vector<8x256xf32>, i32 -> vector<8x256xf32>
    %c22_321 = arith.constant 22 : index
    %c0_322 = arith.constant 0 : index
    %393 = vector.load %arg1[%c22_321, %c0_322] : memref<27x256xf32, #tpu.memory_space<vmem>>, vector<1x256xf32>
    %394 = vector.broadcast %393 : vector<1x256xf32> to vector<8x256xf32>
    %395 = arith.mulf %392, %394 : vector<8x256xf32>
    %c176_323 = arith.constant 176 : index
    %c0_324 = arith.constant 0 : index
    %396 = vector.load %arg6[%c176_323, %c0_324] : memref<256x256xf32, #tpu.memory_space<vmem>>, vector<8x256xf32>
    tpu.vector_store %arg6[%c176_323, %c0_324], %395 {strides = array<i32>} : memref<256x256xf32, #tpu.memory_space<vmem>>, vector<8x256xf32>,
    %c191_i32_325 = arith.constant 191 : i32
    %397 = tpu.dynamic_rotate %285 by %c191_i32_325 dim 1 : vector<8x256xf32>, i32 -> vector<8x256xf32>
    %c23_326 = arith.constant 23 : index
    %c0_327 = arith.constant 0 : index
    %398 = vector.load %arg1[%c23_326, %c0_327] : memref<27x256xf32, #tpu.memory_space<vmem>>, vector<1x256xf32>
    %399 = vector.broadcast %398 : vector<1x256xf32> to vector<8x256xf32>
    %400 = arith.mulf %397, %399 : vector<8x256xf32>
    %c184_328 = arith.constant 184 : index
    %c0_329 = arith.constant 0 : index
    %401 = vector.load %arg6[%c184_328, %c0_329] : memref<256x256xf32, #tpu.memory_space<vmem>>, vector<8x256xf32>
    tpu.vector_store %arg6[%c184_328, %c0_329], %400 {strides = array<i32>} : memref<256x256xf32, #tpu.memory_space<vmem>>, vector<8x256xf32>,
    %c185_i32_330 = arith.constant 185 : i32
    %402 = tpu.dynamic_rotate %285 by %c185_i32_330 dim 1 : vector<8x256xf32>, i32 -> vector<8x256xf32>
    %c24_331 = arith.constant 24 : index
    %c0_332 = arith.constant 0 : index
    %403 = vector.load %arg1[%c24_331, %c0_332] : memref<27x256xf32, #tpu.memory_space<vmem>>, vector<1x256xf32>
    %404 = vector.broadcast %403 : vector<1x256xf32> to vector<8x256xf32>
    %405 = arith.mulf %402, %404 : vector<8x256xf32>
    %c192_333 = arith.constant 192 : index
    %c0_334 = arith.constant 0 : index
    %406 = vector.load %arg6[%c192_333, %c0_334] : memref<256x256xf32, #tpu.memory_space<vmem>>, vector<8x256xf32>
    tpu.vector_store %arg6[%c192_333, %c0_334], %405 {strides = array<i32>} : memref<256x256xf32, #tpu.memory_space<vmem>>, vector<8x256xf32>,
    %c184_i32_335 = arith.constant 184 : i32
    %407 = tpu.dynamic_rotate %285 by %c184_i32_335 dim 1 : vector<8x256xf32>, i32 -> vector<8x256xf32>
    %c25_336 = arith.constant 25 : index
    %c0_337 = arith.constant 0 : index
    %408 = vector.load %arg1[%c25_336, %c0_337] : memref<27x256xf32, #tpu.memory_space<vmem>>, vector<1x256xf32>
    %409 = vector.broadcast %408 : vector<1x256xf32> to vector<8x256xf32>
    %410 = arith.mulf %407, %409 : vector<8x256xf32>
    %c200_338 = arith.constant 200 : index
    %c0_339 = arith.constant 0 : index
    %411 = vector.load %arg6[%c200_338, %c0_339] : memref<256x256xf32, #tpu.memory_space<vmem>>, vector<8x256xf32>
    tpu.vector_store %arg6[%c200_338, %c0_339], %410 {strides = array<i32>} : memref<256x256xf32, #tpu.memory_space<vmem>>, vector<8x256xf32>,
    %c183_i32_340 = arith.constant 183 : i32
    %412 = tpu.dynamic_rotate %285 by %c183_i32_340 dim 1 : vector<8x256xf32>, i32 -> vector<8x256xf32>
    %c26_341 = arith.constant 26 : index
    %c0_342 = arith.constant 0 : index
    %413 = vector.load %arg1[%c26_341, %c0_342] : memref<27x256xf32, #tpu.memory_space<vmem>>, vector<1x256xf32>
    %414 = vector.broadcast %413 : vector<1x256xf32> to vector<8x256xf32>
    %415 = arith.mulf %412, %414 : vector<8x256xf32>
    %c208_343 = arith.constant 208 : index
    %c0_344 = arith.constant 0 : index
    %416 = vector.load %arg6[%c208_343, %c0_344] : memref<256x256xf32, #tpu.memory_space<vmem>>, vector<8x256xf32>
    tpu.vector_store %arg6[%c208_343, %c0_344], %415 {strides = array<i32>} : memref<256x256xf32, #tpu.memory_space<vmem>>, vector<8x256xf32>,
    %c2_345 = arith.constant 2 : index
    %c0_346 = arith.constant 0 : index
    %c0_347 = arith.constant 0 : index
    %417 = vector.load %arg3[%c2_345, %c0_346, %c0_347] : memref<5x8x256xf32, #tpu.memory_space<vmem>>, vector<1x8x256xf32>
    %418 = vector.shape_cast %417 : vector<1x8x256xf32> to vector<8x256xf32>
    %c0_348 = arith.constant 0 : index
    %c0_349 = arith.constant 0 : index
    %419 = vector.load %arg6[%c0_348, %c0_349] : memref<256x256xf32, #tpu.memory_space<vmem>>, vector<256x256xf32>
    %cst_350 = arith.constant dense<0.000000e+00> : vector<8x256xf32>
    %420 = tpu.matmul %418, %419, %cst_350 {dimension_numbers = #tpu.dot_dimension_numbers<[1], [0], [0], [1], [0, 0, 1, 1], [], []>} : vector<8x256xf32>, vector<256x256xf32>, vector<8x256xf32> -> vector<8x256xf32>
    %c2_351 = arith.constant 2 : index
    %c0_352 = arith.constant 0 : index
    %c0_353 = arith.constant 0 : index
    %421 = vector.load %arg4[%c2_351, %c0_352, %c0_353] : memref<5x8x1xf32, #tpu.memory_space<vmem>>, vector<1x8x1xf32>
    %422 = vector.shape_cast %421 : vector<1x8x1xf32> to vector<8x1xf32>
    %423 = vector.broadcast %422 : vector<8x1xf32> to vector<8x256xf32>
    %424 = arith.addf %420, %423 : vector<8x256xf32>
    %cst_354 = arith.constant 0.000000e+00 : f32
    %425 = vector.broadcast %cst_354 : f32 to vector<8x256xf32>
    %426 = arith.maximumf %424, %425 : vector<8x256xf32>
    %c73_i32_355 = arith.constant 73 : i32
    %427 = tpu.dynamic_rotate %426 by %c73_i32_355 dim 1 : vector<8x256xf32>, i32 -> vector<8x256xf32>
    %c0_356 = arith.constant 0 : index
    %c0_357 = arith.constant 0 : index
    %428 = vector.load %arg1[%c0_356, %c0_357] : memref<27x256xf32, #tpu.memory_space<vmem>>, vector<1x256xf32>
    %429 = vector.broadcast %428 : vector<1x256xf32> to vector<8x256xf32>
    %430 = arith.mulf %427, %429 : vector<8x256xf32>
    %c0_358 = arith.constant 0 : index
    %c0_359 = arith.constant 0 : index
    %431 = vector.load %arg6[%c0_358, %c0_359] : memref<256x256xf32, #tpu.memory_space<vmem>>, vector<8x256xf32>
    tpu.vector_store %arg6[%c0_358, %c0_359], %430 {strides = array<i32>} : memref<256x256xf32, #tpu.memory_space<vmem>>, vector<8x256xf32>,
    %c72_i32_360 = arith.constant 72 : i32
    %432 = tpu.dynamic_rotate %426 by %c72_i32_360 dim 1 : vector<8x256xf32>, i32 -> vector<8x256xf32>
    %c1_361 = arith.constant 1 : index
    %c0_362 = arith.constant 0 : index
    %433 = vector.load %arg1[%c1_361, %c0_362] : memref<27x256xf32, #tpu.memory_space<vmem>>, vector<1x256xf32>
    %434 = vector.broadcast %433 : vector<1x256xf32> to vector<8x256xf32>
    %435 = arith.mulf %432, %434 : vector<8x256xf32>
    %c8_363 = arith.constant 8 : index
    %c0_364 = arith.constant 0 : index
    %436 = vector.load %arg6[%c8_363, %c0_364] : memref<256x256xf32, #tpu.memory_space<vmem>>, vector<8x256xf32>
    tpu.vector_store %arg6[%c8_363, %c0_364], %435 {strides = array<i32>} : memref<256x256xf32, #tpu.memory_space<vmem>>, vector<8x256xf32>,
    %c71_i32_365 = arith.constant 71 : i32
    %437 = tpu.dynamic_rotate %426 by %c71_i32_365 dim 1 : vector<8x256xf32>, i32 -> vector<8x256xf32>
    %c2_366 = arith.constant 2 : index
    %c0_367 = arith.constant 0 : index
    %438 = vector.load %arg1[%c2_366, %c0_367] : memref<27x256xf32, #tpu.memory_space<vmem>>, vector<1x256xf32>
    %439 = vector.broadcast %438 : vector<1x256xf32> to vector<8x256xf32>
    %440 = arith.mulf %437, %439 : vector<8x256xf32>
    %c16_368 = arith.constant 16 : index
    %c0_369 = arith.constant 0 : index
    %441 = vector.load %arg6[%c16_368, %c0_369] : memref<256x256xf32, #tpu.memory_space<vmem>>, vector<8x256xf32>
    tpu.vector_store %arg6[%c16_368, %c0_369], %440 {strides = array<i32>} : memref<256x256xf32, #tpu.memory_space<vmem>>, vector<8x256xf32>,
    %c65_i32_370 = arith.constant 65 : i32
    %442 = tpu.dynamic_rotate %426 by %c65_i32_370 dim 1 : vector<8x256xf32>, i32 -> vector<8x256xf32>
    %c3_371 = arith.constant 3 : index
    %c0_372 = arith.constant 0 : index
    %443 = vector.load %arg1[%c3_371, %c0_372] : memref<27x256xf32, #tpu.memory_space<vmem>>, vector<1x256xf32>
    %444 = vector.broadcast %443 : vector<1x256xf32> to vector<8x256xf32>
    %445 = arith.mulf %442, %444 : vector<8x256xf32>
    %c24_373 = arith.constant 24 : index
    %c0_374 = arith.constant 0 : index
    %446 = vector.load %arg6[%c24_373, %c0_374] : memref<256x256xf32, #tpu.memory_space<vmem>>, vector<8x256xf32>
    tpu.vector_store %arg6[%c24_373, %c0_374], %445 {strides = array<i32>} : memref<256x256xf32, #tpu.memory_space<vmem>>, vector<8x256xf32>,
    %c64_i32_375 = arith.constant 64 : i32
    %447 = tpu.dynamic_rotate %426 by %c64_i32_375 dim 1 : vector<8x256xf32>, i32 -> vector<8x256xf32>
    %c4_376 = arith.constant 4 : index
    %c0_377 = arith.constant 0 : index
    %448 = vector.load %arg1[%c4_376, %c0_377] : memref<27x256xf32, #tpu.memory_space<vmem>>, vector<1x256xf32>
    %449 = vector.broadcast %448 : vector<1x256xf32> to vector<8x256xf32>
    %450 = arith.mulf %447, %449 : vector<8x256xf32>
    %c32_378 = arith.constant 32 : index
    %c0_379 = arith.constant 0 : index
    %451 = vector.load %arg6[%c32_378, %c0_379] : memref<256x256xf32, #tpu.memory_space<vmem>>, vector<8x256xf32>
    tpu.vector_store %arg6[%c32_378, %c0_379], %450 {strides = array<i32>} : memref<256x256xf32, #tpu.memory_space<vmem>>, vector<8x256xf32>,
    %c63_i32_380 = arith.constant 63 : i32
    %452 = tpu.dynamic_rotate %426 by %c63_i32_380 dim 1 : vector<8x256xf32>, i32 -> vector<8x256xf32>
    %c5_381 = arith.constant 5 : index
    %c0_382 = arith.constant 0 : index
    %453 = vector.load %arg1[%c5_381, %c0_382] : memref<27x256xf32, #tpu.memory_space<vmem>>, vector<1x256xf32>
    %454 = vector.broadcast %453 : vector<1x256xf32> to vector<8x256xf32>
    %455 = arith.mulf %452, %454 : vector<8x256xf32>
    %c40_383 = arith.constant 40 : index
    %c0_384 = arith.constant 0 : index
    %456 = vector.load %arg6[%c40_383, %c0_384] : memref<256x256xf32, #tpu.memory_space<vmem>>, vector<8x256xf32>
    tpu.vector_store %arg6[%c40_383, %c0_384], %455 {strides = array<i32>} : memref<256x256xf32, #tpu.memory_space<vmem>>, vector<8x256xf32>,
    %c57_i32_385 = arith.constant 57 : i32
    %457 = tpu.dynamic_rotate %426 by %c57_i32_385 dim 1 : vector<8x256xf32>, i32 -> vector<8x256xf32>
    %c6_386 = arith.constant 6 : index
    %c0_387 = arith.constant 0 : index
    %458 = vector.load %arg1[%c6_386, %c0_387] : memref<27x256xf32, #tpu.memory_space<vmem>>, vector<1x256xf32>
    %459 = vector.broadcast %458 : vector<1x256xf32> to vector<8x256xf32>
    %460 = arith.mulf %457, %459 : vector<8x256xf32>
    %c48_388 = arith.constant 48 : index
    %c0_389 = arith.constant 0 : index
    %461 = vector.load %arg6[%c48_388, %c0_389] : memref<256x256xf32, #tpu.memory_space<vmem>>, vector<8x256xf32>
    tpu.vector_store %arg6[%c48_388, %c0_389], %460 {strides = array<i32>} : memref<256x256xf32, #tpu.memory_space<vmem>>, vector<8x256xf32>,
    %c56_i32_390 = arith.constant 56 : i32
    %462 = tpu.dynamic_rotate %426 by %c56_i32_390 dim 1 : vector<8x256xf32>, i32 -> vector<8x256xf32>
    %c7_391 = arith.constant 7 : index
    %c0_392 = arith.constant 0 : index
    %463 = vector.load %arg1[%c7_391, %c0_392] : memref<27x256xf32, #tpu.memory_space<vmem>>, vector<1x256xf32>
    %464 = vector.broadcast %463 : vector<1x256xf32> to vector<8x256xf32>
    %465 = arith.mulf %462, %464 : vector<8x256xf32>
    %c56_393 = arith.constant 56 : index
    %c0_394 = arith.constant 0 : index
    %466 = vector.load %arg6[%c56_393, %c0_394] : memref<256x256xf32, #tpu.memory_space<vmem>>, vector<8x256xf32>
    tpu.vector_store %arg6[%c56_393, %c0_394], %465 {strides = array<i32>} : memref<256x256xf32, #tpu.memory_space<vmem>>, vector<8x256xf32>,
    %c55_i32_395 = arith.constant 55 : i32
    %467 = tpu.dynamic_rotate %426 by %c55_i32_395 dim 1 : vector<8x256xf32>, i32 -> vector<8x256xf32>
    %c8_396 = arith.constant 8 : index
    %c0_397 = arith.constant 0 : index
    %468 = vector.load %arg1[%c8_396, %c0_397] : memref<27x256xf32, #tpu.memory_space<vmem>>, vector<1x256xf32>
    %469 = vector.broadcast %468 : vector<1x256xf32> to vector<8x256xf32>
    %470 = arith.mulf %467, %469 : vector<8x256xf32>
    %c64_398 = arith.constant 64 : index
    %c0_399 = arith.constant 0 : index
    %471 = vector.load %arg6[%c64_398, %c0_399] : memref<256x256xf32, #tpu.memory_space<vmem>>, vector<8x256xf32>
    tpu.vector_store %arg6[%c64_398, %c0_399], %470 {strides = array<i32>} : memref<256x256xf32, #tpu.memory_space<vmem>>, vector<8x256xf32>,
    %c9_i32_400 = arith.constant 9 : i32
    %472 = tpu.dynamic_rotate %426 by %c9_i32_400 dim 1 : vector<8x256xf32>, i32 -> vector<8x256xf32>
    %c9_401 = arith.constant 9 : index
    %c0_402 = arith.constant 0 : index
    %473 = vector.load %arg1[%c9_401, %c0_402] : memref<27x256xf32, #tpu.memory_space<vmem>>, vector<1x256xf32>
    %474 = vector.broadcast %473 : vector<1x256xf32> to vector<8x256xf32>
    %475 = arith.mulf %472, %474 : vector<8x256xf32>
    %c72_403 = arith.constant 72 : index
    %c0_404 = arith.constant 0 : index
    %476 = vector.load %arg6[%c72_403, %c0_404] : memref<256x256xf32, #tpu.memory_space<vmem>>, vector<8x256xf32>
    tpu.vector_store %arg6[%c72_403, %c0_404], %475 {strides = array<i32>} : memref<256x256xf32, #tpu.memory_space<vmem>>, vector<8x256xf32>,
    %c8_i32_405 = arith.constant 8 : i32
    %477 = tpu.dynamic_rotate %426 by %c8_i32_405 dim 1 : vector<8x256xf32>, i32 -> vector<8x256xf32>
    %c10_406 = arith.constant 10 : index
    %c0_407 = arith.constant 0 : index
    %478 = vector.load %arg1[%c10_406, %c0_407] : memref<27x256xf32, #tpu.memory_space<vmem>>, vector<1x256xf32>
    %479 = vector.broadcast %478 : vector<1x256xf32> to vector<8x256xf32>
    %480 = arith.mulf %477, %479 : vector<8x256xf32>
    %c80_408 = arith.constant 80 : index
    %c0_409 = arith.constant 0 : index
    %481 = vector.load %arg6[%c80_408, %c0_409] : memref<256x256xf32, #tpu.memory_space<vmem>>, vector<8x256xf32>
    tpu.vector_store %arg6[%c80_408, %c0_409], %480 {strides = array<i32>} : memref<256x256xf32, #tpu.memory_space<vmem>>, vector<8x256xf32>,
    %c7_i32_410 = arith.constant 7 : i32
    %482 = tpu.dynamic_rotate %426 by %c7_i32_410 dim 1 : vector<8x256xf32>, i32 -> vector<8x256xf32>
    %c11_411 = arith.constant 11 : index
    %c0_412 = arith.constant 0 : index
    %483 = vector.load %arg1[%c11_411, %c0_412] : memref<27x256xf32, #tpu.memory_space<vmem>>, vector<1x256xf32>
    %484 = vector.broadcast %483 : vector<1x256xf32> to vector<8x256xf32>
    %485 = arith.mulf %482, %484 : vector<8x256xf32>
    %c88_413 = arith.constant 88 : index
    %c0_414 = arith.constant 0 : index
    %486 = vector.load %arg6[%c88_413, %c0_414] : memref<256x256xf32, #tpu.memory_space<vmem>>, vector<8x256xf32>
    tpu.vector_store %arg6[%c88_413, %c0_414], %485 {strides = array<i32>} : memref<256x256xf32, #tpu.memory_space<vmem>>, vector<8x256xf32>,
    %c1_i32_415 = arith.constant 1 : i32
    %487 = tpu.dynamic_rotate %426 by %c1_i32_415 dim 1 : vector<8x256xf32>, i32 -> vector<8x256xf32>
    %c12_416 = arith.constant 12 : index
    %c0_417 = arith.constant 0 : index
    %488 = vector.load %arg1[%c12_416, %c0_417] : memref<27x256xf32, #tpu.memory_space<vmem>>, vector<1x256xf32>
    %489 = vector.broadcast %488 : vector<1x256xf32> to vector<8x256xf32>
    %490 = arith.mulf %487, %489 : vector<8x256xf32>
    %c96_418 = arith.constant 96 : index
    %c0_419 = arith.constant 0 : index
    %491 = vector.load %arg6[%c96_418, %c0_419] : memref<256x256xf32, #tpu.memory_space<vmem>>, vector<8x256xf32>
    tpu.vector_store %arg6[%c96_418, %c0_419], %490 {strides = array<i32>} : memref<256x256xf32, #tpu.memory_space<vmem>>, vector<8x256xf32>,
    %c104_420 = arith.constant 104 : index
    %c0_421 = arith.constant 0 : index
    %492 = vector.load %arg6[%c104_420, %c0_421] : memref<256x256xf32, #tpu.memory_space<vmem>>, vector<8x256xf32>
    tpu.vector_store %arg6[%c104_420, %c0_421], %426 {strides = array<i32>} : memref<256x256xf32, #tpu.memory_space<vmem>>, vector<8x256xf32>,
    %c255_i32_422 = arith.constant 255 : i32
    %493 = tpu.dynamic_rotate %426 by %c255_i32_422 dim 1 : vector<8x256xf32>, i32 -> vector<8x256xf32>
    %c14_423 = arith.constant 14 : index
    %c0_424 = arith.constant 0 : index
    %494 = vector.load %arg1[%c14_423, %c0_424] : memref<27x256xf32, #tpu.memory_space<vmem>>, vector<1x256xf32>
    %495 = vector.broadcast %494 : vector<1x256xf32> to vector<8x256xf32>
    %496 = arith.mulf %493, %495 : vector<8x256xf32>
    %c112_425 = arith.constant 112 : index
    %c0_426 = arith.constant 0 : index
    %497 = vector.load %arg6[%c112_425, %c0_426] : memref<256x256xf32, #tpu.memory_space<vmem>>, vector<8x256xf32>
    tpu.vector_store %arg6[%c112_425, %c0_426], %496 {strides = array<i32>} : memref<256x256xf32, #tpu.memory_space<vmem>>, vector<8x256xf32>,
    %c249_i32_427 = arith.constant 249 : i32
    %498 = tpu.dynamic_rotate %426 by %c249_i32_427 dim 1 : vector<8x256xf32>, i32 -> vector<8x256xf32>
    %c15_428 = arith.constant 15 : index
    %c0_429 = arith.constant 0 : index
    %499 = vector.load %arg1[%c15_428, %c0_429] : memref<27x256xf32, #tpu.memory_space<vmem>>, vector<1x256xf32>
    %500 = vector.broadcast %499 : vector<1x256xf32> to vector<8x256xf32>
    %501 = arith.mulf %498, %500 : vector<8x256xf32>
    %c120_430 = arith.constant 120 : index
    %c0_431 = arith.constant 0 : index
    %502 = vector.load %arg6[%c120_430, %c0_431] : memref<256x256xf32, #tpu.memory_space<vmem>>, vector<8x256xf32>
    tpu.vector_store %arg6[%c120_430, %c0_431], %501 {strides = array<i32>} : memref<256x256xf32, #tpu.memory_space<vmem>>, vector<8x256xf32>,
    %c248_i32_432 = arith.constant 248 : i32
    %503 = tpu.dynamic_rotate %426 by %c248_i32_432 dim 1 : vector<8x256xf32>, i32 -> vector<8x256xf32>
    %c16_433 = arith.constant 16 : index
    %c0_434 = arith.constant 0 : index
    %504 = vector.load %arg1[%c16_433, %c0_434] : memref<27x256xf32, #tpu.memory_space<vmem>>, vector<1x256xf32>
    %505 = vector.broadcast %504 : vector<1x256xf32> to vector<8x256xf32>
    %506 = arith.mulf %503, %505 : vector<8x256xf32>
    %c128_435 = arith.constant 128 : index
    %c0_436 = arith.constant 0 : index
    %507 = vector.load %arg6[%c128_435, %c0_436] : memref<256x256xf32, #tpu.memory_space<vmem>>, vector<8x256xf32>
    tpu.vector_store %arg6[%c128_435, %c0_436], %506 {strides = array<i32>} : memref<256x256xf32, #tpu.memory_space<vmem>>, vector<8x256xf32>,
    %c247_i32_437 = arith.constant 247 : i32
    %508 = tpu.dynamic_rotate %426 by %c247_i32_437 dim 1 : vector<8x256xf32>, i32 -> vector<8x256xf32>
    %c17_438 = arith.constant 17 : index
    %c0_439 = arith.constant 0 : index
    %509 = vector.load %arg1[%c17_438, %c0_439] : memref<27x256xf32, #tpu.memory_space<vmem>>, vector<1x256xf32>
    %510 = vector.broadcast %509 : vector<1x256xf32> to vector<8x256xf32>
    %511 = arith.mulf %508, %510 : vector<8x256xf32>
    %c136_440 = arith.constant 136 : index
    %c0_441 = arith.constant 0 : index
    %512 = vector.load %arg6[%c136_440, %c0_441] : memref<256x256xf32, #tpu.memory_space<vmem>>, vector<8x256xf32>
    tpu.vector_store %arg6[%c136_440, %c0_441], %511 {strides = array<i32>} : memref<256x256xf32, #tpu.memory_space<vmem>>, vector<8x256xf32>,
    %c201_i32_442 = arith.constant 201 : i32
    %513 = tpu.dynamic_rotate %426 by %c201_i32_442 dim 1 : vector<8x256xf32>, i32 -> vector<8x256xf32>
    %c18_443 = arith.constant 18 : index
    %c0_444 = arith.constant 0 : index
    %514 = vector.load %arg1[%c18_443, %c0_444] : memref<27x256xf32, #tpu.memory_space<vmem>>, vector<1x256xf32>
    %515 = vector.broadcast %514 : vector<1x256xf32> to vector<8x256xf32>
    %516 = arith.mulf %513, %515 : vector<8x256xf32>
    %c144_445 = arith.constant 144 : index
    %c0_446 = arith.constant 0 : index
    %517 = vector.load %arg6[%c144_445, %c0_446] : memref<256x256xf32, #tpu.memory_space<vmem>>, vector<8x256xf32>
    tpu.vector_store %arg6[%c144_445, %c0_446], %516 {strides = array<i32>} : memref<256x256xf32, #tpu.memory_space<vmem>>, vector<8x256xf32>,
    %c200_i32_447 = arith.constant 200 : i32
    %518 = tpu.dynamic_rotate %426 by %c200_i32_447 dim 1 : vector<8x256xf32>, i32 -> vector<8x256xf32>
    %c19_448 = arith.constant 19 : index
    %c0_449 = arith.constant 0 : index
    %519 = vector.load %arg1[%c19_448, %c0_449] : memref<27x256xf32, #tpu.memory_space<vmem>>, vector<1x256xf32>
    %520 = vector.broadcast %519 : vector<1x256xf32> to vector<8x256xf32>
    %521 = arith.mulf %518, %520 : vector<8x256xf32>
    %c152_450 = arith.constant 152 : index
    %c0_451 = arith.constant 0 : index
    %522 = vector.load %arg6[%c152_450, %c0_451] : memref<256x256xf32, #tpu.memory_space<vmem>>, vector<8x256xf32>
    tpu.vector_store %arg6[%c152_450, %c0_451], %521 {strides = array<i32>} : memref<256x256xf32, #tpu.memory_space<vmem>>, vector<8x256xf32>,
    %c199_i32_452 = arith.constant 199 : i32
    %523 = tpu.dynamic_rotate %426 by %c199_i32_452 dim 1 : vector<8x256xf32>, i32 -> vector<8x256xf32>
    %c20_453 = arith.constant 20 : index
    %c0_454 = arith.constant 0 : index
    %524 = vector.load %arg1[%c20_453, %c0_454] : memref<27x256xf32, #tpu.memory_space<vmem>>, vector<1x256xf32>
    %525 = vector.broadcast %524 : vector<1x256xf32> to vector<8x256xf32>
    %526 = arith.mulf %523, %525 : vector<8x256xf32>
    %c160_455 = arith.constant 160 : index
    %c0_456 = arith.constant 0 : index
    %527 = vector.load %arg6[%c160_455, %c0_456] : memref<256x256xf32, #tpu.memory_space<vmem>>, vector<8x256xf32>
    tpu.vector_store %arg6[%c160_455, %c0_456], %526 {strides = array<i32>} : memref<256x256xf32, #tpu.memory_space<vmem>>, vector<8x256xf32>,
    %c193_i32_457 = arith.constant 193 : i32
    %528 = tpu.dynamic_rotate %426 by %c193_i32_457 dim 1 : vector<8x256xf32>, i32 -> vector<8x256xf32>
    %c21_458 = arith.constant 21 : index
    %c0_459 = arith.constant 0 : index
    %529 = vector.load %arg1[%c21_458, %c0_459] : memref<27x256xf32, #tpu.memory_space<vmem>>, vector<1x256xf32>
    %530 = vector.broadcast %529 : vector<1x256xf32> to vector<8x256xf32>
    %531 = arith.mulf %528, %530 : vector<8x256xf32>
    %c168_460 = arith.constant 168 : index
    %c0_461 = arith.constant 0 : index
    %532 = vector.load %arg6[%c168_460, %c0_461] : memref<256x256xf32, #tpu.memory_space<vmem>>, vector<8x256xf32>
    tpu.vector_store %arg6[%c168_460, %c0_461], %531 {strides = array<i32>} : memref<256x256xf32, #tpu.memory_space<vmem>>, vector<8x256xf32>,
    %c192_i32_462 = arith.constant 192 : i32
    %533 = tpu.dynamic_rotate %426 by %c192_i32_462 dim 1 : vector<8x256xf32>, i32 -> vector<8x256xf32>
    %c22_463 = arith.constant 22 : index
    %c0_464 = arith.constant 0 : index
    %534 = vector.load %arg1[%c22_463, %c0_464] : memref<27x256xf32, #tpu.memory_space<vmem>>, vector<1x256xf32>
    %535 = vector.broadcast %534 : vector<1x256xf32> to vector<8x256xf32>
    %536 = arith.mulf %533, %535 : vector<8x256xf32>
    %c176_465 = arith.constant 176 : index
    %c0_466 = arith.constant 0 : index
    %537 = vector.load %arg6[%c176_465, %c0_466] : memref<256x256xf32, #tpu.memory_space<vmem>>, vector<8x256xf32>
    tpu.vector_store %arg6[%c176_465, %c0_466], %536 {strides = array<i32>} : memref<256x256xf32, #tpu.memory_space<vmem>>, vector<8x256xf32>,
    %c191_i32_467 = arith.constant 191 : i32
    %538 = tpu.dynamic_rotate %426 by %c191_i32_467 dim 1 : vector<8x256xf32>, i32 -> vector<8x256xf32>
    %c23_468 = arith.constant 23 : index
    %c0_469 = arith.constant 0 : index
    %539 = vector.load %arg1[%c23_468, %c0_469] : memref<27x256xf32, #tpu.memory_space<vmem>>, vector<1x256xf32>
    %540 = vector.broadcast %539 : vector<1x256xf32> to vector<8x256xf32>
    %541 = arith.mulf %538, %540 : vector<8x256xf32>
    %c184_470 = arith.constant 184 : index
    %c0_471 = arith.constant 0 : index
    %542 = vector.load %arg6[%c184_470, %c0_471] : memref<256x256xf32, #tpu.memory_space<vmem>>, vector<8x256xf32>
    tpu.vector_store %arg6[%c184_470, %c0_471], %541 {strides = array<i32>} : memref<256x256xf32, #tpu.memory_space<vmem>>, vector<8x256xf32>,
    %c185_i32_472 = arith.constant 185 : i32
    %543 = tpu.dynamic_rotate %426 by %c185_i32_472 dim 1 : vector<8x256xf32>, i32 -> vector<8x256xf32>
    %c24_473 = arith.constant 24 : index
    %c0_474 = arith.constant 0 : index
    %544 = vector.load %arg1[%c24_473, %c0_474] : memref<27x256xf32, #tpu.memory_space<vmem>>, vector<1x256xf32>
    %545 = vector.broadcast %544 : vector<1x256xf32> to vector<8x256xf32>
    %546 = arith.mulf %543, %545 : vector<8x256xf32>
    %c192_475 = arith.constant 192 : index
    %c0_476 = arith.constant 0 : index
    %547 = vector.load %arg6[%c192_475, %c0_476] : memref<256x256xf32, #tpu.memory_space<vmem>>, vector<8x256xf32>
    tpu.vector_store %arg6[%c192_475, %c0_476], %546 {strides = array<i32>} : memref<256x256xf32, #tpu.memory_space<vmem>>, vector<8x256xf32>,
    %c184_i32_477 = arith.constant 184 : i32
    %548 = tpu.dynamic_rotate %426 by %c184_i32_477 dim 1 : vector<8x256xf32>, i32 -> vector<8x256xf32>
    %c25_478 = arith.constant 25 : index
    %c0_479 = arith.constant 0 : index
    %549 = vector.load %arg1[%c25_478, %c0_479] : memref<27x256xf32, #tpu.memory_space<vmem>>, vector<1x256xf32>
    %550 = vector.broadcast %549 : vector<1x256xf32> to vector<8x256xf32>
    %551 = arith.mulf %548, %550 : vector<8x256xf32>
    %c200_480 = arith.constant 200 : index
    %c0_481 = arith.constant 0 : index
    %552 = vector.load %arg6[%c200_480, %c0_481] : memref<256x256xf32, #tpu.memory_space<vmem>>, vector<8x256xf32>
    tpu.vector_store %arg6[%c200_480, %c0_481], %551 {strides = array<i32>} : memref<256x256xf32, #tpu.memory_space<vmem>>, vector<8x256xf32>,
    %c183_i32_482 = arith.constant 183 : i32
    %553 = tpu.dynamic_rotate %426 by %c183_i32_482 dim 1 : vector<8x256xf32>, i32 -> vector<8x256xf32>
    %c26_483 = arith.constant 26 : index
    %c0_484 = arith.constant 0 : index
    %554 = vector.load %arg1[%c26_483, %c0_484] : memref<27x256xf32, #tpu.memory_space<vmem>>, vector<1x256xf32>
    %555 = vector.broadcast %554 : vector<1x256xf32> to vector<8x256xf32>
    %556 = arith.mulf %553, %555 : vector<8x256xf32>
    %c208_485 = arith.constant 208 : index
    %c0_486 = arith.constant 0 : index
    %557 = vector.load %arg6[%c208_485, %c0_486] : memref<256x256xf32, #tpu.memory_space<vmem>>, vector<8x256xf32>
    tpu.vector_store %arg6[%c208_485, %c0_486], %556 {strides = array<i32>} : memref<256x256xf32, #tpu.memory_space<vmem>>, vector<8x256xf32>,
    %c3_487 = arith.constant 3 : index
    %c0_488 = arith.constant 0 : index
    %c0_489 = arith.constant 0 : index
    %558 = vector.load %arg3[%c3_487, %c0_488, %c0_489] : memref<5x8x256xf32, #tpu.memory_space<vmem>>, vector<1x8x256xf32>
    %559 = vector.shape_cast %558 : vector<1x8x256xf32> to vector<8x256xf32>
    %c0_490 = arith.constant 0 : index
    %c0_491 = arith.constant 0 : index
    %560 = vector.load %arg6[%c0_490, %c0_491] : memref<256x256xf32, #tpu.memory_space<vmem>>, vector<256x256xf32>
    %cst_492 = arith.constant dense<0.000000e+00> : vector<8x256xf32>
    %561 = tpu.matmul %559, %560, %cst_492 {dimension_numbers = #tpu.dot_dimension_numbers<[1], [0], [0], [1], [0, 0, 1, 1], [], []>} : vector<8x256xf32>, vector<256x256xf32>, vector<8x256xf32> -> vector<8x256xf32>
    %c3_493 = arith.constant 3 : index
    %c0_494 = arith.constant 0 : index
    %c0_495 = arith.constant 0 : index
    %562 = vector.load %arg4[%c3_493, %c0_494, %c0_495] : memref<5x8x1xf32, #tpu.memory_space<vmem>>, vector<1x8x1xf32>
    %563 = vector.shape_cast %562 : vector<1x8x1xf32> to vector<8x1xf32>
    %564 = vector.broadcast %563 : vector<8x1xf32> to vector<8x256xf32>
    %565 = arith.addf %561, %564 : vector<8x256xf32>
    %cst_496 = arith.constant 0.000000e+00 : f32
    %566 = vector.broadcast %cst_496 : f32 to vector<8x256xf32>
    %567 = arith.maximumf %565, %566 : vector<8x256xf32>
    %568 = arith.addf %285, %567 : vector<8x256xf32>
    %c73_i32_497 = arith.constant 73 : i32
    %569 = tpu.dynamic_rotate %568 by %c73_i32_497 dim 1 : vector<8x256xf32>, i32 -> vector<8x256xf32>
    %c0_498 = arith.constant 0 : index
    %c0_499 = arith.constant 0 : index
    %570 = vector.load %arg1[%c0_498, %c0_499] : memref<27x256xf32, #tpu.memory_space<vmem>>, vector<1x256xf32>
    %571 = vector.broadcast %570 : vector<1x256xf32> to vector<8x256xf32>
    %572 = arith.mulf %569, %571 : vector<8x256xf32>
    %c0_500 = arith.constant 0 : index
    %c0_501 = arith.constant 0 : index
    %573 = vector.load %arg6[%c0_500, %c0_501] : memref<256x256xf32, #tpu.memory_space<vmem>>, vector<8x256xf32>
    tpu.vector_store %arg6[%c0_500, %c0_501], %572 {strides = array<i32>} : memref<256x256xf32, #tpu.memory_space<vmem>>, vector<8x256xf32>,
    %c72_i32_502 = arith.constant 72 : i32
    %574 = tpu.dynamic_rotate %568 by %c72_i32_502 dim 1 : vector<8x256xf32>, i32 -> vector<8x256xf32>
    %c1_503 = arith.constant 1 : index
    %c0_504 = arith.constant 0 : index
    %575 = vector.load %arg1[%c1_503, %c0_504] : memref<27x256xf32, #tpu.memory_space<vmem>>, vector<1x256xf32>
    %576 = vector.broadcast %575 : vector<1x256xf32> to vector<8x256xf32>
    %577 = arith.mulf %574, %576 : vector<8x256xf32>
    %c8_505 = arith.constant 8 : index
    %c0_506 = arith.constant 0 : index
    %578 = vector.load %arg6[%c8_505, %c0_506] : memref<256x256xf32, #tpu.memory_space<vmem>>, vector<8x256xf32>
    tpu.vector_store %arg6[%c8_505, %c0_506], %577 {strides = array<i32>} : memref<256x256xf32, #tpu.memory_space<vmem>>, vector<8x256xf32>,
    %c71_i32_507 = arith.constant 71 : i32
    %579 = tpu.dynamic_rotate %568 by %c71_i32_507 dim 1 : vector<8x256xf32>, i32 -> vector<8x256xf32>
    %c2_508 = arith.constant 2 : index
    %c0_509 = arith.constant 0 : index
    %580 = vector.load %arg1[%c2_508, %c0_509] : memref<27x256xf32, #tpu.memory_space<vmem>>, vector<1x256xf32>
    %581 = vector.broadcast %580 : vector<1x256xf32> to vector<8x256xf32>
    %582 = arith.mulf %579, %581 : vector<8x256xf32>
    %c16_510 = arith.constant 16 : index
    %c0_511 = arith.constant 0 : index
    %583 = vector.load %arg6[%c16_510, %c0_511] : memref<256x256xf32, #tpu.memory_space<vmem>>, vector<8x256xf32>
    tpu.vector_store %arg6[%c16_510, %c0_511], %582 {strides = array<i32>} : memref<256x256xf32, #tpu.memory_space<vmem>>, vector<8x256xf32>,
    %c65_i32_512 = arith.constant 65 : i32
    %584 = tpu.dynamic_rotate %568 by %c65_i32_512 dim 1 : vector<8x256xf32>, i32 -> vector<8x256xf32>
    %c3_513 = arith.constant 3 : index
    %c0_514 = arith.constant 0 : index
    %585 = vector.load %arg1[%c3_513, %c0_514] : memref<27x256xf32, #tpu.memory_space<vmem>>, vector<1x256xf32>
    %586 = vector.broadcast %585 : vector<1x256xf32> to vector<8x256xf32>
    %587 = arith.mulf %584, %586 : vector<8x256xf32>
    %c24_515 = arith.constant 24 : index
    %c0_516 = arith.constant 0 : index
    %588 = vector.load %arg6[%c24_515, %c0_516] : memref<256x256xf32, #tpu.memory_space<vmem>>, vector<8x256xf32>
    tpu.vector_store %arg6[%c24_515, %c0_516], %587 {strides = array<i32>} : memref<256x256xf32, #tpu.memory_space<vmem>>, vector<8x256xf32>,
    %c64_i32_517 = arith.constant 64 : i32
    %589 = tpu.dynamic_rotate %568 by %c64_i32_517 dim 1 : vector<8x256xf32>, i32 -> vector<8x256xf32>
    %c4_518 = arith.constant 4 : index
    %c0_519 = arith.constant 0 : index
    %590 = vector.load %arg1[%c4_518, %c0_519] : memref<27x256xf32, #tpu.memory_space<vmem>>, vector<1x256xf32>
    %591 = vector.broadcast %590 : vector<1x256xf32> to vector<8x256xf32>
    %592 = arith.mulf %589, %591 : vector<8x256xf32>
    %c32_520 = arith.constant 32 : index
    %c0_521 = arith.constant 0 : index
    %593 = vector.load %arg6[%c32_520, %c0_521] : memref<256x256xf32, #tpu.memory_space<vmem>>, vector<8x256xf32>
    tpu.vector_store %arg6[%c32_520, %c0_521], %592 {strides = array<i32>} : memref<256x256xf32, #tpu.memory_space<vmem>>, vector<8x256xf32>,
    %c63_i32_522 = arith.constant 63 : i32
    %594 = tpu.dynamic_rotate %568 by %c63_i32_522 dim 1 : vector<8x256xf32>, i32 -> vector<8x256xf32>
    %c5_523 = arith.constant 5 : index
    %c0_524 = arith.constant 0 : index
    %595 = vector.load %arg1[%c5_523, %c0_524] : memref<27x256xf32, #tpu.memory_space<vmem>>, vector<1x256xf32>
    %596 = vector.broadcast %595 : vector<1x256xf32> to vector<8x256xf32>
    %597 = arith.mulf %594, %596 : vector<8x256xf32>
    %c40_525 = arith.constant 40 : index
    %c0_526 = arith.constant 0 : index
    %598 = vector.load %arg6[%c40_525, %c0_526] : memref<256x256xf32, #tpu.memory_space<vmem>>, vector<8x256xf32>
    tpu.vector_store %arg6[%c40_525, %c0_526], %597 {strides = array<i32>} : memref<256x256xf32, #tpu.memory_space<vmem>>, vector<8x256xf32>,
    %c57_i32_527 = arith.constant 57 : i32
    %599 = tpu.dynamic_rotate %568 by %c57_i32_527 dim 1 : vector<8x256xf32>, i32 -> vector<8x256xf32>
    %c6_528 = arith.constant 6 : index
    %c0_529 = arith.constant 0 : index
    %600 = vector.load %arg1[%c6_528, %c0_529] : memref<27x256xf32, #tpu.memory_space<vmem>>, vector<1x256xf32>
    %601 = vector.broadcast %600 : vector<1x256xf32> to vector<8x256xf32>
    %602 = arith.mulf %599, %601 : vector<8x256xf32>
    %c48_530 = arith.constant 48 : index
    %c0_531 = arith.constant 0 : index
    %603 = vector.load %arg6[%c48_530, %c0_531] : memref<256x256xf32, #tpu.memory_space<vmem>>, vector<8x256xf32>
    tpu.vector_store %arg6[%c48_530, %c0_531], %602 {strides = array<i32>} : memref<256x256xf32, #tpu.memory_space<vmem>>, vector<8x256xf32>,
    %c56_i32_532 = arith.constant 56 : i32
    %604 = tpu.dynamic_rotate %568 by %c56_i32_532 dim 1 : vector<8x256xf32>, i32 -> vector<8x256xf32>
    %c7_533 = arith.constant 7 : index
    %c0_534 = arith.constant 0 : index
    %605 = vector.load %arg1[%c7_533, %c0_534] : memref<27x256xf32, #tpu.memory_space<vmem>>, vector<1x256xf32>
    %606 = vector.broadcast %605 : vector<1x256xf32> to vector<8x256xf32>
    %607 = arith.mulf %604, %606 : vector<8x256xf32>
    %c56_535 = arith.constant 56 : index
    %c0_536 = arith.constant 0 : index
    %608 = vector.load %arg6[%c56_535, %c0_536] : memref<256x256xf32, #tpu.memory_space<vmem>>, vector<8x256xf32>
    tpu.vector_store %arg6[%c56_535, %c0_536], %607 {strides = array<i32>} : memref<256x256xf32, #tpu.memory_space<vmem>>, vector<8x256xf32>,
    %c55_i32_537 = arith.constant 55 : i32
    %609 = tpu.dynamic_rotate %568 by %c55_i32_537 dim 1 : vector<8x256xf32>, i32 -> vector<8x256xf32>
    %c8_538 = arith.constant 8 : index
    %c0_539 = arith.constant 0 : index
    %610 = vector.load %arg1[%c8_538, %c0_539] : memref<27x256xf32, #tpu.memory_space<vmem>>, vector<1x256xf32>
    %611 = vector.broadcast %610 : vector<1x256xf32> to vector<8x256xf32>
    %612 = arith.mulf %609, %611 : vector<8x256xf32>
    %c64_540 = arith.constant 64 : index
    %c0_541 = arith.constant 0 : index
    %613 = vector.load %arg6[%c64_540, %c0_541] : memref<256x256xf32, #tpu.memory_space<vmem>>, vector<8x256xf32>
    tpu.vector_store %arg6[%c64_540, %c0_541], %612 {strides = array<i32>} : memref<256x256xf32, #tpu.memory_space<vmem>>, vector<8x256xf32>,
    %c9_i32_542 = arith.constant 9 : i32
    %614 = tpu.dynamic_rotate %568 by %c9_i32_542 dim 1 : vector<8x256xf32>, i32 -> vector<8x256xf32>
    %c9_543 = arith.constant 9 : index
    %c0_544 = arith.constant 0 : index
    %615 = vector.load %arg1[%c9_543, %c0_544] : memref<27x256xf32, #tpu.memory_space<vmem>>, vector<1x256xf32>
    %616 = vector.broadcast %615 : vector<1x256xf32> to vector<8x256xf32>
    %617 = arith.mulf %614, %616 : vector<8x256xf32>
    %c72_545 = arith.constant 72 : index
    %c0_546 = arith.constant 0 : index
    %618 = vector.load %arg6[%c72_545, %c0_546] : memref<256x256xf32, #tpu.memory_space<vmem>>, vector<8x256xf32>
    tpu.vector_store %arg6[%c72_545, %c0_546], %617 {strides = array<i32>} : memref<256x256xf32, #tpu.memory_space<vmem>>, vector<8x256xf32>,
    %c8_i32_547 = arith.constant 8 : i32
    %619 = tpu.dynamic_rotate %568 by %c8_i32_547 dim 1 : vector<8x256xf32>, i32 -> vector<8x256xf32>
    %c10_548 = arith.constant 10 : index
    %c0_549 = arith.constant 0 : index
    %620 = vector.load %arg1[%c10_548, %c0_549] : memref<27x256xf32, #tpu.memory_space<vmem>>, vector<1x256xf32>
    %621 = vector.broadcast %620 : vector<1x256xf32> to vector<8x256xf32>
    %622 = arith.mulf %619, %621 : vector<8x256xf32>
    %c80_550 = arith.constant 80 : index
    %c0_551 = arith.constant 0 : index
    %623 = vector.load %arg6[%c80_550, %c0_551] : memref<256x256xf32, #tpu.memory_space<vmem>>, vector<8x256xf32>
    tpu.vector_store %arg6[%c80_550, %c0_551], %622 {strides = array<i32>} : memref<256x256xf32, #tpu.memory_space<vmem>>, vector<8x256xf32>,
    %c7_i32_552 = arith.constant 7 : i32
    %624 = tpu.dynamic_rotate %568 by %c7_i32_552 dim 1 : vector<8x256xf32>, i32 -> vector<8x256xf32>
    %c11_553 = arith.constant 11 : index
    %c0_554 = arith.constant 0 : index
    %625 = vector.load %arg1[%c11_553, %c0_554] : memref<27x256xf32, #tpu.memory_space<vmem>>, vector<1x256xf32>
    %626 = vector.broadcast %625 : vector<1x256xf32> to vector<8x256xf32>
    %627 = arith.mulf %624, %626 : vector<8x256xf32>
    %c88_555 = arith.constant 88 : index
    %c0_556 = arith.constant 0 : index
    %628 = vector.load %arg6[%c88_555, %c0_556] : memref<256x256xf32, #tpu.memory_space<vmem>>, vector<8x256xf32>
    tpu.vector_store %arg6[%c88_555, %c0_556], %627 {strides = array<i32>} : memref<256x256xf32, #tpu.memory_space<vmem>>, vector<8x256xf32>,
    %c1_i32_557 = arith.constant 1 : i32
    %629 = tpu.dynamic_rotate %568 by %c1_i32_557 dim 1 : vector<8x256xf32>, i32 -> vector<8x256xf32>
    %c12_558 = arith.constant 12 : index
    %c0_559 = arith.constant 0 : index
    %630 = vector.load %arg1[%c12_558, %c0_559] : memref<27x256xf32, #tpu.memory_space<vmem>>, vector<1x256xf32>
    %631 = vector.broadcast %630 : vector<1x256xf32> to vector<8x256xf32>
    %632 = arith.mulf %629, %631 : vector<8x256xf32>
    %c96_560 = arith.constant 96 : index
    %c0_561 = arith.constant 0 : index
    %633 = vector.load %arg6[%c96_560, %c0_561] : memref<256x256xf32, #tpu.memory_space<vmem>>, vector<8x256xf32>
    tpu.vector_store %arg6[%c96_560, %c0_561], %632 {strides = array<i32>} : memref<256x256xf32, #tpu.memory_space<vmem>>, vector<8x256xf32>,
    %c104_562 = arith.constant 104 : index
    %c0_563 = arith.constant 0 : index
    %634 = vector.load %arg6[%c104_562, %c0_563] : memref<256x256xf32, #tpu.memory_space<vmem>>, vector<8x256xf32>
    tpu.vector_store %arg6[%c104_562, %c0_563], %568 {strides = array<i32>} : memref<256x256xf32, #tpu.memory_space<vmem>>, vector<8x256xf32>,
    %c255_i32_564 = arith.constant 255 : i32
    %635 = tpu.dynamic_rotate %568 by %c255_i32_564 dim 1 : vector<8x256xf32>, i32 -> vector<8x256xf32>
    %c14_565 = arith.constant 14 : index
    %c0_566 = arith.constant 0 : index
    %636 = vector.load %arg1[%c14_565, %c0_566] : memref<27x256xf32, #tpu.memory_space<vmem>>, vector<1x256xf32>
    %637 = vector.broadcast %636 : vector<1x256xf32> to vector<8x256xf32>
    %638 = arith.mulf %635, %637 : vector<8x256xf32>
    %c112_567 = arith.constant 112 : index
    %c0_568 = arith.constant 0 : index
    %639 = vector.load %arg6[%c112_567, %c0_568] : memref<256x256xf32, #tpu.memory_space<vmem>>, vector<8x256xf32>
    tpu.vector_store %arg6[%c112_567, %c0_568], %638 {strides = array<i32>} : memref<256x256xf32, #tpu.memory_space<vmem>>, vector<8x256xf32>,
    %c249_i32_569 = arith.constant 249 : i32
    %640 = tpu.dynamic_rotate %568 by %c249_i32_569 dim 1 : vector<8x256xf32>, i32 -> vector<8x256xf32>
    %c15_570 = arith.constant 15 : index
    %c0_571 = arith.constant 0 : index
    %641 = vector.load %arg1[%c15_570, %c0_571] : memref<27x256xf32, #tpu.memory_space<vmem>>, vector<1x256xf32>
    %642 = vector.broadcast %641 : vector<1x256xf32> to vector<8x256xf32>
    %643 = arith.mulf %640, %642 : vector<8x256xf32>
    %c120_572 = arith.constant 120 : index
    %c0_573 = arith.constant 0 : index
    %644 = vector.load %arg6[%c120_572, %c0_573] : memref<256x256xf32, #tpu.memory_space<vmem>>, vector<8x256xf32>
    tpu.vector_store %arg6[%c120_572, %c0_573], %643 {strides = array<i32>} : memref<256x256xf32, #tpu.memory_space<vmem>>, vector<8x256xf32>,
    %c248_i32_574 = arith.constant 248 : i32
    %645 = tpu.dynamic_rotate %568 by %c248_i32_574 dim 1 : vector<8x256xf32>, i32 -> vector<8x256xf32>
    %c16_575 = arith.constant 16 : index
    %c0_576 = arith.constant 0 : index
    %646 = vector.load %arg1[%c16_575, %c0_576] : memref<27x256xf32, #tpu.memory_space<vmem>>, vector<1x256xf32>
    %647 = vector.broadcast %646 : vector<1x256xf32> to vector<8x256xf32>
    %648 = arith.mulf %645, %647 : vector<8x256xf32>
    %c128_577 = arith.constant 128 : index
    %c0_578 = arith.constant 0 : index
    %649 = vector.load %arg6[%c128_577, %c0_578] : memref<256x256xf32, #tpu.memory_space<vmem>>, vector<8x256xf32>
    tpu.vector_store %arg6[%c128_577, %c0_578], %648 {strides = array<i32>} : memref<256x256xf32, #tpu.memory_space<vmem>>, vector<8x256xf32>,
    %c247_i32_579 = arith.constant 247 : i32
    %650 = tpu.dynamic_rotate %568 by %c247_i32_579 dim 1 : vector<8x256xf32>, i32 -> vector<8x256xf32>
    %c17_580 = arith.constant 17 : index
    %c0_581 = arith.constant 0 : index
    %651 = vector.load %arg1[%c17_580, %c0_581] : memref<27x256xf32, #tpu.memory_space<vmem>>, vector<1x256xf32>
    %652 = vector.broadcast %651 : vector<1x256xf32> to vector<8x256xf32>
    %653 = arith.mulf %650, %652 : vector<8x256xf32>
    %c136_582 = arith.constant 136 : index
    %c0_583 = arith.constant 0 : index
    %654 = vector.load %arg6[%c136_582, %c0_583] : memref<256x256xf32, #tpu.memory_space<vmem>>, vector<8x256xf32>
    tpu.vector_store %arg6[%c136_582, %c0_583], %653 {strides = array<i32>} : memref<256x256xf32, #tpu.memory_space<vmem>>, vector<8x256xf32>,
    %c201_i32_584 = arith.constant 201 : i32
    %655 = tpu.dynamic_rotate %568 by %c201_i32_584 dim 1 : vector<8x256xf32>, i32 -> vector<8x256xf32>
    %c18_585 = arith.constant 18 : index
    %c0_586 = arith.constant 0 : index
    %656 = vector.load %arg1[%c18_585, %c0_586] : memref<27x256xf32, #tpu.memory_space<vmem>>, vector<1x256xf32>
    %657 = vector.broadcast %656 : vector<1x256xf32> to vector<8x256xf32>
    %658 = arith.mulf %655, %657 : vector<8x256xf32>
    %c144_587 = arith.constant 144 : index
    %c0_588 = arith.constant 0 : index
    %659 = vector.load %arg6[%c144_587, %c0_588] : memref<256x256xf32, #tpu.memory_space<vmem>>, vector<8x256xf32>
    tpu.vector_store %arg6[%c144_587, %c0_588], %658 {strides = array<i32>} : memref<256x256xf32, #tpu.memory_space<vmem>>, vector<8x256xf32>,
    %c200_i32_589 = arith.constant 200 : i32
    %660 = tpu.dynamic_rotate %568 by %c200_i32_589 dim 1 : vector<8x256xf32>, i32 -> vector<8x256xf32>
    %c19_590 = arith.constant 19 : index
    %c0_591 = arith.constant 0 : index
    %661 = vector.load %arg1[%c19_590, %c0_591] : memref<27x256xf32, #tpu.memory_space<vmem>>, vector<1x256xf32>
    %662 = vector.broadcast %661 : vector<1x256xf32> to vector<8x256xf32>
    %663 = arith.mulf %660, %662 : vector<8x256xf32>
    %c152_592 = arith.constant 152 : index
    %c0_593 = arith.constant 0 : index
    %664 = vector.load %arg6[%c152_592, %c0_593] : memref<256x256xf32, #tpu.memory_space<vmem>>, vector<8x256xf32>
    tpu.vector_store %arg6[%c152_592, %c0_593], %663 {strides = array<i32>} : memref<256x256xf32, #tpu.memory_space<vmem>>, vector<8x256xf32>,
    %c199_i32_594 = arith.constant 199 : i32
    %665 = tpu.dynamic_rotate %568 by %c199_i32_594 dim 1 : vector<8x256xf32>, i32 -> vector<8x256xf32>
    %c20_595 = arith.constant 20 : index
    %c0_596 = arith.constant 0 : index
    %666 = vector.load %arg1[%c20_595, %c0_596] : memref<27x256xf32, #tpu.memory_space<vmem>>, vector<1x256xf32>
    %667 = vector.broadcast %666 : vector<1x256xf32> to vector<8x256xf32>
    %668 = arith.mulf %665, %667 : vector<8x256xf32>
    %c160_597 = arith.constant 160 : index
    %c0_598 = arith.constant 0 : index
    %669 = vector.load %arg6[%c160_597, %c0_598] : memref<256x256xf32, #tpu.memory_space<vmem>>, vector<8x256xf32>
    tpu.vector_store %arg6[%c160_597, %c0_598], %668 {strides = array<i32>} : memref<256x256xf32, #tpu.memory_space<vmem>>, vector<8x256xf32>,
    %c193_i32_599 = arith.constant 193 : i32
    %670 = tpu.dynamic_rotate %568 by %c193_i32_599 dim 1 : vector<8x256xf32>, i32 -> vector<8x256xf32>
    %c21_600 = arith.constant 21 : index
    %c0_601 = arith.constant 0 : index
    %671 = vector.load %arg1[%c21_600, %c0_601] : memref<27x256xf32, #tpu.memory_space<vmem>>, vector<1x256xf32>
    %672 = vector.broadcast %671 : vector<1x256xf32> to vector<8x256xf32>
    %673 = arith.mulf %670, %672 : vector<8x256xf32>
    %c168_602 = arith.constant 168 : index
    %c0_603 = arith.constant 0 : index
    %674 = vector.load %arg6[%c168_602, %c0_603] : memref<256x256xf32, #tpu.memory_space<vmem>>, vector<8x256xf32>
    tpu.vector_store %arg6[%c168_602, %c0_603], %673 {strides = array<i32>} : memref<256x256xf32, #tpu.memory_space<vmem>>, vector<8x256xf32>,
    %c192_i32_604 = arith.constant 192 : i32
    %675 = tpu.dynamic_rotate %568 by %c192_i32_604 dim 1 : vector<8x256xf32>, i32 -> vector<8x256xf32>
    %c22_605 = arith.constant 22 : index
    %c0_606 = arith.constant 0 : index
    %676 = vector.load %arg1[%c22_605, %c0_606] : memref<27x256xf32, #tpu.memory_space<vmem>>, vector<1x256xf32>
    %677 = vector.broadcast %676 : vector<1x256xf32> to vector<8x256xf32>
    %678 = arith.mulf %675, %677 : vector<8x256xf32>
    %c176_607 = arith.constant 176 : index
    %c0_608 = arith.constant 0 : index
    %679 = vector.load %arg6[%c176_607, %c0_608] : memref<256x256xf32, #tpu.memory_space<vmem>>, vector<8x256xf32>
    tpu.vector_store %arg6[%c176_607, %c0_608], %678 {strides = array<i32>} : memref<256x256xf32, #tpu.memory_space<vmem>>, vector<8x256xf32>,
    %c191_i32_609 = arith.constant 191 : i32
    %680 = tpu.dynamic_rotate %568 by %c191_i32_609 dim 1 : vector<8x256xf32>, i32 -> vector<8x256xf32>
    %c23_610 = arith.constant 23 : index
    %c0_611 = arith.constant 0 : index
    %681 = vector.load %arg1[%c23_610, %c0_611] : memref<27x256xf32, #tpu.memory_space<vmem>>, vector<1x256xf32>
    %682 = vector.broadcast %681 : vector<1x256xf32> to vector<8x256xf32>
    %683 = arith.mulf %680, %682 : vector<8x256xf32>
    %c184_612 = arith.constant 184 : index
    %c0_613 = arith.constant 0 : index
    %684 = vector.load %arg6[%c184_612, %c0_613] : memref<256x256xf32, #tpu.memory_space<vmem>>, vector<8x256xf32>
    tpu.vector_store %arg6[%c184_612, %c0_613], %683 {strides = array<i32>} : memref<256x256xf32, #tpu.memory_space<vmem>>, vector<8x256xf32>,
    %c185_i32_614 = arith.constant 185 : i32
    %685 = tpu.dynamic_rotate %568 by %c185_i32_614 dim 1 : vector<8x256xf32>, i32 -> vector<8x256xf32>
    %c24_615 = arith.constant 24 : index
    %c0_616 = arith.constant 0 : index
    %686 = vector.load %arg1[%c24_615, %c0_616] : memref<27x256xf32, #tpu.memory_space<vmem>>, vector<1x256xf32>
    %687 = vector.broadcast %686 : vector<1x256xf32> to vector<8x256xf32>
    %688 = arith.mulf %685, %687 : vector<8x256xf32>
    %c192_617 = arith.constant 192 : index
    %c0_618 = arith.constant 0 : index
    %689 = vector.load %arg6[%c192_617, %c0_618] : memref<256x256xf32, #tpu.memory_space<vmem>>, vector<8x256xf32>
    tpu.vector_store %arg6[%c192_617, %c0_618], %688 {strides = array<i32>} : memref<256x256xf32, #tpu.memory_space<vmem>>, vector<8x256xf32>,
    %c184_i32_619 = arith.constant 184 : i32
    %690 = tpu.dynamic_rotate %568 by %c184_i32_619 dim 1 : vector<8x256xf32>, i32 -> vector<8x256xf32>
    %c25_620 = arith.constant 25 : index
    %c0_621 = arith.constant 0 : index
    %691 = vector.load %arg1[%c25_620, %c0_621] : memref<27x256xf32, #tpu.memory_space<vmem>>, vector<1x256xf32>
    %692 = vector.broadcast %691 : vector<1x256xf32> to vector<8x256xf32>
    %693 = arith.mulf %690, %692 : vector<8x256xf32>
    %c200_622 = arith.constant 200 : index
    %c0_623 = arith.constant 0 : index
    %694 = vector.load %arg6[%c200_622, %c0_623] : memref<256x256xf32, #tpu.memory_space<vmem>>, vector<8x256xf32>
    tpu.vector_store %arg6[%c200_622, %c0_623], %693 {strides = array<i32>} : memref<256x256xf32, #tpu.memory_space<vmem>>, vector<8x256xf32>,
    %c183_i32_624 = arith.constant 183 : i32
    %695 = tpu.dynamic_rotate %568 by %c183_i32_624 dim 1 : vector<8x256xf32>, i32 -> vector<8x256xf32>
    %c26_625 = arith.constant 26 : index
    %c0_626 = arith.constant 0 : index
    %696 = vector.load %arg1[%c26_625, %c0_626] : memref<27x256xf32, #tpu.memory_space<vmem>>, vector<1x256xf32>
    %697 = vector.broadcast %696 : vector<1x256xf32> to vector<8x256xf32>
    %698 = arith.mulf %695, %697 : vector<8x256xf32>
    %c208_627 = arith.constant 208 : index
    %c0_628 = arith.constant 0 : index
    %699 = vector.load %arg6[%c208_627, %c0_628] : memref<256x256xf32, #tpu.memory_space<vmem>>, vector<8x256xf32>
    tpu.vector_store %arg6[%c208_627, %c0_628], %698 {strides = array<i32>} : memref<256x256xf32, #tpu.memory_space<vmem>>, vector<8x256xf32>,
    %c4_629 = arith.constant 4 : index
    %c0_630 = arith.constant 0 : index
    %c0_631 = arith.constant 0 : index
    %700 = vector.load %arg3[%c4_629, %c0_630, %c0_631] : memref<5x8x256xf32, #tpu.memory_space<vmem>>, vector<1x8x256xf32>
    %701 = vector.shape_cast %700 : vector<1x8x256xf32> to vector<8x256xf32>
    %c0_632 = arith.constant 0 : index
    %c0_633 = arith.constant 0 : index
    %702 = vector.load %arg6[%c0_632, %c0_633] : memref<256x256xf32, #tpu.memory_space<vmem>>, vector<256x256xf32>
    %cst_634 = arith.constant dense<0.000000e+00> : vector<8x256xf32>
    %703 = tpu.matmul %701, %702, %cst_634 {dimension_numbers = #tpu.dot_dimension_numbers<[1], [0], [0], [1], [0, 0, 1, 1], [], []>} : vector<8x256xf32>, vector<256x256xf32>, vector<8x256xf32> -> vector<8x256xf32>
    %c4_635 = arith.constant 4 : index
    %c0_636 = arith.constant 0 : index
    %c0_637 = arith.constant 0 : index
    %704 = vector.load %arg4[%c4_635, %c0_636, %c0_637] : memref<5x8x1xf32, #tpu.memory_space<vmem>>, vector<1x8x1xf32>
    %705 = vector.shape_cast %704 : vector<1x8x1xf32> to vector<8x1xf32>
    %706 = vector.broadcast %705 : vector<8x1xf32> to vector<8x256xf32>
    %707 = arith.addf %703, %706 : vector<8x256xf32>
    %c0_638 = arith.constant 0 : index
    %c0_639 = arith.constant 0 : index
    %c0_640 = arith.constant 0 : index
    %708 = vector.load %arg5[%c0_638, %c0_639, %c0_640] : memref<1x8x256xf32, #tpu.memory_space<vmem>>, vector<1x8x256xf32>
    %709 = vector.shape_cast %708 : vector<1x8x256xf32> to vector<8x256xf32>
    %710 = vector.shape_cast %707 : vector<8x256xf32> to vector<1x8x256xf32>
    tpu.vector_store %arg5[%c0_638, %c0_639, %c0_640], %710 {strides = array<i32>} : memref<1x8x256xf32, #tpu.memory_space<vmem>>, vector<1x8x256xf32>,
    return
  }
  func.func @transform_0(%arg0: i32) -> (i32, i32) {
    %c0_i32 = arith.constant 0 : i32
    %c0_i32_0 = arith.constant 0 : i32
    %c0_i32_1 = arith.constant 0 : i32
    return %c0_i32, %c0_i32_0 : i32, i32
  }
  func.func @transform_1(%arg0: i32) -> (i32, i32, i32) {
    %c0_i32 = arith.constant 0 : i32
    %c0_i32_0 = arith.constant 0 : i32
    %c0_i32_1 = arith.constant 0 : i32
    return %arg0, %c0_i32, %c0_i32_0 : i32, i32, i32
  }
  func.func @transform_2(%arg0: i32) -> (i32, i32, i32) {
    %c0_i32 = arith.constant 0 : i32
    %c0_i32_0 = arith.constant 0 : i32
    %c0_i32_1 = arith.constant 0 : i32
    %c0_i32_2 = arith.constant 0 : i32
    return %c0_i32, %c0_i32_0, %c0_i32_1 : i32, i32, i32
  }
  func.func @transform_3(%arg0: i32) -> (i32, i32, i32) {
    %c0_i32 = arith.constant 0 : i32
    %c0_i32_0 = arith.constant 0 : i32
    %c0_i32_1 = arith.constant 0 : i32
    %c0_i32_2 = arith.constant 0 : i32
    return %c0_i32, %c0_i32_0, %c0_i32_1 : i32, i32, i32
  }
  func.func @transform_4(%arg0: i32) -> (i32, i32, i32) {
    %c0_i32 = arith.constant 0 : i32
    %c0_i32_0 = arith.constant 0 : i32
    %c0_i32_1 = arith.constant 0 : i32
    return %arg0, %c0_i32, %c0_i32_0 : i32, i32, i32
  }
}

</mosaic_0001>

<llo_original>
// kernel: flownet_bk_forward.1
$region0: #{flownet_bk_forward.1}
  #allocation0 [shape = 'u32[]', space=smem, size = 0x4, offset = 0x4, fixed_abs, tag = 'smem constant byte address 0x4 - core index']
  #allocation1 [shape = 'u32[144,128]{1,0:T(1,128)}', space=vmem, size = 0x12000, scoped, tag = 'internal scratch']
  #allocation2 [shape = 'f32[256,256]{1,0:T(8,128)}', space=vmem, size = 0x40000, scoped, tag = 'scratch operand']
  %s0 = inlined_call_operand.vmem [shape: f32[27,256], index: 0, kind: input, shape index: {}]
  %s1 = inlined_call_operand.vmem [shape: f32[2,8,256], index: 1, kind: input, shape index: {}]
  %s2 = inlined_call_operand.vmem [shape: f32[5,8,256], index: 2, kind: input, shape index: {}]
  %s3 = inlined_call_operand.vmem [shape: f32[5,8,1], index: 3, kind: input, shape index: {}]
  %s4 = inlined_call_operand.vmem [shape: f32[2,8,256], index: 4, kind: output, shape index: {}]
  %s5 = sld [smem:[#allocation0]]
  $region49: #{flownet_bk_forward.1} parent=0
    _
  %s7 = ssub.s32 1, %s5
  %s8 = scalar_select 0, %s7, %s5
  loop: start=0, step=1, limit=4
  $region2: #{flownet_bk_forward.1} parent=0 // loop_pre_header
    _
  $region3: #{flownet_bk_forward.1} parent=0 // loop_header
    %s10 = sphi 0, %s14
    %p11 = scmp.ge.s32.totalorder %s10, 4
    %s18 = sphi 0, %s18
    %s20 = sphi 0, %s18
    %s21 = sphi 0, %s20
    %s35 = sphi 0, %s21
    %s41 = sphi 0, %s43
    %s44 = sphi 0, %s41
    %s45 = sphi 0, %s44
    %s61 = sphi 0, %s45
    %s65 = sphi 0, %s65
    %s67 = sphi 0, %s65
    %s68 = sphi 0, %s67
    %s82 = sphi 0, %s68
    %s86 = sphi 0, %s86
    %s88 = sphi 0, %s86
    %s89 = sphi 0, %s88
    %s103 = sphi 0, %s89
    %s109 = sphi 0, %s111
    %s112 = sphi 0, %s109
    %s113 = sphi 0, %s112
    %s129 = sphi 0, %s113
  $region4: #{flownet_bk_forward.1} parent=0 // loop_header_branch
    %13 = sbr.rel (%p11) target = $region8
  $region5: #{flownet_bk_forward.1} parent=0 // loop_body
    %s15 = ssub.s32 %s10, 1
    %s16 = ssub.s32 %s10, 2
    %s17 = sadd.s32 %s10, 1
    %s19 = sadd.s32 %s18, 1
    %p22 = scmp.eq.s32.totalorder %s10, 1
    %p23 = scmp.ne.s32.totalorder %s18, %s20
    %p24 = scmp.eq.s32.totalorder %s10, 0
    %p25 = por %p23, %p24
    %p26 = scmp.ne.s32.totalorder %s18, %s20
    %p27 = scmp.eq.s32.totalorder %s15, 1
    %p28 = por %p26, %p27
    %p29 = scmp.ne.s32.totalorder %s20, %s21
    %p30 = scmp.eq.s32.totalorder %s15, 0
    %p31 = por %p29, %p30
    %p32 = scmp.ne.s32.totalorder %s20, %s21
    %p33 = scmp.eq.s32.totalorder %s16, 1
    %p34 = por %p32, %p33
    %p36 = scmp.ne.s32.totalorder %s21, %s35
    %p37 = scmp.eq.s32.totalorder %s16, 0
    %p38 = por %p36, %p37
    %s39 = ssub.s32 %s10, %s17
    %p40 = scmp.eq.s32.totalorder %s39, 0
    %s42 = sadd.s32 %s41, 1
    %s43 = scalar_select %p40, %s41, %s42
    %p46 = pneg %p40
    %p47 = scmp.eq.s32.totalorder %s10, 1
    %p48 = por %p46, %p47
    %p49 = scmp.ne.s32.totalorder %s41, %s44
    %p50 = scmp.eq.s32.totalorder %s10, 0
    %p51 = por %p49, %p50
    %p52 = scmp.ne.s32.totalorder %s41, %s44
    %p53 = scmp.eq.s32.totalorder %s15, 1
    %p54 = por %p52, %p53
    %p55 = scmp.ne.s32.totalorder %s44, %s45
    %p56 = scmp.eq.s32.totalorder %s15, 0
    %p57 = por %p55, %p56
    %p58 = scmp.ne.s32.totalorder %s44, %s45
    %p59 = scmp.eq.s32.totalorder %s16, 1
    %p60 = por %p58, %p59
    %p62 = scmp.ne.s32.totalorder %s45, %s61
    %p63 = scmp.eq.s32.totalorder %s16, 0
    %p64 = por %p62, %p63
    %s66 = sadd.s32 %s65, 1
    %p69 = scmp.eq.s32.totalorder %s10, 1
    %p70 = scmp.ne.s32.totalorder %s65, %s67
    %p71 = scmp.eq.s32.totalorder %s10, 0
    %p72 = por %p70, %p71
    %p73 = scmp.ne.s32.totalorder %s65, %s67
    %p74 = scmp.eq.s32.totalorder %s15, 1
    %p75 = por %p73, %p74
    %p76 = scmp.ne.s32.totalorder %s67, %s68
    %p77 = scmp.eq.s32.totalorder %s15, 0
    %p78 = por %p76, %p77
    %p79 = scmp.ne.s32.totalorder %s67, %s68
    %p80 = scmp.eq.s32.totalorder %s16, 1
    %p81 = por %p79, %p80
    %p83 = scmp.ne.s32.totalorder %s68, %s82
    %p84 = scmp.eq.s32.totalorder %s16, 0
    %p85 = por %p83, %p84
    %s87 = sadd.s32 %s86, 1
    %p90 = scmp.eq.s32.totalorder %s10, 1
    %p91 = scmp.ne.s32.totalorder %s86, %s88
    %p92 = scmp.eq.s32.totalorder %s10, 0
    %p93 = por %p91, %p92
    %p94 = scmp.ne.s32.totalorder %s86, %s88
    %p95 = scmp.eq.s32.totalorder %s15, 1
    %p96 = por %p94, %p95
    %p97 = scmp.ne.s32.totalorder %s88, %s89
    %p98 = scmp.eq.s32.totalorder %s15, 0
    %p99 = por %p97, %p98
    %p100 = scmp.ne.s32.totalorder %s88, %s89
    %p101 = scmp.eq.s32.totalorder %s16, 1
    %p102 = por %p100, %p101
    %p104 = scmp.ne.s32.totalorder %s89, %s103
    %p105 = scmp.eq.s32.totalorder %s16, 0
    %p106 = por %p104, %p105
    %s107 = ssub.s32 %s10, %s17
    %p108 = scmp.eq.s32.totalorder %s107, 0
    %s110 = sadd.s32 %s109, 1
    %s111 = scalar_select %p108, %s109, %s110
    %p114 = pneg %p108
    %p115 = scmp.eq.s32.totalorder %s10, 1
    %p116 = por %p114, %p115
    %p117 = scmp.ne.s32.totalorder %s109, %s112
    %p118 = scmp.eq.s32.totalorder %s10, 0
    %p119 = por %p117, %p118
    %p120 = scmp.ne.s32.totalorder %s109, %s112
    %p121 = scmp.eq.s32.totalorder %s15, 1
    %p122 = por %p120, %p121
    %p123 = scmp.ne.s32.totalorder %s112, %s113
    %p124 = scmp.eq.s32.totalorder %s15, 0
    %p125 = por %p123, %p124
    %p126 = scmp.ne.s32.totalorder %s112, %s113
    %p127 = scmp.eq.s32.totalorder %s16, 1
    %p128 = por %p126, %p127
    %p130 = scmp.ne.s32.totalorder %s113, %s129
    %p131 = scmp.eq.s32.totalorder %s16, 0
    %p132 = por %p130, %p131
    %p133 = scmp.le.s32.totalorder 1, %s10
    %p134 = scmp.lt.s32.totalorder %s10, 3
    %p135 = pnand %p133, %p134
    %p136 = pneg %p135
    // Predicated region
    $region9: #{flownet_bk_forward.1} parent=5 // pred_check
      _
    $region10: #{flownet_bk_forward.1} parent=5 // pred_check_branch
      %138 = sbr.rel (%p135) target = $region12
    $region11: #{flownet_bk_forward.1} parent=5 // pred_region
      %s139 = ssub.s32 %s10, 1
      // Predicated region
      $region13: #{flownet_bk_forward.1} parent=11 // pred_check
        %p140 = pneg %p31
      $region14: #{flownet_bk_forward.1} parent=11 // pred_check_branch
        %142 = sbr.rel (%p140) target = $region16
      $region15: #{flownet_bk_forward.1} parent=11 // pred_region
        _
      $region16: #{flownet_bk_forward.1} parent=11 // pred_fallthru
        _
      // Predicated region
      $region17: #{flownet_bk_forward.1} parent=11 // pred_check
        %p143 = pneg %p78
      $region18: #{flownet_bk_forward.1} parent=11 // pred_check_branch
        %145 = sbr.rel (%p143) target = $region20
      $region19: #{flownet_bk_forward.1} parent=11 // pred_region
        _
      $region20: #{flownet_bk_forward.1} parent=11 // pred_fallthru
        _
      // Predicated region
      $region21: #{flownet_bk_forward.1} parent=11 // pred_check
        %p146 = pneg %p99
      $region22: #{flownet_bk_forward.1} parent=11 // pred_check_branch
        %148 = sbr.rel (%p146) target = $region24
      $region23: #{flownet_bk_forward.1} parent=11 // pred_region
        _
      $region24: #{flownet_bk_forward.1} parent=11 // pred_fallthru
        _
    $region12: #{flownet_bk_forward.1} parent=5 // pred_fallthru
      _
    %p149 = scmp.lt.s32.totalorder %s10, 2
    // Predicated region
    $region25: #{flownet_bk_forward.1} parent=5 // pred_check
      %p150 = pneg %p149
    $region26: #{flownet_bk_forward.1} parent=5 // pred_check_branch
      %152 = sbr.rel (%p150) target = $region28
    $region27: #{flownet_bk_forward.1} parent=5 // pred_region
      // Predicated region
      $region29: #{flownet_bk_forward.1} parent=27 // pred_check
        %p153 = pneg %p51
      $region30: #{flownet_bk_forward.1} parent=27 // pred_check_branch
        %155 = sbr.rel (%p153) target = $region32
      $region31: #{flownet_bk_forward.1} parent=27 // pred_region
        %p156 = scmp.lt.s32.totalorder %s10, 1
        %s157 = scalar_select %p156, %s10, 1
        %s158 = smul.addr %s157, 2
        %s159 = smul.addr %s158, 8
        %s160 = scalar_lea.vmem %s1, %s159
      $region32: #{flownet_bk_forward.1} parent=27 // pred_fallthru
        _
    $region28: #{flownet_bk_forward.1} parent=5 // pred_fallthru
      _
    %p161 = scmp.le.s32.totalorder 1, %s10
    %p162 = scmp.lt.s32.totalorder %s10, 3
    %p163 = pnand %p161, %p162
    %p164 = pneg %p163
    // Predicated region
    $region33: #{flownet_bk_forward.1} parent=5 // pred_check
      _
    $region34: #{flownet_bk_forward.1} parent=5 // pred_check_branch
      %166 = sbr.rel (%p163) target = $region36
    $region35: #{flownet_bk_forward.1} parent=5 // pred_region
      %s167 = ssub.s32 %s10, 1
      %p168 = pneg %p31
      %p169 = pneg %p28
      %p170 = scmp.lt.s32.totalorder %s15, 1
      %s171 = scalar_select %p170, %s15, 1
      %s172 = smul.addr %s171, 2
      %s173 = smul.addr %s172, 8
      %s174 = scalar_lea.vmem %s1, %s173
      %p175 = pneg %p57
      %p176 = pneg %p54
      %p177 = pneg %p78
      %p178 = pneg %p75
      %p179 = pneg %p99
      %p180 = pneg %p96
      %p181 = pneg %p125
      %p182 = pneg %p122
      %p183 = scmp.lt.s32.totalorder %s15, 1
      %s184 = scalar_select %p183, %s15, 1
      %s185 = smul.addr %s184, 2
      %s186 = smul.addr %s185, 8
      %s187 = scalar_lea.vmem %s4, %s186
      %p188 = scmp.lt.s32.totalorder %s15, 1
      %s189 = scalar_select %p188, %s15, 1
      %s190 = smul.addr %s189, 2
      %s191 = smul.addr %s190, 8
      %s192 = scalar_lea.vmem %s1, %s191
      %p193 = scmp.lt.s32.totalorder %s15, 1
      %s194 = scalar_select %p193, %s15, 1
      %s195 = smul.addr %s194, 2
      %s196 = smul.addr %s195, 8
      %s197 = scalar_lea.vmem %s4, %s196
      %198 = vst [vmem:[#allocation2 + $0x1b0] sm:$0xff] 0.0
      %199 = vst [vmem:[#allocation2 + $0x1b8] sm:$0xff] 0.0
      %200 = vst [vmem:[#allocation2 + $0x1c0] sm:$0xff] 0.0
      %201 = vst [vmem:[#allocation2 + $0x1c8] sm:$0xff] 0.0
      %202 = vst [vmem:[#allocation2 + $0x1d0] sm:$0xff] 0.0
      %203 = vst [vmem:[#allocation2 + $0x1d8] sm:$0xff] 0.0
      %204 = vst [vmem:[#allocation2 + $0x1e0] sm:$0xff] 0.0
      %205 = vst [vmem:[#allocation2 + $0x1e8] sm:$0xff] 0.0
      %206 = vst [vmem:[#allocation2 + $0x1f0] sm:$0xff] 0.0
      %207 = vst [vmem:[#allocation2 + $0x1f8] sm:$0xff] 0.0
      %v208 = vld [vmem:[%s192] sm:$0xff]
      %v209 = vld [vmem:[%s192 + $0x8] sm:$0xff]
      %210 = vrot.lane.b32.xlu0 %v208, 73
      %v211 = vpop.permute.xlu0 %210
      %212 = vrot.lane.b32.xlu0 %v209, 73
      %v213 = vpop.permute.xlu0 %212
      %v214 = vlaneseq
      %v215 = vand.u32 %v214, 127
      %vm216 = vcmp.lt.s32.totalorder %v215, 73
      %v217 = vsel %vm216, %v211, %v213
      %v218 = vsel %vm216, %v213, %v211
      %v219 = vld [vmem:[%s0] ss:$8 sm:$0x3]
      %v221 = vlaneseq
      %v222 = vshrl.u32 %v221, 7
      %v223 = vsub.s32 0, %v222
      %v224 = vrot.slane %v219, %v223
      %v225 = vlaneseq
      %v226 = vshrl.u32 %v225, 7
      %v227 = vsub.s32 1, %v226
      %v228 = vrot.slane %v219, %v227
      %v231 = vmul.f32 %v218, %v224
      %v232 = vmul.f32 %v217, %v228
      %233 = vst [vmem:[#allocation2] sm:$0xff] %v231
      %234 = vst [vmem:[#allocation2 + $0x8] sm:$0xff] %v232
      %235 = vrot.lane.b32.xlu0 %v208, 72
      %v236 = vpop.permute.xlu0 %235
      %237 = vrot.lane.b32.xlu0 %v209, 72
      %v238 = vpop.permute.xlu0 %237
      %vm239 = vcmp.lt.s32.totalorder %v215, 72
      %v240 = vsel %vm239, %v236, %v238
      %v241 = vsel %vm239, %v238, %v236
      %s242 = scalar_lea.vmem %s0, 1
      %v243 = vld [vmem:[%s242] ss:$8 sm:$0x3]
      %v245 = vlaneseq
      %v246 = vshrl.u32 %v245, 7
      %v247 = vsub.s32 0, %v246
      %v248 = vrot.slane %v243, %v247
      %v249 = vlaneseq
      %v250 = vshrl.u32 %v249, 7
      %v251 = vsub.s32 1, %v250
      %v252 = vrot.slane %v243, %v251
      %v255 = vmul.f32 %v241, %v248
      %v256 = vmul.f32 %v240, %v252
      %257 = vst [vmem:[#allocation2 + $0x10] sm:$0xff] %v255
      %258 = vst [vmem:[#allocation2 + $0x18] sm:$0xff] %v256
      %259 = vrot.lane.b32.xlu0 %v208, 71
      %v260 = vpop.permute.xlu0 %259
      %261 = vrot.lane.b32.xlu0 %v209, 71
      %v262 = vpop.permute.xlu0 %261
      %vm263 = vcmp.lt.s32.totalorder %v215, 71
      %v264 = vsel %vm263, %v260, %v262
      %v265 = vsel %vm263, %v262, %v260
      %s266 = scalar_lea.vmem %s0, 2
      %v267 = vld [vmem:[%s266] ss:$8 sm:$0x3]
      %v269 = vlaneseq
      %v270 = vshrl.u32 %v269, 7
      %v271 = vsub.s32 0, %v270
      %v272 = vrot.slane %v267, %v271
      %v273 = vlaneseq
      %v274 = vshrl.u32 %v273, 7
      %v275 = vsub.s32 1, %v274
      %v276 = vrot.slane %v267, %v275
      %v279 = vmul.f32 %v265, %v272
      %v280 = vmul.f32 %v264, %v276
      %281 = vst [vmem:[#allocation2 + $0x20] sm:$0xff] %v279
      %282 = vst [vmem:[#allocation2 + $0x28] sm:$0xff] %v280
      %283 = vrot.lane.b32.xlu0 %v208, 65
      %v284 = vpop.permute.xlu0 %283
      %285 = vrot.lane.b32.xlu0 %v209, 65
      %v286 = vpop.permute.xlu0 %285
      %vm287 = vcmp.lt.s32.totalorder %v215, 65
      %v288 = vsel %vm287, %v284, %v286
      %v289 = vsel %vm287, %v286, %v284
      %s290 = scalar_lea.vmem %s0, 3
      %v291 = vld [vmem:[%s290] ss:$8 sm:$0x3]
      %v293 = vlaneseq
      %v294 = vshrl.u32 %v293, 7
      %v295 = vsub.s32 0, %v294
      %v296 = vrot.slane %v291, %v295
      %v297 = vlaneseq
      %v298 = vshrl.u32 %v297, 7
      %v299 = vsub.s32 1, %v298
      %v300 = vrot.slane %v291, %v299
      %v303 = vmul.f32 %v289, %v296
      %v304 = vmul.f32 %v288, %v300
      %305 = vst [vmem:[#allocation2 + $0x30] sm:$0xff] %v303
      %306 = vst [vmem:[#allocation2 + $0x38] sm:$0xff] %v304
      %307 = vrot.lane.b32.xlu0 %v208, 64
      %v308 = vpop.permute.xlu0 %307
      %309 = vrot.lane.b32.xlu0 %v209, 64
      %v310 = vpop.permute.xlu0 %309
      %vm311 = vcmp.lt.s32.totalorder %v215, 64
      %v312 = vsel %vm311, %v308, %v310
      %v313 = vsel %vm311, %v310, %v308
      %s314 = scalar_lea.vmem %s0, 4
      %v315 = vld [vmem:[%s314] ss:$8 sm:$0x3]
      %v317 = vlaneseq
      %v318 = vshrl.u32 %v317, 7
      %v319 = vsub.s32 0, %v318
      %v320 = vrot.slane %v315, %v319
      %v321 = vlaneseq
      %v322 = vshrl.u32 %v321, 7
      %v323 = vsub.s32 1, %v322
      %v324 = vrot.slane %v315, %v323
      %v327 = vmul.f32 %v313, %v320
      %v328 = vmul.f32 %v312, %v324
      %329 = vst [vmem:[#allocation2 + $0x40] sm:$0xff] %v327
      %330 = vst [vmem:[#allocation2 + $0x48] sm:$0xff] %v328
      %331 = vrot.lane.b32.xlu0 %v208, 63
      %v332 = vpop.permute.xlu0 %331
      %333 = vrot.lane.b32.xlu0 %v209, 63
      %v334 = vpop.permute.xlu0 %333
      %vm335 = vcmp.lt.s32.totalorder %v215, 63
      %v336 = vsel %vm335, %v332, %v334
      %v337 = vsel %vm335, %v334, %v332
      %s338 = scalar_lea.vmem %s0, 5
      %v339 = vld [vmem:[%s338] ss:$8 sm:$0x3]
      %v341 = vlaneseq
      %v342 = vshrl.u32 %v341, 7
      %v343 = vsub.s32 0, %v342
      %v344 = vrot.slane %v339, %v343
      %v345 = vlaneseq
      %v346 = vshrl.u32 %v345, 7
      %v347 = vsub.s32 1, %v346
      %v348 = vrot.slane %v339, %v347
      %v351 = vmul.f32 %v337, %v344
      %v352 = vmul.f32 %v336, %v348
      %353 = vst [vmem:[#allocation2 + $0x50] sm:$0xff] %v351
      %354 = vst [vmem:[#allocation2 + $0x58] sm:$0xff] %v352
      %355 = vrot.lane.b32.xlu0 %v208, 57
      %v356 = vpop.permute.xlu0 %355
      %357 = vrot.lane.b32.xlu0 %v209, 57
      %v358 = vpop.permute.xlu0 %357
      %vm359 = vcmp.lt.s32.totalorder %v215, 57
      %v360 = vsel %vm359, %v356, %v358
      %v361 = vsel %vm359, %v358, %v356
      %s362 = scalar_lea.vmem %s0, 6
      %v363 = vld [vmem:[%s362] ss:$8 sm:$0x3]
      %v365 = vlaneseq
      %v366 = vshrl.u32 %v365, 7
      %v367 = vsub.s32 0, %v366
      %v368 = vrot.slane %v363, %v367
      %v369 = vlaneseq
      %v370 = vshrl.u32 %v369, 7
      %v371 = vsub.s32 1, %v370
      %v372 = vrot.slane %v363, %v371
      %v375 = vmul.f32 %v361, %v368
      %v376 = vmul.f32 %v360, %v372
      %377 = vst [vmem:[#allocation2 + $0x60] sm:$0xff] %v375
      %378 = vst [vmem:[#allocation2 + $0x68] sm:$0xff] %v376
      %379 = vrot.lane.b32.xlu0 %v208, 56
      %v380 = vpop.permute.xlu0 %379
      %381 = vrot.lane.b32.xlu0 %v209, 56
      %v382 = vpop.permute.xlu0 %381
      %vm383 = vcmp.lt.s32.totalorder %v215, 56
      %v384 = vsel %vm383, %v380, %v382
      %v385 = vsel %vm383, %v382, %v380
      %s386 = scalar_lea.vmem %s0, 7
      %v387 = vld [vmem:[%s386] ss:$8 sm:$0x3]
      %v389 = vlaneseq
      %v390 = vshrl.u32 %v389, 7
      %v391 = vsub.s32 0, %v390
      %v392 = vrot.slane %v387, %v391
      %v393 = vlaneseq
      %v394 = vshrl.u32 %v393, 7
      %v395 = vsub.s32 1, %v394
      %v396 = vrot.slane %v387, %v395
      %v399 = vmul.f32 %v385, %v392
      %v400 = vmul.f32 %v384, %v396
      %401 = vst [vmem:[#allocation2 + $0x70] sm:$0xff] %v399
      %402 = vst [vmem:[#allocation2 + $0x78] sm:$0xff] %v400
      %403 = vrot.lane.b32.xlu0 %v208, 55
      %v404 = vpop.permute.xlu0 %403
      %405 = vrot.lane.b32.xlu0 %v209, 55
      %v406 = vpop.permute.xlu0 %405
      %vm407 = vcmp.lt.s32.totalorder %v215, 55
      %v408 = vsel %vm407, %v404, %v406
      %v409 = vsel %vm407, %v406, %v404
      %s410 = scalar_lea.vmem %s0, 16
      %v411 = vld [vmem:[%s410] ss:$8 sm:$0x3]
      %v413 = vlaneseq
      %v414 = vshrl.u32 %v413, 7
      %v415 = vsub.s32 0, %v414
      %v416 = vrot.slane %v411, %v415
      %v417 = vlaneseq
      %v418 = vshrl.u32 %v417, 7
      %v419 = vsub.s32 1, %v418
      %v420 = vrot.slane %v411, %v419
      %v423 = vmul.f32 %v409, %v416
      %v424 = vmul.f32 %v408, %v420
      %425 = vst [vmem:[#allocation2 + $0x80] sm:$0xff] %v423
      %426 = vst [vmem:[#allocation2 + $0x88] sm:$0xff] %v424
      %427 = vrot.lane.b32.xlu0 %v208, 9
      %v428 = vpop.permute.xlu0 %427
      %429 = vrot.lane.b32.xlu0 %v209, 9
      %v430 = vpop.permute.xlu0 %429
      %vm431 = vcmp.lt.s32.totalorder %v215, 9
      %v432 = vsel %vm431, %v428, %v430
      %v433 = vsel %vm431, %v430, %v428
      %s434 = scalar_lea.vmem %s0, 17
      %v435 = vld [vmem:[%s434] ss:$8 sm:$0x3]
      %v437 = vlaneseq
      %v438 = vshrl.u32 %v437, 7
      %v439 = vsub.s32 0, %v438
      %v440 = vrot.slane %v435, %v439
      %v441 = vlaneseq
      %v442 = vshrl.u32 %v441, 7
      %v443 = vsub.s32 1, %v442
      %v444 = vrot.slane %v435, %v443
      %v447 = vmul.f32 %v433, %v440
      %v448 = vmul.f32 %v432, %v444
      %449 = vst [vmem:[#allocation2 + $0x90] sm:$0xff] %v447
      %450 = vst [vmem:[#allocation2 + $0x98] sm:$0xff] %v448
      %451 = vrot.lane.b32.xlu0 %v208, 8
      %v452 = vpop.permute.xlu0 %451
      %453 = vrot.lane.b32.xlu0 %v209, 8
      %v454 = vpop.permute.xlu0 %453
      %vm455 = vcmp.lt.s32.totalorder %v215, 8
      %v456 = vsel %vm455, %v452, %v454
      %v457 = vsel %vm455, %v454, %v452
      %s458 = scalar_lea.vmem %s0, 18
      %v459 = vld [vmem:[%s458] ss:$8 sm:$0x3]
      %v461 = vlaneseq
      %v462 = vshrl.u32 %v461, 7
      %v463 = vsub.s32 0, %v462
      %v464 = vrot.slane %v459, %v463
      %v465 = vlaneseq
      %v466 = vshrl.u32 %v465, 7
      %v467 = vsub.s32 1, %v466
      %v468 = vrot.slane %v459, %v467
      %v471 = vmul.f32 %v457, %v464
      %v472 = vmul.f32 %v456, %v468
      %473 = vst [vmem:[#allocation2 + $0xa0] sm:$0xff] %v471
      %474 = vst [vmem:[#allocation2 + $0xa8] sm:$0xff] %v472
      %475 = vrot.lane.b32.xlu0 %v208, 7
      %v476 = vpop.permute.xlu0 %475
      %477 = vrot.lane.b32.xlu0 %v209, 7
      %v478 = vpop.permute.xlu0 %477
      %vm479 = vcmp.lt.s32.totalorder %v215, 7
      %v480 = vsel %vm479, %v476, %v478
      %v481 = vsel %vm479, %v478, %v476
      %s482 = scalar_lea.vmem %s0, 19
      %v483 = vld [vmem:[%s482] ss:$8 sm:$0x3]
      %v485 = vlaneseq
      %v486 = vshrl.u32 %v485, 7
      %v487 = vsub.s32 0, %v486
      %v488 = vrot.slane %v483, %v487
      %v489 = vlaneseq
      %v490 = vshrl.u32 %v489, 7
      %v491 = vsub.s32 1, %v490
      %v492 = vrot.slane %v483, %v491
      %v495 = vmul.f32 %v481, %v488
      %v496 = vmul.f32 %v480, %v492
      %497 = vst [vmem:[#allocation2 + $0xb0] sm:$0xff] %v495
      %498 = vst [vmem:[#allocation2 + $0xb8] sm:$0xff] %v496
      %499 = vrot.lane.b32.xlu0 %v208, 1
      %v500 = vpop.permute.xlu0 %499
      %501 = vrot.lane.b32.xlu0 %v209, 1
      %v502 = vpop.permute.xlu0 %501
      %vm503 = vcmp.lt.s32.totalorder %v215, 1
      %v504 = vsel %vm503, %v500, %v502
      %v505 = vsel %vm503, %v502, %v500
      %s506 = scalar_lea.vmem %s0, 20
      %v507 = vld [vmem:[%s506] ss:$8 sm:$0x3]
      %v509 = vlaneseq
      %v510 = vshrl.u32 %v509, 7
      %v511 = vsub.s32 0, %v510
      %v512 = vrot.slane %v507, %v511
      %v513 = vlaneseq
      %v514 = vshrl.u32 %v513, 7
      %v515 = vsub.s32 1, %v514
      %v516 = vrot.slane %v507, %v515
      %v519 = vmul.f32 %v505, %v512
      %v520 = vmul.f32 %v504, %v516
      %521 = vst [vmem:[#allocation2 + $0xc0] sm:$0xff] %v519
      %522 = vst [vmem:[#allocation2 + $0xc8] sm:$0xff] %v520
      %523 = vst [vmem:[#allocation2 + $0xd0] sm:$0xff] %v208
      %524 = vst [vmem:[#allocation2 + $0xd8] sm:$0xff] %v209
      %525 = vrot.lane.b32.xlu0 %v208, 127
      %v526 = vpop.permute.xlu0 %525
      %527 = vrot.lane.b32.xlu0 %v209, 127
      %v528 = vpop.permute.xlu0 %527
      %vm529 = vcmp.lt.s32.totalorder %v215, 127
      %v530 = vsel %vm529, %v526, %v528
      %v531 = vsel %vm529, %v528, %v526
      %s532 = scalar_lea.vmem %s0, 22
      %v533 = vld [vmem:[%s532] ss:$8 sm:$0x3]
      %v535 = vlaneseq
      %v536 = vshrl.u32 %v535, 7
      %v537 = vsub.s32 0, %v536
      %v538 = vrot.slane %v533, %v537
      %v539 = vlaneseq
      %v540 = vshrl.u32 %v539, 7
      %v541 = vsub.s32 1, %v540
      %v542 = vrot.slane %v533, %v541
      %v545 = vmul.f32 %v530, %v538
      %v546 = vmul.f32 %v531, %v542
      %547 = vst [vmem:[#allocation2 + $0xe0] sm:$0xff] %v545
      %548 = vst [vmem:[#allocation2 + $0xe8] sm:$0xff] %v546
      %549 = vrot.lane.b32.xlu0 %v208, 121
      %v550 = vpop.permute.xlu0 %549
      %551 = vrot.lane.b32.xlu0 %v209, 121
      %v552 = vpop.permute.xlu0 %551
      %vm553 = vcmp.lt.s32.totalorder %v215, 121
      %v554 = vsel %vm553, %v550, %v552
      %v555 = vsel %vm553, %v552, %v550
      %s556 = scalar_lea.vmem %s0, 23
      %v557 = vld [vmem:[%s556] ss:$8 sm:$0x3]
      %v559 = vlaneseq
      %v560 = vshrl.u32 %v559, 7
      %v561 = vsub.s32 0, %v560
      %v562 = vrot.slane %v557, %v561
      %v563 = vlaneseq
      %v564 = vshrl.u32 %v563, 7
      %v565 = vsub.s32 1, %v564
      %v566 = vrot.slane %v557, %v565
      %v569 = vmul.f32 %v554, %v562
      %v570 = vmul.f32 %v555, %v566
      %571 = vst [vmem:[#allocation2 + $0xf0] sm:$0xff] %v569
      %572 = vst [vmem:[#allocation2 + $0xf8] sm:$0xff] %v570
      %573 = vrot.lane.b32.xlu0 %v208, 120
      %v574 = vpop.permute.xlu0 %573
      %575 = vrot.lane.b32.xlu0 %v209, 120
      %v576 = vpop.permute.xlu0 %575
      %vm577 = vcmp.lt.s32.totalorder %v215, 120
      %v578 = vsel %vm577, %v574, %v576
      %v579 = vsel %vm577, %v576, %v574
      %s580 = scalar_lea.vmem %s0, 32
      %v581 = vld [vmem:[%s580] ss:$8 sm:$0x3]
      %v583 = vlaneseq
      %v584 = vshrl.u32 %v583, 7
      %v585 = vsub.s32 0, %v584
      %v586 = vrot.slane %v581, %v585
      %v587 = vlaneseq
      %v588 = vshrl.u32 %v587, 7
      %v589 = vsub.s32 1, %v588
      %v590 = vrot.slane %v581, %v589
      %v593 = vmul.f32 %v578, %v586
      %v594 = vmul.f32 %v579, %v590
      %595 = vst [vmem:[#allocation2 + $0x100] sm:$0xff] %v593
      %596 = vst [vmem:[#allocation2 + $0x108] sm:$0xff] %v594
      %597 = vrot.lane.b32.xlu0 %v208, 119
      %v598 = vpop.permute.xlu0 %597
      %599 = vrot.lane.b32.xlu0 %v209, 119
      %v600 = vpop.permute.xlu0 %599
      %vm601 = vcmp.lt.s32.totalorder %v215, 119
      %v602 = vsel %vm601, %v598, %v600
      %v603 = vsel %vm601, %v600, %v598
      %s604 = scalar_lea.vmem %s0, 33
      %v605 = vld [vmem:[%s604] ss:$8 sm:$0x3]
      %v607 = vlaneseq
      %v608 = vshrl.u32 %v607, 7
      %v609 = vsub.s32 0, %v608
      %v610 = vrot.slane %v605, %v609
      %v611 = vlaneseq
      %v612 = vshrl.u32 %v611, 7
      %v613 = vsub.s32 1, %v612
      %v614 = vrot.slane %v605, %v613
      %v617 = vmul.f32 %v602, %v610
      %v618 = vmul.f32 %v603, %v614
      %619 = vst [vmem:[#allocation2 + $0x110] sm:$0xff] %v617
      %620 = vst [vmem:[#allocation2 + $0x118] sm:$0xff] %v618
      %s621 = scalar_lea.vmem %s0, 34
      %v622 = vld [vmem:[%s621] ss:$8 sm:$0x3]
      %v624 = vlaneseq
      %v625 = vshrl.u32 %v624, 7
      %v626 = vsub.s32 0, %v625
      %v627 = vrot.slane %v622, %v626
      %v628 = vlaneseq
      %v629 = vshrl.u32 %v628, 7
      %v630 = vsub.s32 1, %v629
      %v631 = vrot.slane %v622, %v630
      %v634 = vmul.f32 %v217, %v627
      %v635 = vmul.f32 %v218, %v631
      %636 = vst [vmem:[#allocation2 + $0x120] sm:$0xff] %v634
      %637 = vst [vmem:[#allocation2 + $0x128] sm:$0xff] %v635
      %s638 = scalar_lea.vmem %s0, 35
      %v639 = vld [vmem:[%s638] ss:$8 sm:$0x3]
      %v641 = vlaneseq
      %v642 = vshrl.u32 %v641, 7
      %v643 = vsub.s32 0, %v642
      %v644 = vrot.slane %v639, %v643
      %v645 = vlaneseq
      %v646 = vshrl.u32 %v645, 7
      %v647 = vsub.s32 1, %v646
      %v648 = vrot.slane %v639, %v647
      %v651 = vmul.f32 %v240, %v644
      %v652 = vmul.f32 %v241, %v648
      %653 = vst [vmem:[#allocation2 + $0x130] sm:$0xff] %v651
      %654 = vst [vmem:[#allocation2 + $0x138] sm:$0xff] %v652
      %s655 = scalar_lea.vmem %s0, 36
      %v656 = vld [vmem:[%s655] ss:$8 sm:$0x3]
      %v658 = vlaneseq
      %v659 = vshrl.u32 %v658, 7
      %v660 = vsub.s32 0, %v659
      %v661 = vrot.slane %v656, %v660
      %v662 = vlaneseq
      %v663 = vshrl.u32 %v662, 7
      %v664 = vsub.s32 1, %v663
      %v665 = vrot.slane %v656, %v664
      %v668 = vmul.f32 %v264, %v661
      %v669 = vmul.f32 %v265, %v665
      %670 = vst [vmem:[#allocation2 + $0x140] sm:$0xff] %v668
      %671 = vst [vmem:[#allocation2 + $0x148] sm:$0xff] %v669
      %s672 = scalar_lea.vmem %s0, 37
      %v673 = vld [vmem:[%s672] ss:$8 sm:$0x3]
      %v675 = vlaneseq
      %v676 = vshrl.u32 %v675, 7
      %v677 = vsub.s32 0, %v676
      %v678 = vrot.slane %v673, %v677
      %v679 = vlaneseq
      %v680 = vshrl.u32 %v679, 7
      %v681 = vsub.s32 1, %v680
      %v682 = vrot.slane %v673, %v681
      %v685 = vmul.f32 %v288, %v678
      %v686 = vmul.f32 %v289, %v682
      %687 = vst [vmem:[#allocation2 + $0x150] sm:$0xff] %v685
      %688 = vst [vmem:[#allocation2 + $0x158] sm:$0xff] %v686
      %s689 = scalar_lea.vmem %s0, 38
      %v690 = vld [vmem:[%s689] ss:$8 sm:$0x3]
      %v692 = vlaneseq
      %v693 = vshrl.u32 %v692, 7
      %v694 = vsub.s32 0, %v693
      %v695 = vrot.slane %v690, %v694
      %v696 = vlaneseq
      %v697 = vshrl.u32 %v696, 7
      %v698 = vsub.s32 1, %v697
      %v699 = vrot.slane %v690, %v698
      %v702 = vmul.f32 %v312, %v695
      %v703 = vmul.f32 %v313, %v699
      %704 = vst [vmem:[#allocation2 + $0x160] sm:$0xff] %v702
      %705 = vst [vmem:[#allocation2 + $0x168] sm:$0xff] %v703
      %s706 = scalar_lea.vmem %s0, 39
      %v707 = vld [vmem:[%s706] ss:$8 sm:$0x3]
      %v709 = vlaneseq
      %v710 = vshrl.u32 %v709, 7
      %v711 = vsub.s32 0, %v710
      %v712 = vrot.slane %v707, %v711
      %v713 = vlaneseq
      %v714 = vshrl.u32 %v713, 7
      %v715 = vsub.s32 1, %v714
      %v716 = vrot.slane %v707, %v715
      %v719 = vmul.f32 %v336, %v712
      %v720 = vmul.f32 %v337, %v716
      %721 = vst [vmem:[#allocation2 + $0x170] sm:$0xff] %v719
      %722 = vst [vmem:[#allocation2 + $0x178] sm:$0xff] %v720
      %s723 = scalar_lea.vmem %s0, 48
      %v724 = vld [vmem:[%s723] ss:$8 sm:$0x3]
      %v726 = vlaneseq
      %v727 = vshrl.u32 %v726, 7
      %v728 = vsub.s32 0, %v727
      %v729 = vrot.slane %v724, %v728
      %v730 = vlaneseq
      %v731 = vshrl.u32 %v730, 7
      %v732 = vsub.s32 1, %v731
      %v733 = vrot.slane %v724, %v732
      %v736 = vmul.f32 %v360, %v729
      %v737 = vmul.f32 %v361, %v733
      %738 = vst [vmem:[#allocation2 + $0x180] sm:$0xff] %v736
      %739 = vst [vmem:[#allocation2 + $0x188] sm:$0xff] %v737
      %s740 = scalar_lea.vmem %s0, 49
      %v741 = vld [vmem:[%s740] ss:$8 sm:$0x3]
      %v743 = vlaneseq
      %v744 = vshrl.u32 %v743, 7
      %v745 = vsub.s32 0, %v744
      %v746 = vrot.slane %v741, %v745
      %v747 = vlaneseq
      %v748 = vshrl.u32 %v747, 7
      %v749 = vsub.s32 1, %v748
      %v750 = vrot.slane %v741, %v749
      %v753 = vmul.f32 %v384, %v746
      %v754 = vmul.f32 %v385, %v750
      %755 = vst [vmem:[#allocation2 + $0x190] sm:$0xff] %v753
      %756 = vst [vmem:[#allocation2 + $0x198] sm:$0xff] %v754
      %s757 = scalar_lea.vmem %s0, 50
      %v758 = vld [vmem:[%s757] ss:$8 sm:$0x3]
      %v760 = vlaneseq
      %v761 = vshrl.u32 %v760, 7
      %v762 = vsub.s32 0, %v761
      %v763 = vrot.slane %v758, %v762
      %v764 = vlaneseq
      %v765 = vshrl.u32 %v764, 7
      %v766 = vsub.s32 1, %v765
      %v767 = vrot.slane %v758, %v766
      %v770 = vmul.f32 %v408, %v763
      %v771 = vmul.f32 %v409, %v767
      %772 = vst [vmem:[#allocation2 + $0x1a0] sm:$0xff] %v770
      %773 = vst [vmem:[#allocation2 + $0x1a8] sm:$0xff] %v771
      %v774 = vld [vmem:[%s2] sm:$0xff]
      %v775 = vld [vmem:[%s2 + $0x8] sm:$0xff]
      %v776 = vld [vmem:[#allocation2] sm:$0xff]
      %v777 = vld [vmem:[#allocation2 + $0x8] sm:$0xff]
      %v778 = vld [vmem:[#allocation2 + $0x10] sm:$0xff]
      %v779 = vld [vmem:[#allocation2 + $0x18] sm:$0xff]
      %v780 = vld [vmem:[#allocation2 + $0x20] sm:$0xff]
      %v781 = vld [vmem:[#allocation2 + $0x28] sm:$0xff]
      %v782 = vld [vmem:[#allocation2 + $0x30] sm:$0xff]
      %v783 = vld [vmem:[#allocation2 + $0x38] sm:$0xff]
      %v784 = vld [vmem:[#allocation2 + $0x40] sm:$0xff]
      %v785 = vld [vmem:[#allocation2 + $0x48] sm:$0xff]
      %v786 = vld [vmem:[#allocation2 + $0x50] sm:$0xff]
      %v787 = vld [vmem:[#allocation2 + $0x58] sm:$0xff]
      %v788 = vld [vmem:[#allocation2 + $0x60] sm:$0xff]
      %v789 = vld [vmem:[#allocation2 + $0x68] sm:$0xff]
      %v790 = vld [vmem:[#allocation2 + $0x70] sm:$0xff]
      %v791 = vld [vmem:[#allocation2 + $0x78] sm:$0xff]
      %v792 = vld [vmem:[#allocation2 + $0x80] sm:$0xff]
      %v793 = vld [vmem:[#allocation2 + $0x88] sm:$0xff]
      %v794 = vld [vmem:[#allocation2 + $0x90] sm:$0xff]
      %v795 = vld [vmem:[#allocation2 + $0x98] sm:$0xff]
      %v796 = vld [vmem:[#allocation2 + $0xa0] sm:$0xff]
      %v797 = vld [vmem:[#allocation2 + $0xa8] sm:$0xff]
      %v798 = vld [vmem:[#allocation2 + $0xb0] sm:$0xff]
      %v799 = vld [vmem:[#allocation2 + $0xb8] sm:$0xff]
      %v800 = vld [vmem:[#allocation2 + $0xc0] sm:$0xff]
      %v801 = vld [vmem:[#allocation2 + $0xc8] sm:$0xff]
      %v802 = vld [vmem:[#allocation2 + $0xd0] sm:$0xff]
      %v803 = vld [vmem:[#allocation2 + $0xd8] sm:$0xff]
      %v804 = vld [vmem:[#allocation2 + $0xe0] sm:$0xff]
      %v805 = vld [vmem:[#allocation2 + $0xe8] sm:$0xff]
      %v806 = vld [vmem:[#allocation2 + $0xf0] sm:$0xff]
      %v807 = vld [vmem:[#allocation2 + $0xf8] sm:$0xff]
      %v808 = vld [vmem:[#allocation2 + $0x100] sm:$0xff]
      %v809 = vld [vmem:[#allocation2 + $0x108] sm:$0xff]
      %v810 = vld [vmem:[#allocation2 + $0x110] sm:$0xff]
      %v811 = vld [vmem:[#allocation2 + $0x118] sm:$0xff]
      %v812 = vld [vmem:[#allocation2 + $0x120] sm:$0xff]
      %v813 = vld [vmem:[#allocation2 + $0x128] sm:$0xff]
      %v814 = vld [vmem:[#allocation2 + $0x130] sm:$0xff]
      %v815 = vld [vmem:[#allocation2 + $0x138] sm:$0xff]
      %v816 = vld [vmem:[#allocation2 + $0x140] sm:$0xff]
      %v817 = vld [vmem:[#allocation2 + $0x148] sm:$0xff]
      %v818 = vld [vmem:[#allocation2 + $0x150] sm:$0xff]
      %v819 = vld [vmem:[#allocation2 + $0x158] sm:$0xff]
      %v820 = vld [vmem:[#allocation2 + $0x160] sm:$0xff]
      %v821 = vld [vmem:[#allocation2 + $0x168] sm:$0xff]
      %v822 = vld [vmem:[#allocation2 + $0x170] sm:$0xff]
      %v823 = vld [vmem:[#allocation2 + $0x178] sm:$0xff]
      %v824 = vld [vmem:[#allocation2 + $0x180] sm:$0xff]
      %v825 = vld [vmem:[#allocation2 + $0x188] sm:$0xff]
      %v826 = vld [vmem:[#allocation2 + $0x190] sm:$0xff]
      %v827 = vld [vmem:[#allocation2 + $0x198] sm:$0xff]
      %v828 = vld [vmem:[#allocation2 + $0x1a0] sm:$0xff]
      %v829 = vld [vmem:[#allocation2 + $0x1a8] sm:$0xff]
      %v830 = vld [vmem:[#allocation2 + $0x1b0] sm:$0xff]
      %v831 = vld [vmem:[#allocation2 + $0x1b8] sm:$0xff]
      %v832 = vld [vmem:[#allocation2 + $0x1c0] sm:$0xff]
      %v833 = vld [vmem:[#allocation2 + $0x1c8] sm:$0xff]
      %v834 = vld [vmem:[#allocation2 + $0x1d0] sm:$0xff]
      %v835 = vld [vmem:[#allocation2 + $0x1d8] sm:$0xff]
      %v836 = vld [vmem:[#allocation2 + $0x1e0] sm:$0xff]
      %v837 = vld [vmem:[#allocation2 + $0x1e8] sm:$0xff]
      %v838 = vld [vmem:[#allocation2 + $0x1f0] sm:$0xff]
      %v839 = vld [vmem:[#allocation2 + $0x1f8] sm:$0xff]
      %v840 = vld [vmem:[%s3] sm:$0xff]
      %842 = vset.pattern.permute.xlu0 0
      %843 = vperm.xlu0 %842, %v840
      %v844 = vpop.permute.xlu0 %843
      %846 = vmatprep.subr.mxu0 %v807
      %847 = vmatpush1.msra.mxu0 %v806
      %848 = vmatprep.subr.mxu0 %v805
      %849 = vmatpush1.msra.mxu0 %v804
      %850 = vmatprep.subr.mxu0 %v803
      %851 = vmatpush1.msra.mxu0 %v802
      %852 = vmatprep.subr.mxu0 %v801
      %853 = vmatpush1.msra.mxu0 %v800
      %854 = vmatprep.subr.mxu0 %v799
      %855 = vmatpush1.msra.mxu0 %v798
      %856 = vmatprep.subr.mxu0 %v797
      %857 = vmatpush1.msra.mxu0 %v796
      %858 = vmatprep.subr.mxu0 %v795
      %859 = vmatpush1.msra.mxu0 %v794
      %860 = vmatprep.subr.mxu0 %v793
      %861 = vmatpush1.msra.mxu0 %v792
      %862 = vmatprep.subr.mxu0 %v791
      %863 = vmatpush1.msra.mxu0 %v790
      %864 = vmatprep.subr.mxu0 %v789
      %865 = vmatpush1.msra.mxu0 %v788
      %866 = vmatprep.subr.mxu0 %v787
      %867 = vmatpush1.msra.mxu0 %v786
      %868 = vmatprep.subr.mxu0 %v785
      %869 = vmatpush1.msra.mxu0 %v784
      %870 = vmatprep.subr.mxu0 %v783
      %871 = vmatpush1.msra.mxu0 %v782
      %872 = vmatprep.subr.mxu0 %v781
      %873 = vmatpush1.msra.mxu0 %v780
      %874 = vmatprep.subr.mxu0 %v779
      %875 = vmatpush1.msra.mxu0 %v778
      %876 = vmatprep.subr.mxu0 %v777
      %877 = vmatpush1.msra.mxu0 %v776
      %878 = vmatprep.subr.mxu0 %v839
      %879 = vmatpush2.msra.mxu0 %v838
      %880 = vmatprep.subr.mxu0 %v837
      %881 = vmatpush2.msra.mxu0 %v836
      %882 = vmatprep.subr.mxu0 %v835
      %883 = vmatpush2.msra.mxu0 %v834
      %884 = vmatprep.subr.mxu0 %v833
      %885 = vmatpush2.msra.mxu0 %v832
      %886 = vmatprep.subr.mxu0 %v831
      %887 = vmatpush2.msra.mxu0 %v830
      %888 = vmatprep.subr.mxu0 %v829
      %889 = vmatpush2.msra.mxu0 %v828
      %890 = vmatprep.subr.mxu0 %v827
      %891 = vmatpush2.msra.mxu0 %v826
      %892 = vmatprep.subr.mxu0 %v825
      %893 = vmatpush2.msra.mxu0 %v824
      %894 = vmatprep.subr.mxu0 %v823
      %895 = vmatpush2.msra.mxu0 %v822
      %896 = vmatprep.subr.mxu0 %v821
      %897 = vmatpush2.msra.mxu0 %v820
      %898 = vmatprep.subr.mxu0 %v819
      %899 = vmatpush2.msra.mxu0 %v818
      %900 = vmatprep.subr.mxu0 %v817
      %901 = vmatpush2.msra.mxu0 %v816
      %902 = vmatprep.subr.mxu0 %v815
      %903 = vmatpush2.msra.mxu0 %v814
      %904 = vmatprep.subr.mxu0 %v813
      %905 = vmatpush2.msra.mxu0 %v812
      %906 = vmatprep.subr.mxu0 %v811
      %907 = vmatpush2.msra.mxu0 %v810
      %908 = vmatprep.subr.mxu0 %v809
      %909 = vmatpush2.msra.mxu0 %v808
      %910 = vmatprep.mubr.f32.mxu0 %v775
      %911 = vmatmul.mubr.f32.gmra.mxu0 %v774
      %v912 = vpop.f32.mrf.mxu0
      %v913 = vadd.f32 %v844, %v912
      %v914 = vpop.f32.mrf.mxu0
      %v915 = vadd.f32 %v844, %v914
      %916 = vdwg.mxu0
      %v917 = vmax.f32 %v913, 0.0
      %v918 = vmax.f32 %v915, 0.0
      %919 = vrot.lane.b32.xlu0 %v917, 73
      %v920 = vpop.permute.xlu0 %919
      %921 = vrot.lane.b32.xlu0 %v918, 73
      %v922 = vpop.permute.xlu0 %921
      %v923 = vsel %vm216, %v920, %v922
      %v924 = vsel %vm216, %v922, %v920
      %v925 = vld [vmem:[%s0] ss:$8 sm:$0x3]
      %v927 = vlaneseq
      %v928 = vshrl.u32 %v927, 7
      %v929 = vsub.s32 0, %v928
      %v930 = vrot.slane %v925, %v929
      %v931 = vlaneseq
      %v932 = vshrl.u32 %v931, 7
      %v933 = vsub.s32 1, %v932
      %v934 = vrot.slane %v925, %v933
      %v937 = vmul.f32 %v924, %v930
      %v938 = vmul.f32 %v923, %v934
      %939 = vst [vmem:[#allocation2] sm:$0xff] %v937
      %940 = vst [vmem:[#allocation2 + $0x8] sm:$0xff] %v938
      %941 = vrot.lane.b32.xlu0 %v917, 72
      %v942 = vpop.permute.xlu0 %941
      %943 = vrot.lane.b32.xlu0 %v918, 72
      %v944 = vpop.permute.xlu0 %943
      %v945 = vsel %vm239, %v942, %v944
      %v946 = vsel %vm239, %v944, %v942
      %v947 = vld [vmem:[%s242] ss:$8 sm:$0x3]
      %v949 = vlaneseq
      %v950 = vshrl.u32 %v949, 7
      %v951 = vsub.s32 0, %v950
      %v952 = vrot.slane %v947, %v951
      %v953 = vlaneseq
      %v954 = vshrl.u32 %v953, 7
      %v955 = vsub.s32 1, %v954
      %v956 = vrot.slane %v947, %v955
      %v959 = vmul.f32 %v946, %v952
      %v960 = vmul.f32 %v945, %v956
      %961 = vst [vmem:[#allocation2 + $0x10] sm:$0xff] %v959
      %962 = vst [vmem:[#allocation2 + $0x18] sm:$0xff] %v960
      %963 = vrot.lane.b32.xlu0 %v917, 71
      %v964 = vpop.permute.xlu0 %963
      %965 = vrot.lane.b32.xlu0 %v918, 71
      %v966 = vpop.permute.xlu0 %965
      %v967 = vsel %vm263, %v964, %v966
      %v968 = vsel %vm263, %v966, %v964
      %v969 = vld [vmem:[%s266] ss:$8 sm:$0x3]
      %v971 = vlaneseq
      %v972 = vshrl.u32 %v971, 7
      %v973 = vsub.s32 0, %v972
      %v974 = vrot.slane %v969, %v973
      %v975 = vlaneseq
      %v976 = vshrl.u32 %v975, 7
      %v977 = vsub.s32 1, %v976
      %v978 = vrot.slane %v969, %v977
      %v981 = vmul.f32 %v968, %v974
      %v982 = vmul.f32 %v967, %v978
      %983 = vst [vmem:[#allocation2 + $0x20] sm:$0xff] %v981
      %984 = vst [vmem:[#allocation2 + $0x28] sm:$0xff] %v982
      %985 = vrot.lane.b32.xlu0 %v917, 65
      %v986 = vpop.permute.xlu0 %985
      %987 = vrot.lane.b32.xlu0 %v918, 65
      %v988 = vpop.permute.xlu0 %987
      %v989 = vsel %vm287, %v986, %v988
      %v990 = vsel %vm287, %v988, %v986
      %v991 = vld [vmem:[%s290] ss:$8 sm:$0x3]
      %v993 = vlaneseq
      %v994 = vshrl.u32 %v993, 7
      %v995 = vsub.s32 0, %v994
      %v996 = vrot.slane %v991, %v995
      %v997 = vlaneseq
      %v998 = vshrl.u32 %v997, 7
      %v999 = vsub.s32 1, %v998
      %v1000 = vrot.slane %v991, %v999
      %v1003 = vmul.f32 %v990, %v996
      %v1004 = vmul.f32 %v989, %v1000
      %1005 = vst [vmem:[#allocation2 + $0x30] sm:$0xff] %v1003
      %1006 = vst [vmem:[#allocation2 + $0x38] sm:$0xff] %v1004
      %1007 = vrot.lane.b32.xlu0 %v917, 64
      %v1008 = vpop.permute.xlu0 %1007
      %1009 = vrot.lane.b32.xlu0 %v918, 64
      %v1010 = vpop.permute.xlu0 %1009
      %v1011 = vsel %vm311, %v1008, %v1010
      %v1012 = vsel %vm311, %v1010, %v1008
      %v1013 = vld [vmem:[%s314] ss:$8 sm:$0x3]
      %v1015 = vlaneseq
      %v1016 = vshrl.u32 %v1015, 7
      %v1017 = vsub.s32 0, %v1016
      %v1018 = vrot.slane %v1013, %v1017
      %v1019 = vlaneseq
      %v1020 = vshrl.u32 %v1019, 7
      %v1021 = vsub.s32 1, %v1020
      %v1022 = vrot.slane %v1013, %v1021
      %v1025 = vmul.f32 %v1012, %v1018
      %v1026 = vmul.f32 %v1011, %v1022
      %1027 = vst [vmem:[#allocation2 + $0x40] sm:$0xff] %v1025
      %1028 = vst [vmem:[#allocation2 + $0x48] sm:$0xff] %v1026
      %1029 = vrot.lane.b32.xlu0 %v917, 63
      %v1030 = vpop.permute.xlu0 %1029
      %1031 = vrot.lane.b32.xlu0 %v918, 63
      %v1032 = vpop.permute.xlu0 %1031
      %v1033 = vsel %vm335, %v1030, %v1032
      %v1034 = vsel %vm335, %v1032, %v1030
      %v1035 = vld [vmem:[%s338] ss:$8 sm:$0x3]
      %v1037 = vlaneseq
      %v1038 = vshrl.u32 %v1037, 7
      %v1039 = vsub.s32 0, %v1038
      %v1040 = vrot.slane %v1035, %v1039
      %v1041 = vlaneseq
      %v1042 = vshrl.u32 %v1041, 7
      %v1043 = vsub.s32 1, %v1042
      %v1044 = vrot.slane %v1035, %v1043
      %v1047 = vmul.f32 %v1034, %v1040
      %v1048 = vmul.f32 %v1033, %v1044
      %1049 = vst [vmem:[#allocation2 + $0x50] sm:$0xff] %v1047
      %1050 = vst [vmem:[#allocation2 + $0x58] sm:$0xff] %v1048
      %1051 = vrot.lane.b32.xlu0 %v917, 57
      %v1052 = vpop.permute.xlu0 %1051
      %1053 = vrot.lane.b32.xlu0 %v918, 57
      %v1054 = vpop.permute.xlu0 %1053
      %v1055 = vsel %vm359, %v1052, %v1054
      %v1056 = vsel %vm359, %v1054, %v1052
      %v1057 = vld [vmem:[%s362] ss:$8 sm:$0x3]
      %v1059 = vlaneseq
      %v1060 = vshrl.u32 %v1059, 7
      %v1061 = vsub.s32 0, %v1060
      %v1062 = vrot.slane %v1057, %v1061
      %v1063 = vlaneseq
      %v1064 = vshrl.u32 %v1063, 7
      %v1065 = vsub.s32 1, %v1064
      %v1066 = vrot.slane %v1057, %v1065
      %v1069 = vmul.f32 %v1056, %v1062
      %v1070 = vmul.f32 %v1055, %v1066
      %1071 = vst [vmem:[#allocation2 + $0x60] sm:$0xff] %v1069
      %1072 = vst [vmem:[#allocation2 + $0x68] sm:$0xff] %v1070
      %1073 = vrot.lane.b32.xlu0 %v917, 56
      %v1074 = vpop.permute.xlu0 %1073
      %1075 = vrot.lane.b32.xlu0 %v918, 56
      %v1076 = vpop.permute.xlu0 %1075
      %v1077 = vsel %vm383, %v1074, %v1076
      %v1078 = vsel %vm383, %v1076, %v1074
      %v1079 = vld [vmem:[%s386] ss:$8 sm:$0x3]
      %v1081 = vlaneseq
      %v1082 = vshrl.u32 %v1081, 7
      %v1083 = vsub.s32 0, %v1082
      %v1084 = vrot.slane %v1079, %v1083
      %v1085 = vlaneseq
      %v1086 = vshrl.u32 %v1085, 7
      %v1087 = vsub.s32 1, %v1086
      %v1088 = vrot.slane %v1079, %v1087
      %v1091 = vmul.f32 %v1078, %v1084
      %v1092 = vmul.f32 %v1077, %v1088
      %1093 = vst [vmem:[#allocation2 + $0x70] sm:$0xff] %v1091
      %1094 = vst [vmem:[#allocation2 + $0x78] sm:$0xff] %v1092
      %1095 = vrot.lane.b32.xlu0 %v917, 55
      %v1096 = vpop.permute.xlu0 %1095
      %1097 = vrot.lane.b32.xlu0 %v918, 55
      %v1098 = vpop.permute.xlu0 %1097
      %v1099 = vsel %vm407, %v1096, %v1098
      %v1100 = vsel %vm407, %v1098, %v1096
      %v1101 = vld [vmem:[%s410] ss:$8 sm:$0x3]
      %v1103 = vlaneseq
      %v1104 = vshrl.u32 %v1103, 7
      %v1105 = vsub.s32 0, %v1104
      %v1106 = vrot.slane %v1101, %v1105
      %v1107 = vlaneseq
      %v1108 = vshrl.u32 %v1107, 7
      %v1109 = vsub.s32 1, %v1108
      %v1110 = vrot.slane %v1101, %v1109
      %v1113 = vmul.f32 %v1100, %v1106
      %v1114 = vmul.f32 %v1099, %v1110
      %1115 = vst [vmem:[#allocation2 + $0x80] sm:$0xff] %v1113
      %1116 = vst [vmem:[#allocation2 + $0x88] sm:$0xff] %v1114
      %1117 = vrot.lane.b32.xlu0 %v917, 9
      %v1118 = vpop.permute.xlu0 %1117
      %1119 = vrot.lane.b32.xlu0 %v918, 9
      %v1120 = vpop.permute.xlu0 %1119
      %v1121 = vsel %vm431, %v1118, %v1120
      %v1122 = vsel %vm431, %v1120, %v1118
      %v1123 = vld [vmem:[%s434] ss:$8 sm:$0x3]
      %v1125 = vlaneseq
      %v1126 = vshrl.u32 %v1125, 7
      %v1127 = vsub.s32 0, %v1126
      %v1128 = vrot.slane %v1123, %v1127
      %v1129 = vlaneseq
      %v1130 = vshrl.u32 %v1129, 7
      %v1131 = vsub.s32 1, %v1130
      %v1132 = vrot.slane %v1123, %v1131
      %v1135 = vmul.f32 %v1122, %v1128
      %v1136 = vmul.f32 %v1121, %v1132
      %1137 = vst [vmem:[#allocation2 + $0x90] sm:$0xff] %v1135
      %1138 = vst [vmem:[#allocation2 + $0x98] sm:$0xff] %v1136
      %1139 = vrot.lane.b32.xlu0 %v917, 8
      %v1140 = vpop.permute.xlu0 %1139
      %1141 = vrot.lane.b32.xlu0 %v918, 8
      %v1142 = vpop.permute.xlu0 %1141
      %v1143 = vsel %vm455, %v1140, %v1142
      %v1144 = vsel %vm455, %v1142, %v1140
      %v1145 = vld [vmem:[%s458] ss:$8 sm:$0x3]
      %v1147 = vlaneseq
      %v1148 = vshrl.u32 %v1147, 7
      %v1149 = vsub.s32 0, %v1148
      %v1150 = vrot.slane %v1145, %v1149
      %v1151 = vlaneseq
      %v1152 = vshrl.u32 %v1151, 7
      %v1153 = vsub.s32 1, %v1152
      %v1154 = vrot.slane %v1145, %v1153
      %v1157 = vmul.f32 %v1144, %v1150
      %v1158 = vmul.f32 %v1143, %v1154
      %1159 = vst [vmem:[#allocation2 + $0xa0] sm:$0xff] %v1157
      %1160 = vst [vmem:[#allocation2 + $0xa8] sm:$0xff] %v1158
      %1161 = vrot.lane.b32.xlu0 %v917, 7
      %v1162 = vpop.permute.xlu0 %1161
      %1163 = vrot.lane.b32.xlu0 %v918, 7
      %v1164 = vpop.permute.xlu0 %1163
      %v1165 = vsel %vm479, %v1162, %v1164
      %v1166 = vsel %vm479, %v1164, %v1162
      %v1167 = vld [vmem:[%s482] ss:$8 sm:$0x3]
      %v1169 = vlaneseq
      %v1170 = vshrl.u32 %v1169, 7
      %v1171 = vsub.s32 0, %v1170
      %v1172 = vrot.slane %v1167, %v1171
      %v1173 = vlaneseq
      %v1174 = vshrl.u32 %v1173, 7
      %v1175 = vsub.s32 1, %v1174
      %v1176 = vrot.slane %v1167, %v1175
      %v1179 = vmul.f32 %v1166, %v1172
      %v1180 = vmul.f32 %v1165, %v1176
      %1181 = vst [vmem:[#allocation2 + $0xb0] sm:$0xff] %v1179
      %1182 = vst [vmem:[#allocation2 + $0xb8] sm:$0xff] %v1180
      %1183 = vrot.lane.b32.xlu0 %v917, 1
      %v1184 = vpop.permute.xlu0 %1183
      %1185 = vrot.lane.b32.xlu0 %v918, 1
      %v1186 = vpop.permute.xlu0 %1185
      %v1187 = vsel %vm503, %v1184, %v1186
      %v1188 = vsel %vm503, %v1186, %v1184
      %v1189 = vld [vmem:[%s506] ss:$8 sm:$0x3]
      %v1191 = vlaneseq
      %v1192 = vshrl.u32 %v1191, 7
      %v1193 = vsub.s32 0, %v1192
      %v1194 = vrot.slane %v1189, %v1193
      %v1195 = vlaneseq
      %v1196 = vshrl.u32 %v1195, 7
      %v1197 = vsub.s32 1, %v1196
      %v1198 = vrot.slane %v1189, %v1197
      %v1201 = vmul.f32 %v1188, %v1194
      %v1202 = vmul.f32 %v1187, %v1198
      %1203 = vst [vmem:[#allocation2 + $0xc0] sm:$0xff] %v1201
      %1204 = vst [vmem:[#allocation2 + $0xc8] sm:$0xff] %v1202
      %1205 = vst [vmem:[#allocation2 + $0xd0] sm:$0xff] %v917
      %1206 = vst [vmem:[#allocation2 + $0xd8] sm:$0xff] %v918
      %1207 = vrot.lane.b32.xlu0 %v917, 127
      %v1208 = vpop.permute.xlu0 %1207
      %1209 = vrot.lane.b32.xlu0 %v918, 127
      %v1210 = vpop.permute.xlu0 %1209
      %v1211 = vsel %vm529, %v1208, %v1210
      %v1212 = vsel %vm529, %v1210, %v1208
      %v1213 = vld [vmem:[%s532] ss:$8 sm:$0x3]
      %v1215 = vlaneseq
      %v1216 = vshrl.u32 %v1215, 7
      %v1217 = vsub.s32 0, %v1216
      %v1218 = vrot.slane %v1213, %v1217
      %v1219 = vlaneseq
      %v1220 = vshrl.u32 %v1219, 7
      %v1221 = vsub.s32 1, %v1220
      %v1222 = vrot.slane %v1213, %v1221
      %v1225 = vmul.f32 %v1211, %v1218
      %v1226 = vmul.f32 %v1212, %v1222
      %1227 = vst [vmem:[#allocation2 + $0xe0] sm:$0xff] %v1225
      %1228 = vst [vmem:[#allocation2 + $0xe8] sm:$0xff] %v1226
      %1229 = vrot.lane.b32.xlu0 %v917, 121
      %v1230 = vpop.permute.xlu0 %1229
      %1231 = vrot.lane.b32.xlu0 %v918, 121
      %v1232 = vpop.permute.xlu0 %1231
      %v1233 = vsel %vm553, %v1230, %v1232
      %v1234 = vsel %vm553, %v1232, %v1230
      %v1235 = vld [vmem:[%s556] ss:$8 sm:$0x3]
      %v1237 = vlaneseq
      %v1238 = vshrl.u32 %v1237, 7
      %v1239 = vsub.s32 0, %v1238
      %v1240 = vrot.slane %v1235, %v1239
      %v1241 = vlaneseq
      %v1242 = vshrl.u32 %v1241, 7
      %v1243 = vsub.s32 1, %v1242
      %v1244 = vrot.slane %v1235, %v1243
      %v1247 = vmul.f32 %v1233, %v1240
      %v1248 = vmul.f32 %v1234, %v1244
      %1249 = vst [vmem:[#allocation2 + $0xf0] sm:$0xff] %v1247
      %1250 = vst [vmem:[#allocation2 + $0xf8] sm:$0xff] %v1248
      %1251 = vrot.lane.b32.xlu0 %v917, 120
      %v1252 = vpop.permute.xlu0 %1251
      %1253 = vrot.lane.b32.xlu0 %v918, 120
      %v1254 = vpop.permute.xlu0 %1253
      %v1255 = vsel %vm577, %v1252, %v1254
      %v1256 = vsel %vm577, %v1254, %v1252
      %v1257 = vld [vmem:[%s580] ss:$8 sm:$0x3]
      %v1259 = vlaneseq
      %v1260 = vshrl.u32 %v1259, 7
      %v1261 = vsub.s32 0, %v1260
      %v1262 = vrot.slane %v1257, %v1261
      %v1263 = vlaneseq
      %v1264 = vshrl.u32 %v1263, 7
      %v1265 = vsub.s32 1, %v1264
      %v1266 = vrot.slane %v1257, %v1265
      %v1269 = vmul.f32 %v1255, %v1262
      %v1270 = vmul.f32 %v1256, %v1266
      %1271 = vst [vmem:[#allocation2 + $0x100] sm:$0xff] %v1269
      %1272 = vst [vmem:[#allocation2 + $0x108] sm:$0xff] %v1270
      %1273 = vrot.lane.b32.xlu0 %v917, 119
      %v1274 = vpop.permute.xlu0 %1273
      %1275 = vrot.lane.b32.xlu0 %v918, 119
      %v1276 = vpop.permute.xlu0 %1275
      %v1277 = vsel %vm601, %v1274, %v1276
      %v1278 = vsel %vm601, %v1276, %v1274
      %v1279 = vld [vmem:[%s604] ss:$8 sm:$0x3]
      %v1281 = vlaneseq
      %v1282 = vshrl.u32 %v1281, 7
      %v1283 = vsub.s32 0, %v1282
      %v1284 = vrot.slane %v1279, %v1283
      %v1285 = vlaneseq
      %v1286 = vshrl.u32 %v1285, 7
      %v1287 = vsub.s32 1, %v1286
      %v1288 = vrot.slane %v1279, %v1287
      %v1291 = vmul.f32 %v1277, %v1284
      %v1292 = vmul.f32 %v1278, %v1288
      %1293 = vst [vmem:[#allocation2 + $0x110] sm:$0xff] %v1291
      %1294 = vst [vmem:[#allocation2 + $0x118] sm:$0xff] %v1292
      %v1295 = vld [vmem:[%s621] ss:$8 sm:$0x3]
      %v1297 = vlaneseq
      %v1298 = vshrl.u32 %v1297, 7
      %v1299 = vsub.s32 0, %v1298
      %v1300 = vrot.slane %v1295, %v1299
      %v1301 = vlaneseq
      %v1302 = vshrl.u32 %v1301, 7
      %v1303 = vsub.s32 1, %v1302
      %v1304 = vrot.slane %v1295, %v1303
      %v1307 = vmul.f32 %v923, %v1300
      %v1308 = vmul.f32 %v924, %v1304
      %1309 = vst [vmem:[#allocation2 + $0x120] sm:$0xff] %v1307
      %1310 = vst [vmem:[#allocation2 + $0x128] sm:$0xff] %v1308
      %v1311 = vld [vmem:[%s638] ss:$8 sm:$0x3]
      %v1313 = vlaneseq
      %v1314 = vshrl.u32 %v1313, 7
      %v1315 = vsub.s32 0, %v1314
      %v1316 = vrot.slane %v1311, %v1315
      %v1317 = vlaneseq
      %v1318 = vshrl.u32 %v1317, 7
      %v1319 = vsub.s32 1, %v1318
      %v1320 = vrot.slane %v1311, %v1319
      %v1323 = vmul.f32 %v945, %v1316
      %v1324 = vmul.f32 %v946, %v1320
      %1325 = vst [vmem:[#allocation2 + $0x130] sm:$0xff] %v1323
      %1326 = vst [vmem:[#allocation2 + $0x138] sm:$0xff] %v1324
      %v1327 = vld [vmem:[%s655] ss:$8 sm:$0x3]
      %v1329 = vlaneseq
      %v1330 = vshrl.u32 %v1329, 7
      %v1331 = vsub.s32 0, %v1330
      %v1332 = vrot.slane %v1327, %v1331
      %v1333 = vlaneseq
      %v1334 = vshrl.u32 %v1333, 7
      %v1335 = vsub.s32 1, %v1334
      %v1336 = vrot.slane %v1327, %v1335
      %v1339 = vmul.f32 %v967, %v1332
      %v1340 = vmul.f32 %v968, %v1336
      %1341 = vst [vmem:[#allocation2 + $0x140] sm:$0xff] %v1339
      %1342 = vst [vmem:[#allocation2 + $0x148] sm:$0xff] %v1340
      %v1343 = vld [vmem:[%s672] ss:$8 sm:$0x3]
      %v1345 = vlaneseq
      %v1346 = vshrl.u32 %v1345, 7
      %v1347 = vsub.s32 0, %v1346
      %v1348 = vrot.slane %v1343, %v1347
      %v1349 = vlaneseq
      %v1350 = vshrl.u32 %v1349, 7
      %v1351 = vsub.s32 1, %v1350
      %v1352 = vrot.slane %v1343, %v1351
      %v1355 = vmul.f32 %v989, %v1348
      %v1356 = vmul.f32 %v990, %v1352
      %1357 = vst [vmem:[#allocation2 + $0x150] sm:$0xff] %v1355
      %1358 = vst [vmem:[#allocation2 + $0x158] sm:$0xff] %v1356
      %v1359 = vld [vmem:[%s689] ss:$8 sm:$0x3]
      %v1361 = vlaneseq
      %v1362 = vshrl.u32 %v1361, 7
      %v1363 = vsub.s32 0, %v1362
      %v1364 = vrot.slane %v1359, %v1363
      %v1365 = vlaneseq
      %v1366 = vshrl.u32 %v1365, 7
      %v1367 = vsub.s32 1, %v1366
      %v1368 = vrot.slane %v1359, %v1367
      %v1371 = vmul.f32 %v1011, %v1364
      %v1372 = vmul.f32 %v1012, %v1368
      %1373 = vst [vmem:[#allocation2 + $0x160] sm:$0xff] %v1371
      %1374 = vst [vmem:[#allocation2 + $0x168] sm:$0xff] %v1372
      %v1375 = vld [vmem:[%s706] ss:$8 sm:$0x3]
      %v1377 = vlaneseq
      %v1378 = vshrl.u32 %v1377, 7
      %v1379 = vsub.s32 0, %v1378
      %v1380 = vrot.slane %v1375, %v1379
      %v1381 = vlaneseq
      %v1382 = vshrl.u32 %v1381, 7
      %v1383 = vsub.s32 1, %v1382
      %v1384 = vrot.slane %v1375, %v1383
      %v1387 = vmul.f32 %v1033, %v1380
      %v1388 = vmul.f32 %v1034, %v1384
      %1389 = vst [vmem:[#allocation2 + $0x170] sm:$0xff] %v1387
      %1390 = vst [vmem:[#allocation2 + $0x178] sm:$0xff] %v1388
      %v1391 = vld [vmem:[%s723] ss:$8 sm:$0x3]
      %v1393 = vlaneseq
      %v1394 = vshrl.u32 %v1393, 7
      %v1395 = vsub.s32 0, %v1394
      %v1396 = vrot.slane %v1391, %v1395
      %v1397 = vlaneseq
      %v1398 = vshrl.u32 %v1397, 7
      %v1399 = vsub.s32 1, %v1398
      %v1400 = vrot.slane %v1391, %v1399
      %v1403 = vmul.f32 %v1055, %v1396
      %v1404 = vmul.f32 %v1056, %v1400
      %1405 = vst [vmem:[#allocation2 + $0x180] sm:$0xff] %v1403
      %1406 = vst [vmem:[#allocation2 + $0x188] sm:$0xff] %v1404
      %v1407 = vld [vmem:[%s740] ss:$8 sm:$0x3]
      %v1409 = vlaneseq
      %v1410 = vshrl.u32 %v1409, 7
      %v1411 = vsub.s32 0, %v1410
      %v1412 = vrot.slane %v1407, %v1411
      %v1413 = vlaneseq
      %v1414 = vshrl.u32 %v1413, 7
      %v1415 = vsub.s32 1, %v1414
      %v1416 = vrot.slane %v1407, %v1415
      %v1419 = vmul.f32 %v1077, %v1412
      %v1420 = vmul.f32 %v1078, %v1416
      %1421 = vst [vmem:[#allocation2 + $0x190] sm:$0xff] %v1419
      %1422 = vst [vmem:[#allocation2 + $0x198] sm:$0xff] %v1420
      %v1423 = vld [vmem:[%s757] ss:$8 sm:$0x3]
      %v1425 = vlaneseq
      %v1426 = vshrl.u32 %v1425, 7
      %v1427 = vsub.s32 0, %v1426
      %v1428 = vrot.slane %v1423, %v1427
      %v1429 = vlaneseq
      %v1430 = vshrl.u32 %v1429, 7
      %v1431 = vsub.s32 1, %v1430
      %v1432 = vrot.slane %v1423, %v1431
      %v1435 = vmul.f32 %v1099, %v1428
      %v1436 = vmul.f32 %v1100, %v1432
      %1437 = vst [vmem:[#allocation2 + $0x1a0] sm:$0xff] %v1435
      %1438 = vst [vmem:[#allocation2 + $0x1a8] sm:$0xff] %v1436
      %s1439 = scalar_lea.vmem %s2, 16
      %v1440 = vld [vmem:[%s1439] sm:$0xff]
      %v1441 = vld [vmem:[%s1439 + $0x8] sm:$0xff]
      %v1442 = vld [vmem:[#allocation2] sm:$0xff]
      %v1443 = vld [vmem:[#allocation2 + $0x8] sm:$0xff]
      %v1444 = vld [vmem:[#allocation2 + $0x10] sm:$0xff]
      %v1445 = vld [vmem:[#allocation2 + $0x18] sm:$0xff]
      %v1446 = vld [vmem:[#allocation2 + $0x20] sm:$0xff]
      %v1447 = vld [vmem:[#allocation2 + $0x28] sm:$0xff]
      %v1448 = vld [vmem:[#allocation2 + $0x30] sm:$0xff]
      %v1449 = vld [vmem:[#allocation2 + $0x38] sm:$0xff]
      %v1450 = vld [vmem:[#allocation2 + $0x40] sm:$0xff]
      %v1451 = vld [vmem:[#allocation2 + $0x48] sm:$0xff]
      %v1452 = vld [vmem:[#allocation2 + $0x50] sm:$0xff]
      %v1453 = vld [vmem:[#allocation2 + $0x58] sm:$0xff]
      %v1454 = vld [vmem:[#allocation2 + $0x60] sm:$0xff]
      %v1455 = vld [vmem:[#allocation2 + $0x68] sm:$0xff]
      %v1456 = vld [vmem:[#allocation2 + $0x70] sm:$0xff]
      %v1457 = vld [vmem:[#allocation2 + $0x78] sm:$0xff]
      %v1458 = vld [vmem:[#allocation2 + $0x80] sm:$0xff]
      %v1459 = vld [vmem:[#allocation2 + $0x88] sm:$0xff]
      %v1460 = vld [vmem:[#allocation2 + $0x90] sm:$0xff]
      %v1461 = vld [vmem:[#allocation2 + $0x98] sm:$0xff]
      %v1462 = vld [vmem:[#allocation2 + $0xa0] sm:$0xff]
      %v1463 = vld [vmem:[#allocation2 + $0xa8] sm:$0xff]
      %v1464 = vld [vmem:[#allocation2 + $0xb0] sm:$0xff]
      %v1465 = vld [vmem:[#allocation2 + $0xb8] sm:$0xff]
      %v1466 = vld [vmem:[#allocation2 + $0xc0] sm:$0xff]
      %v1467 = vld [vmem:[#allocation2 + $0xc8] sm:$0xff]
      %v1468 = vld [vmem:[#allocation2 + $0xd0] sm:$0xff]
      %v1469 = vld [vmem:[#allocation2 + $0xd8] sm:$0xff]
      %v1470 = vld [vmem:[#allocation2 + $0xe0] sm:$0xff]
      %v1471 = vld [vmem:[#allocation2 + $0xe8] sm:$0xff]
      %v1472 = vld [vmem:[#allocation2 + $0xf0] sm:$0xff]
      %v1473 = vld [vmem:[#allocation2 + $0xf8] sm:$0xff]
      %v1474 = vld [vmem:[#allocation2 + $0x100] sm:$0xff]
      %v1475 = vld [vmem:[#allocation2 + $0x108] sm:$0xff]
      %v1476 = vld [vmem:[#allocation2 + $0x110] sm:$0xff]
      %v1477 = vld [vmem:[#allocation2 + $0x118] sm:$0xff]
      %v1478 = vld [vmem:[#allocation2 + $0x120] sm:$0xff]
      %v1479 = vld [vmem:[#allocation2 + $0x128] sm:$0xff]
      %v1480 = vld [vmem:[#allocation2 + $0x130] sm:$0xff]
      %v1481 = vld [vmem:[#allocation2 + $0x138] sm:$0xff]
      %v1482 = vld [vmem:[#allocation2 + $0x140] sm:$0xff]
      %v1483 = vld [vmem:[#allocation2 + $0x148] sm:$0xff]
      %v1484 = vld [vmem:[#allocation2 + $0x150] sm:$0xff]
      %v1485 = vld [vmem:[#allocation2 + $0x158] sm:$0xff]
      %v1486 = vld [vmem:[#allocation2 + $0x160] sm:$0xff]
      %v1487 = vld [vmem:[#allocation2 + $0x168] sm:$0xff]
      %v1488 = vld [vmem:[#allocation2 + $0x170] sm:$0xff]
      %v1489 = vld [vmem:[#allocation2 + $0x178] sm:$0xff]
      %v1490 = vld [vmem:[#allocation2 + $0x180] sm:$0xff]
      %v1491 = vld [vmem:[#allocation2 + $0x188] sm:$0xff]
      %v1492 = vld [vmem:[#allocation2 + $0x190] sm:$0xff]
      %v1493 = vld [vmem:[#allocation2 + $0x198] sm:$0xff]
      %v1494 = vld [vmem:[#allocation2 + $0x1a0] sm:$0xff]
      %v1495 = vld [vmem:[#allocation2 + $0x1a8] sm:$0xff]
      %v1496 = vld [vmem:[#allocation2 + $0x1b0] sm:$0xff]
      %v1497 = vld [vmem:[#allocation2 + $0x1b8] sm:$0xff]
      %v1498 = vld [vmem:[#allocation2 + $0x1c0] sm:$0xff]
      %v1499 = vld [vmem:[#allocation2 + $0x1c8] sm:$0xff]
      %v1500 = vld [vmem:[#allocation2 + $0x1d0] sm:$0xff]
      %v1501 = vld [vmem:[#allocation2 + $0x1d8] sm:$0xff]
      %v1502 = vld [vmem:[#allocation2 + $0x1e0] sm:$0xff]
      %v1503 = vld [vmem:[#allocation2 + $0x1e8] sm:$0xff]
      %v1504 = vld [vmem:[#allocation2 + $0x1f0] sm:$0xff]
      %v1505 = vld [vmem:[#allocation2 + $0x1f8] sm:$0xff]
      %s1506 = scalar_lea.vmem %s3, 8
      %v1507 = vld [vmem:[%s1506] sm:$0xff]
      %1509 = vset.pattern.permute.xlu0 0
      %1510 = vperm.xlu0 %1509, %v1507
      %v1511 = vpop.permute.xlu0 %1510
      %1513 = vmatprep.subr.mxu0 %v1473
      %1514 = vmatpush1.msra.mxu0 %v1472
      %1515 = vmatprep.subr.mxu0 %v1471
      %1516 = vmatpush1.msra.mxu0 %v1470
      %1517 = vmatprep.subr.mxu0 %v1469
      %1518 = vmatpush1.msra.mxu0 %v1468
      %1519 = vmatprep.subr.mxu0 %v1467
      %1520 = vmatpush1.msra.mxu0 %v1466
      %1521 = vmatprep.subr.mxu0 %v1465
      %1522 = vmatpush1.msra.mxu0 %v1464
      %1523 = vmatprep.subr.mxu0 %v1463
      %1524 = vmatpush1.msra.mxu0 %v1462
      %1525 = vmatprep.subr.mxu0 %v1461
      %1526 = vmatpush1.msra.mxu0 %v1460
      %1527 = vmatprep.subr.mxu0 %v1459
      %1528 = vmatpush1.msra.mxu0 %v1458
      %1529 = vmatprep.subr.mxu0 %v1457
      %1530 = vmatpush1.msra.mxu0 %v1456
      %1531 = vmatprep.subr.mxu0 %v1455
      %1532 = vmatpush1.msra.mxu0 %v1454
      %1533 = vmatprep.subr.mxu0 %v1453
      %1534 = vmatpush1.msra.mxu0 %v1452
      %1535 = vmatprep.subr.mxu0 %v1451
      %1536 = vmatpush1.msra.mxu0 %v1450
      %1537 = vmatprep.subr.mxu0 %v1449
      %1538 = vmatpush1.msra.mxu0 %v1448
      %1539 = vmatprep.subr.mxu0 %v1447
      %1540 = vmatpush1.msra.mxu0 %v1446
      %1541 = vmatprep.subr.mxu0 %v1445
      %1542 = vmatpush1.msra.mxu0 %v1444
      %1543 = vmatprep.subr.mxu0 %v1443
      %1544 = vmatpush1.msra.mxu0 %v1442
      %1545 = vmatprep.subr.mxu0 %v1505
      %1546 = vmatpush2.msra.mxu0 %v1504
      %1547 = vmatprep.subr.mxu0 %v1503
      %1548 = vmatpush2.msra.mxu0 %v1502
      %1549 = vmatprep.subr.mxu0 %v1501
      %1550 = vmatpush2.msra.mxu0 %v1500
      %1551 = vmatprep.subr.mxu0 %v1499
      %1552 = vmatpush2.msra.mxu0 %v1498
      %1553 = vmatprep.subr.mxu0 %v1497
      %1554 = vmatpush2.msra.mxu0 %v1496
      %1555 = vmatprep.subr.mxu0 %v1495
      %1556 = vmatpush2.msra.mxu0 %v1494
      %1557 = vmatprep.subr.mxu0 %v1493
      %1558 = vmatpush2.msra.mxu0 %v1492
      %1559 = vmatprep.subr.mxu0 %v1491
      %1560 = vmatpush2.msra.mxu0 %v1490
      %1561 = vmatprep.subr.mxu0 %v1489
      %1562 = vmatpush2.msra.mxu0 %v1488
      %1563 = vmatprep.subr.mxu0 %v1487
      %1564 = vmatpush2.msra.mxu0 %v1486
      %1565 = vmatprep.subr.mxu0 %v1485
      %1566 = vmatpush2.msra.mxu0 %v1484
      %1567 = vmatprep.subr.mxu0 %v1483
      %1568 = vmatpush2.msra.mxu0 %v1482
      %1569 = vmatprep.subr.mxu0 %v1481
      %1570 = vmatpush2.msra.mxu0 %v1480
      %1571 = vmatprep.subr.mxu0 %v1479
      %1572 = vmatpush2.msra.mxu0 %v1478
      %1573 = vmatprep.subr.mxu0 %v1477
      %1574 = vmatpush2.msra.mxu0 %v1476
      %1575 = vmatprep.subr.mxu0 %v1475
      %1576 = vmatpush2.msra.mxu0 %v1474
      %1577 = vmatprep.mubr.f32.mxu0 %v1441
      %1578 = vmatmul.mubr.f32.gmra.mxu0 %v1440
      %v1579 = vpop.f32.mrf.mxu0
      %v1580 = vadd.f32 %v1511, %v1579
      %v1581 = vpop.f32.mrf.mxu0
      %v1582 = vadd.f32 %v1511, %v1581
      %1583 = vdwg.mxu0
      %v1584 = vmax.f32 %v1580, 0.0
      %v1585 = vmax.f32 %v1582, 0.0
      %1586 = vrot.lane.b32.xlu0 %v1584, 73
      %v1587 = vpop.permute.xlu0 %1586
      %1588 = vrot.lane.b32.xlu0 %v1585, 73
      %v1589 = vpop.permute.xlu0 %1588
      %v1590 = vsel %vm216, %v1587, %v1589
      %v1591 = vsel %vm216, %v1589, %v1587
      %v1592 = vld [vmem:[%s0] ss:$8 sm:$0x3]
      %v1594 = vlaneseq
      %v1595 = vshrl.u32 %v1594, 7
      %v1596 = vsub.s32 0, %v1595
      %v1597 = vrot.slane %v1592, %v1596
      %v1598 = vlaneseq
      %v1599 = vshrl.u32 %v1598, 7
      %v1600 = vsub.s32 1, %v1599
      %v1601 = vrot.slane %v1592, %v1600
      %v1604 = vmul.f32 %v1591, %v1597
      %v1605 = vmul.f32 %v1590, %v1601
      %1606 = vst [vmem:[#allocation2] sm:$0xff] %v1604
      %1607 = vst [vmem:[#allocation2 + $0x8] sm:$0xff] %v1605
      %1608 = vrot.lane.b32.xlu0 %v1584, 72
      %v1609 = vpop.permute.xlu0 %1608
      %1610 = vrot.lane.b32.xlu0 %v1585, 72
      %v1611 = vpop.permute.xlu0 %1610
      %v1612 = vsel %vm239, %v1609, %v1611
      %v1613 = vsel %vm239, %v1611, %v1609
      %v1614 = vld [vmem:[%s242] ss:$8 sm:$0x3]
      %v1616 = vlaneseq
      %v1617 = vshrl.u32 %v1616, 7
      %v1618 = vsub.s32 0, %v1617
      %v1619 = vrot.slane %v1614, %v1618
      %v1620 = vlaneseq
      %v1621 = vshrl.u32 %v1620, 7
      %v1622 = vsub.s32 1, %v1621
      %v1623 = vrot.slane %v1614, %v1622
      %v1626 = vmul.f32 %v1613, %v1619
      %v1627 = vmul.f32 %v1612, %v1623
      %1628 = vst [vmem:[#allocation2 + $0x10] sm:$0xff] %v1626
      %1629 = vst [vmem:[#allocation2 + $0x18] sm:$0xff] %v1627
      %1630 = vrot.lane.b32.xlu0 %v1584, 71
      %v1631 = vpop.permute.xlu0 %1630
      %1632 = vrot.lane.b32.xlu0 %v1585, 71
      %v1633 = vpop.permute.xlu0 %1632
      %v1634 = vsel %vm263, %v1631, %v1633
      %v1635 = vsel %vm263, %v1633, %v1631
      %v1636 = vld [vmem:[%s266] ss:$8 sm:$0x3]
      %v1638 = vlaneseq
      %v1639 = vshrl.u32 %v1638, 7
      %v1640 = vsub.s32 0, %v1639
      %v1641 = vrot.slane %v1636, %v1640
      %v1642 = vlaneseq
      %v1643 = vshrl.u32 %v1642, 7
      %v1644 = vsub.s32 1, %v1643
      %v1645 = vrot.slane %v1636, %v1644
      %v1648 = vmul.f32 %v1635, %v1641
      %v1649 = vmul.f32 %v1634, %v1645
      %1650 = vst [vmem:[#allocation2 + $0x20] sm:$0xff] %v1648
      %1651 = vst [vmem:[#allocation2 + $0x28] sm:$0xff] %v1649
      %1652 = vrot.lane.b32.xlu0 %v1584, 65
      %v1653 = vpop.permute.xlu0 %1652
      %1654 = vrot.lane.b32.xlu0 %v1585, 65
      %v1655 = vpop.permute.xlu0 %1654
      %v1656 = vsel %vm287, %v1653, %v1655
      %v1657 = vsel %vm287, %v1655, %v1653
      %v1658 = vld [vmem:[%s290] ss:$8 sm:$0x3]
      %v1660 = vlaneseq
      %v1661 = vshrl.u32 %v1660, 7
      %v1662 = vsub.s32 0, %v1661
      %v1663 = vrot.slane %v1658, %v1662
      %v1664 = vlaneseq
      %v1665 = vshrl.u32 %v1664, 7
      %v1666 = vsub.s32 1, %v1665
      %v1667 = vrot.slane %v1658, %v1666
      %v1670 = vmul.f32 %v1657, %v1663
      %v1671 = vmul.f32 %v1656, %v1667
      %1672 = vst [vmem:[#allocation2 + $0x30] sm:$0xff] %v1670
      %1673 = vst [vmem:[#allocation2 + $0x38] sm:$0xff] %v1671
      %1674 = vrot.lane.b32.xlu0 %v1584, 64
      %v1675 = vpop.permute.xlu0 %1674
      %1676 = vrot.lane.b32.xlu0 %v1585, 64
      %v1677 = vpop.permute.xlu0 %1676
      %v1678 = vsel %vm311, %v1675, %v1677
      %v1679 = vsel %vm311, %v1677, %v1675
      %v1680 = vld [vmem:[%s314] ss:$8 sm:$0x3]
      %v1682 = vlaneseq
      %v1683 = vshrl.u32 %v1682, 7
      %v1684 = vsub.s32 0, %v1683
      %v1685 = vrot.slane %v1680, %v1684
      %v1686 = vlaneseq
      %v1687 = vshrl.u32 %v1686, 7
      %v1688 = vsub.s32 1, %v1687
      %v1689 = vrot.slane %v1680, %v1688
      %v1692 = vmul.f32 %v1679, %v1685
      %v1693 = vmul.f32 %v1678, %v1689
      %1694 = vst [vmem:[#allocation2 + $0x40] sm:$0xff] %v1692
      %1695 = vst [vmem:[#allocation2 + $0x48] sm:$0xff] %v1693
      %1696 = vrot.lane.b32.xlu0 %v1584, 63
      %v1697 = vpop.permute.xlu0 %1696
      %1698 = vrot.lane.b32.xlu0 %v1585, 63
      %v1699 = vpop.permute.xlu0 %1698
      %v1700 = vsel %vm335, %v1697, %v1699
      %v1701 = vsel %vm335, %v1699, %v1697
      %v1702 = vld [vmem:[%s338] ss:$8 sm:$0x3]
      %v1704 = vlaneseq
      %v1705 = vshrl.u32 %v1704, 7
      %v1706 = vsub.s32 0, %v1705
      %v1707 = vrot.slane %v1702, %v1706
      %v1708 = vlaneseq
      %v1709 = vshrl.u32 %v1708, 7
      %v1710 = vsub.s32 1, %v1709
      %v1711 = vrot.slane %v1702, %v1710
      %v1714 = vmul.f32 %v1701, %v1707
      %v1715 = vmul.f32 %v1700, %v1711
      %1716 = vst [vmem:[#allocation2 + $0x50] sm:$0xff] %v1714
      %1717 = vst [vmem:[#allocation2 + $0x58] sm:$0xff] %v1715
      %1718 = vrot.lane.b32.xlu0 %v1584, 57
      %v1719 = vpop.permute.xlu0 %1718
      %1720 = vrot.lane.b32.xlu0 %v1585, 57
      %v1721 = vpop.permute.xlu0 %1720
      %v1722 = vsel %vm359, %v1719, %v1721
      %v1723 = vsel %vm359, %v1721, %v1719
      %v1724 = vld [vmem:[%s362] ss:$8 sm:$0x3]
      %v1726 = vlaneseq
      %v1727 = vshrl.u32 %v1726, 7
      %v1728 = vsub.s32 0, %v1727
      %v1729 = vrot.slane %v1724, %v1728
      %v1730 = vlaneseq
      %v1731 = vshrl.u32 %v1730, 7
      %v1732 = vsub.s32 1, %v1731
      %v1733 = vrot.slane %v1724, %v1732
      %v1736 = vmul.f32 %v1723, %v1729
      %v1737 = vmul.f32 %v1722, %v1733
      %1738 = vst [vmem:[#allocation2 + $0x60] sm:$0xff] %v1736
      %1739 = vst [vmem:[#allocation2 + $0x68] sm:$0xff] %v1737
      %1740 = vrot.lane.b32.xlu0 %v1584, 56
      %v1741 = vpop.permute.xlu0 %1740
      %1742 = vrot.lane.b32.xlu0 %v1585, 56
      %v1743 = vpop.permute.xlu0 %1742
      %v1744 = vsel %vm383, %v1741, %v1743
      %v1745 = vsel %vm383, %v1743, %v1741
      %v1746 = vld [vmem:[%s386] ss:$8 sm:$0x3]
      %v1748 = vlaneseq
      %v1749 = vshrl.u32 %v1748, 7
      %v1750 = vsub.s32 0, %v1749
      %v1751 = vrot.slane %v1746, %v1750
      %v1752 = vlaneseq
      %v1753 = vshrl.u32 %v1752, 7
      %v1754 = vsub.s32 1, %v1753
      %v1755 = vrot.slane %v1746, %v1754
      %v1758 = vmul.f32 %v1745, %v1751
      %v1759 = vmul.f32 %v1744, %v1755
      %1760 = vst [vmem:[#allocation2 + $0x70] sm:$0xff] %v1758
      %1761 = vst [vmem:[#allocation2 + $0x78] sm:$0xff] %v1759
      %1762 = vrot.lane.b32.xlu0 %v1584, 55
      %v1763 = vpop.permute.xlu0 %1762
      %1764 = vrot.lane.b32.xlu0 %v1585, 55
      %v1765 = vpop.permute.xlu0 %1764
      %v1766 = vsel %vm407, %v1763, %v1765
      %v1767 = vsel %vm407, %v1765, %v1763
      %v1768 = vld [vmem:[%s410] ss:$8 sm:$0x3]
      %v1770 = vlaneseq
      %v1771 = vshrl.u32 %v1770, 7
      %v1772 = vsub.s32 0, %v1771
      %v1773 = vrot.slane %v1768, %v1772
      %v1774 = vlaneseq
      %v1775 = vshrl.u32 %v1774, 7
      %v1776 = vsub.s32 1, %v1775
      %v1777 = vrot.slane %v1768, %v1776
      %v1780 = vmul.f32 %v1767, %v1773
      %v1781 = vmul.f32 %v1766, %v1777
      %1782 = vst [vmem:[#allocation2 + $0x80] sm:$0xff] %v1780
      %1783 = vst [vmem:[#allocation2 + $0x88] sm:$0xff] %v1781
      %1784 = vrot.lane.b32.xlu0 %v1584, 9
      %v1785 = vpop.permute.xlu0 %1784
      %1786 = vrot.lane.b32.xlu0 %v1585, 9
      %v1787 = vpop.permute.xlu0 %1786
      %v1788 = vsel %vm431, %v1785, %v1787
      %v1789 = vsel %vm431, %v1787, %v1785
      %v1790 = vld [vmem:[%s434] ss:$8 sm:$0x3]
      %v1792 = vlaneseq
      %v1793 = vshrl.u32 %v1792, 7
      %v1794 = vsub.s32 0, %v1793
      %v1795 = vrot.slane %v1790, %v1794
      %v1796 = vlaneseq
      %v1797 = vshrl.u32 %v1796, 7
      %v1798 = vsub.s32 1, %v1797
      %v1799 = vrot.slane %v1790, %v1798
      %v1802 = vmul.f32 %v1789, %v1795
      %v1803 = vmul.f32 %v1788, %v1799
      %1804 = vst [vmem:[#allocation2 + $0x90] sm:$0xff] %v1802
      %1805 = vst [vmem:[#allocation2 + $0x98] sm:$0xff] %v1803
      %1806 = vrot.lane.b32.xlu0 %v1584, 8
      %v1807 = vpop.permute.xlu0 %1806
      %1808 = vrot.lane.b32.xlu0 %v1585, 8
      %v1809 = vpop.permute.xlu0 %1808
      %v1810 = vsel %vm455, %v1807, %v1809
      %v1811 = vsel %vm455, %v1809, %v1807
      %v1812 = vld [vmem:[%s458] ss:$8 sm:$0x3]
      %v1814 = vlaneseq
      %v1815 = vshrl.u32 %v1814, 7
      %v1816 = vsub.s32 0, %v1815
      %v1817 = vrot.slane %v1812, %v1816
      %v1818 = vlaneseq
      %v1819 = vshrl.u32 %v1818, 7
      %v1820 = vsub.s32 1, %v1819
      %v1821 = vrot.slane %v1812, %v1820
      %v1824 = vmul.f32 %v1811, %v1817
      %v1825 = vmul.f32 %v1810, %v1821
      %1826 = vst [vmem:[#allocation2 + $0xa0] sm:$0xff] %v1824
      %1827 = vst [vmem:[#allocation2 + $0xa8] sm:$0xff] %v1825
      %1828 = vrot.lane.b32.xlu0 %v1584, 7
      %v1829 = vpop.permute.xlu0 %1828
      %1830 = vrot.lane.b32.xlu0 %v1585, 7
      %v1831 = vpop.permute.xlu0 %1830
      %v1832 = vsel %vm479, %v1829, %v1831
      %v1833 = vsel %vm479, %v1831, %v1829
      %v1834 = vld [vmem:[%s482] ss:$8 sm:$0x3]
      %v1836 = vlaneseq
      %v1837 = vshrl.u32 %v1836, 7
      %v1838 = vsub.s32 0, %v1837
      %v1839 = vrot.slane %v1834, %v1838
      %v1840 = vlaneseq
      %v1841 = vshrl.u32 %v1840, 7
      %v1842 = vsub.s32 1, %v1841
      %v1843 = vrot.slane %v1834, %v1842
      %v1846 = vmul.f32 %v1833, %v1839
      %v1847 = vmul.f32 %v1832, %v1843
      %1848 = vst [vmem:[#allocation2 + $0xb0] sm:$0xff] %v1846
      %1849 = vst [vmem:[#allocation2 + $0xb8] sm:$0xff] %v1847
      %1850 = vrot.lane.b32.xlu0 %v1584, 1
      %v1851 = vpop.permute.xlu0 %1850
      %1852 = vrot.lane.b32.xlu0 %v1585, 1
      %v1853 = vpop.permute.xlu0 %1852
      %v1854 = vsel %vm503, %v1851, %v1853
      %v1855 = vsel %vm503, %v1853, %v1851
      %v1856 = vld [vmem:[%s506] ss:$8 sm:$0x3]
      %v1858 = vlaneseq
      %v1859 = vshrl.u32 %v1858, 7
      %v1860 = vsub.s32 0, %v1859
      %v1861 = vrot.slane %v1856, %v1860
      %v1862 = vlaneseq
      %v1863 = vshrl.u32 %v1862, 7
      %v1864 = vsub.s32 1, %v1863
      %v1865 = vrot.slane %v1856, %v1864
      %v1868 = vmul.f32 %v1855, %v1861
      %v1869 = vmul.f32 %v1854, %v1865
      %1870 = vst [vmem:[#allocation2 + $0xc0] sm:$0xff] %v1868
      %1871 = vst [vmem:[#allocation2 + $0xc8] sm:$0xff] %v1869
      %1872 = vst [vmem:[#allocation2 + $0xd0] sm:$0xff] %v1584
      %1873 = vst [vmem:[#allocation2 + $0xd8] sm:$0xff] %v1585
      %1874 = vrot.lane.b32.xlu0 %v1584, 127
      %v1875 = vpop.permute.xlu0 %1874
      %1876 = vrot.lane.b32.xlu0 %v1585, 127
      %v1877 = vpop.permute.xlu0 %1876
      %v1878 = vsel %vm529, %v1875, %v1877
      %v1879 = vsel %vm529, %v1877, %v1875
      %v1880 = vld [vmem:[%s532] ss:$8 sm:$0x3]
      %v1882 = vlaneseq
      %v1883 = vshrl.u32 %v1882, 7
      %v1884 = vsub.s32 0, %v1883
      %v1885 = vrot.slane %v1880, %v1884
      %v1886 = vlaneseq
      %v1887 = vshrl.u32 %v1886, 7
      %v1888 = vsub.s32 1, %v1887
      %v1889 = vrot.slane %v1880, %v1888
      %v1892 = vmul.f32 %v1878, %v1885
      %v1893 = vmul.f32 %v1879, %v1889
      %1894 = vst [vmem:[#allocation2 + $0xe0] sm:$0xff] %v1892
      %1895 = vst [vmem:[#allocation2 + $0xe8] sm:$0xff] %v1893
      %1896 = vrot.lane.b32.xlu0 %v1584, 121
      %v1897 = vpop.permute.xlu0 %1896
      %1898 = vrot.lane.b32.xlu0 %v1585, 121
      %v1899 = vpop.permute.xlu0 %1898
      %v1900 = vsel %vm553, %v1897, %v1899
      %v1901 = vsel %vm553, %v1899, %v1897
      %v1902 = vld [vmem:[%s556] ss:$8 sm:$0x3]
      %v1904 = vlaneseq
      %v1905 = vshrl.u32 %v1904, 7
      %v1906 = vsub.s32 0, %v1905
      %v1907 = vrot.slane %v1902, %v1906
      %v1908 = vlaneseq
      %v1909 = vshrl.u32 %v1908, 7
      %v1910 = vsub.s32 1, %v1909
      %v1911 = vrot.slane %v1902, %v1910
      %v1914 = vmul.f32 %v1900, %v1907
      %v1915 = vmul.f32 %v1901, %v1911
      %1916 = vst [vmem:[#allocation2 + $0xf0] sm:$0xff] %v1914
      %1917 = vst [vmem:[#allocation2 + $0xf8] sm:$0xff] %v1915
      %1918 = vrot.lane.b32.xlu0 %v1584, 120
      %v1919 = vpop.permute.xlu0 %1918
      %1920 = vrot.lane.b32.xlu0 %v1585, 120
      %v1921 = vpop.permute.xlu0 %1920
      %v1922 = vsel %vm577, %v1919, %v1921
      %v1923 = vsel %vm577, %v1921, %v1919
      %v1924 = vld [vmem:[%s580] ss:$8 sm:$0x3]
      %v1926 = vlaneseq
      %v1927 = vshrl.u32 %v1926, 7
      %v1928 = vsub.s32 0, %v1927
      %v1929 = vrot.slane %v1924, %v1928
      %v1930 = vlaneseq
      %v1931 = vshrl.u32 %v1930, 7
      %v1932 = vsub.s32 1, %v1931
      %v1933 = vrot.slane %v1924, %v1932
      %v1936 = vmul.f32 %v1922, %v1929
      %v1937 = vmul.f32 %v1923, %v1933
      %1938 = vst [vmem:[#allocation2 + $0x100] sm:$0xff] %v1936
      %1939 = vst [vmem:[#allocation2 + $0x108] sm:$0xff] %v1937
      %1940 = vrot.lane.b32.xlu0 %v1584, 119
      %v1941 = vpop.permute.xlu0 %1940
      %1942 = vrot.lane.b32.xlu0 %v1585, 119
      %v1943 = vpop.permute.xlu0 %1942
      %v1944 = vsel %vm601, %v1941, %v1943
      %v1945 = vsel %vm601, %v1943, %v1941
      %v1946 = vld [vmem:[%s604] ss:$8 sm:$0x3]
      %v1948 = vlaneseq
      %v1949 = vshrl.u32 %v1948, 7
      %v1950 = vsub.s32 0, %v1949
      %v1951 = vrot.slane %v1946, %v1950
      %v1952 = vlaneseq
      %v1953 = vshrl.u32 %v1952, 7
      %v1954 = vsub.s32 1, %v1953
      %v1955 = vrot.slane %v1946, %v1954
      %v1958 = vmul.f32 %v1944, %v1951
      %v1959 = vmul.f32 %v1945, %v1955
      %1960 = vst [vmem:[#allocation2 + $0x110] sm:$0xff] %v1958
      %1961 = vst [vmem:[#allocation2 + $0x118] sm:$0xff] %v1959
      %v1962 = vld [vmem:[%s621] ss:$8 sm:$0x3]
      %v1964 = vlaneseq
      %v1965 = vshrl.u32 %v1964, 7
      %v1966 = vsub.s32 0, %v1965
      %v1967 = vrot.slane %v1962, %v1966
      %v1968 = vlaneseq
      %v1969 = vshrl.u32 %v1968, 7
      %v1970 = vsub.s32 1, %v1969
      %v1971 = vrot.slane %v1962, %v1970
      %v1974 = vmul.f32 %v1590, %v1967
      %v1975 = vmul.f32 %v1591, %v1971
      %1976 = vst [vmem:[#allocation2 + $0x120] sm:$0xff] %v1974
      %1977 = vst [vmem:[#allocation2 + $0x128] sm:$0xff] %v1975
      %v1978 = vld [vmem:[%s638] ss:$8 sm:$0x3]
      %v1980 = vlaneseq
      %v1981 = vshrl.u32 %v1980, 7
      %v1982 = vsub.s32 0, %v1981
      %v1983 = vrot.slane %v1978, %v1982
      %v1984 = vlaneseq
      %v1985 = vshrl.u32 %v1984, 7
      %v1986 = vsub.s32 1, %v1985
      %v1987 = vrot.slane %v1978, %v1986
      %v1990 = vmul.f32 %v1612, %v1983
      %v1991 = vmul.f32 %v1613, %v1987
      %1992 = vst [vmem:[#allocation2 + $0x130] sm:$0xff] %v1990
      %1993 = vst [vmem:[#allocation2 + $0x138] sm:$0xff] %v1991
      %v1994 = vld [vmem:[%s655] ss:$8 sm:$0x3]
      %v1996 = vlaneseq
      %v1997 = vshrl.u32 %v1996, 7
      %v1998 = vsub.s32 0, %v1997
      %v1999 = vrot.slane %v1994, %v1998
      %v2000 = vlaneseq
      %v2001 = vshrl.u32 %v2000, 7
      %v2002 = vsub.s32 1, %v2001
      %v2003 = vrot.slane %v1994, %v2002
      %v2006 = vmul.f32 %v1634, %v1999
      %v2007 = vmul.f32 %v1635, %v2003
      %2008 = vst [vmem:[#allocation2 + $0x140] sm:$0xff] %v2006
      %2009 = vst [vmem:[#allocation2 + $0x148] sm:$0xff] %v2007
      %v2010 = vld [vmem:[%s672] ss:$8 sm:$0x3]
      %v2012 = vlaneseq
      %v2013 = vshrl.u32 %v2012, 7
      %v2014 = vsub.s32 0, %v2013
      %v2015 = vrot.slane %v2010, %v2014
      %v2016 = vlaneseq
      %v2017 = vshrl.u32 %v2016, 7
      %v2018 = vsub.s32 1, %v2017
      %v2019 = vrot.slane %v2010, %v2018
      %v2022 = vmul.f32 %v1656, %v2015
      %v2023 = vmul.f32 %v1657, %v2019
      %2024 = vst [vmem:[#allocation2 + $0x150] sm:$0xff] %v2022
      %2025 = vst [vmem:[#allocation2 + $0x158] sm:$0xff] %v2023
      %v2026 = vld [vmem:[%s689] ss:$8 sm:$0x3]
      %v2028 = vlaneseq
      %v2029 = vshrl.u32 %v2028, 7
      %v2030 = vsub.s32 0, %v2029
      %v2031 = vrot.slane %v2026, %v2030
      %v2032 = vlaneseq
      %v2033 = vshrl.u32 %v2032, 7
      %v2034 = vsub.s32 1, %v2033
      %v2035 = vrot.slane %v2026, %v2034
      %v2038 = vmul.f32 %v1678, %v2031
      %v2039 = vmul.f32 %v1679, %v2035
      %2040 = vst [vmem:[#allocation2 + $0x160] sm:$0xff] %v2038
      %2041 = vst [vmem:[#allocation2 + $0x168] sm:$0xff] %v2039
      %v2042 = vld [vmem:[%s706] ss:$8 sm:$0x3]
      %v2044 = vlaneseq
      %v2045 = vshrl.u32 %v2044, 7
      %v2046 = vsub.s32 0, %v2045
      %v2047 = vrot.slane %v2042, %v2046
      %v2048 = vlaneseq
      %v2049 = vshrl.u32 %v2048, 7
      %v2050 = vsub.s32 1, %v2049
      %v2051 = vrot.slane %v2042, %v2050
      %v2054 = vmul.f32 %v1700, %v2047
      %v2055 = vmul.f32 %v1701, %v2051
      %2056 = vst [vmem:[#allocation2 + $0x170] sm:$0xff] %v2054
      %2057 = vst [vmem:[#allocation2 + $0x178] sm:$0xff] %v2055
      %v2058 = vld [vmem:[%s723] ss:$8 sm:$0x3]
      %v2060 = vlaneseq
      %v2061 = vshrl.u32 %v2060, 7
      %v2062 = vsub.s32 0, %v2061
      %v2063 = vrot.slane %v2058, %v2062
      %v2064 = vlaneseq
      %v2065 = vshrl.u32 %v2064, 7
      %v2066 = vsub.s32 1, %v2065
      %v2067 = vrot.slane %v2058, %v2066
      %v2070 = vmul.f32 %v1722, %v2063
      %v2071 = vmul.f32 %v1723, %v2067
      %2072 = vst [vmem:[#allocation2 + $0x180] sm:$0xff] %v2070
      %2073 = vst [vmem:[#allocation2 + $0x188] sm:$0xff] %v2071
      %v2074 = vld [vmem:[%s740] ss:$8 sm:$0x3]
      %v2076 = vlaneseq
      %v2077 = vshrl.u32 %v2076, 7
      %v2078 = vsub.s32 0, %v2077
      %v2079 = vrot.slane %v2074, %v2078
      %v2080 = vlaneseq
      %v2081 = vshrl.u32 %v2080, 7
      %v2082 = vsub.s32 1, %v2081
      %v2083 = vrot.slane %v2074, %v2082
      %v2086 = vmul.f32 %v1744, %v2079
      %v2087 = vmul.f32 %v1745, %v2083
      %2088 = vst [vmem:[#allocation2 + $0x190] sm:$0xff] %v2086
      %2089 = vst [vmem:[#allocation2 + $0x198] sm:$0xff] %v2087
      %v2090 = vld [vmem:[%s757] ss:$8 sm:$0x3]
      %v2092 = vlaneseq
      %v2093 = vshrl.u32 %v2092, 7
      %v2094 = vsub.s32 0, %v2093
      %v2095 = vrot.slane %v2090, %v2094
      %v2096 = vlaneseq
      %v2097 = vshrl.u32 %v2096, 7
      %v2098 = vsub.s32 1, %v2097
      %v2099 = vrot.slane %v2090, %v2098
      %v2102 = vmul.f32 %v1766, %v2095
      %v2103 = vmul.f32 %v1767, %v2099
      %2104 = vst [vmem:[#allocation2 + $0x1a0] sm:$0xff] %v2102
      %2105 = vst [vmem:[#allocation2 + $0x1a8] sm:$0xff] %v2103
      %s2106 = scalar_lea.vmem %s2, 32
      %v2107 = vld [vmem:[%s2106] sm:$0xff]
      %v2108 = vld [vmem:[%s2106 + $0x8] sm:$0xff]
      %v2109 = vld [vmem:[#allocation2] sm:$0xff]
      %v2110 = vld [vmem:[#allocation2 + $0x8] sm:$0xff]
      %v2111 = vld [vmem:[#allocation2 + $0x10] sm:$0xff]
      %v2112 = vld [vmem:[#allocation2 + $0x18] sm:$0xff]
      %v2113 = vld [vmem:[#allocation2 + $0x20] sm:$0xff]
      %v2114 = vld [vmem:[#allocation2 + $0x28] sm:$0xff]
      %v2115 = vld [vmem:[#allocation2 + $0x30] sm:$0xff]
      %v2116 = vld [vmem:[#allocation2 + $0x38] sm:$0xff]
      %v2117 = vld [vmem:[#allocation2 + $0x40] sm:$0xff]
      %v2118 = vld [vmem:[#allocation2 + $0x48] sm:$0xff]
      %v2119 = vld [vmem:[#allocation2 + $0x50] sm:$0xff]
      %v2120 = vld [vmem:[#allocation2 + $0x58] sm:$0xff]
      %v2121 = vld [vmem:[#allocation2 + $0x60] sm:$0xff]
      %v2122 = vld [vmem:[#allocation2 + $0x68] sm:$0xff]
      %v2123 = vld [vmem:[#allocation2 + $0x70] sm:$0xff]
      %v2124 = vld [vmem:[#allocation2 + $0x78] sm:$0xff]
      %v2125 = vld [vmem:[#allocation2 + $0x80] sm:$0xff]
      %v2126 = vld [vmem:[#allocation2 + $0x88] sm:$0xff]
      %v2127 = vld [vmem:[#allocation2 + $0x90] sm:$0xff]
      %v2128 = vld [vmem:[#allocation2 + $0x98] sm:$0xff]
      %v2129 = vld [vmem:[#allocation2 + $0xa0] sm:$0xff]
      %v2130 = vld [vmem:[#allocation2 + $0xa8] sm:$0xff]
      %v2131 = vld [vmem:[#allocation2 + $0xb0] sm:$0xff]
      %v2132 = vld [vmem:[#allocation2 + $0xb8] sm:$0xff]
      %v2133 = vld [vmem:[#allocation2 + $0xc0] sm:$0xff]
      %v2134 = vld [vmem:[#allocation2 + $0xc8] sm:$0xff]
      %v2135 = vld [vmem:[#allocation2 + $0xd0] sm:$0xff]
      %v2136 = vld [vmem:[#allocation2 + $0xd8] sm:$0xff]
      %v2137 = vld [vmem:[#allocation2 + $0xe0] sm:$0xff]
      %v2138 = vld [vmem:[#allocation2 + $0xe8] sm:$0xff]
      %v2139 = vld [vmem:[#allocation2 + $0xf0] sm:$0xff]
      %v2140 = vld [vmem:[#allocation2 + $0xf8] sm:$0xff]
      %v2141 = vld [vmem:[#allocation2 + $0x100] sm:$0xff]
      %v2142 = vld [vmem:[#allocation2 + $0x108] sm:$0xff]
      %v2143 = vld [vmem:[#allocation2 + $0x110] sm:$0xff]
      %v2144 = vld [vmem:[#allocation2 + $0x118] sm:$0xff]
      %v2145 = vld [vmem:[#allocation2 + $0x120] sm:$0xff]
      %v2146 = vld [vmem:[#allocation2 + $0x128] sm:$0xff]
      %v2147 = vld [vmem:[#allocation2 + $0x130] sm:$0xff]
      %v2148 = vld [vmem:[#allocation2 + $0x138] sm:$0xff]
      %v2149 = vld [vmem:[#allocation2 + $0x140] sm:$0xff]
      %v2150 = vld [vmem:[#allocation2 + $0x148] sm:$0xff]
      %v2151 = vld [vmem:[#allocation2 + $0x150] sm:$0xff]
      %v2152 = vld [vmem:[#allocation2 + $0x158] sm:$0xff]
      %v2153 = vld [vmem:[#allocation2 + $0x160] sm:$0xff]
      %v2154 = vld [vmem:[#allocation2 + $0x168] sm:$0xff]
      %v2155 = vld [vmem:[#allocation2 + $0x170] sm:$0xff]
      %v2156 = vld [vmem:[#allocation2 + $0x178] sm:$0xff]
      %v2157 = vld [vmem:[#allocation2 + $0x180] sm:$0xff]
      %v2158 = vld [vmem:[#allocation2 + $0x188] sm:$0xff]
      %v2159 = vld [vmem:[#allocation2 + $0x190] sm:$0xff]
      %v2160 = vld [vmem:[#allocation2 + $0x198] sm:$0xff]
      %v2161 = vld [vmem:[#allocation2 + $0x1a0] sm:$0xff]
      %v2162 = vld [vmem:[#allocation2 + $0x1a8] sm:$0xff]
      %v2163 = vld [vmem:[#allocation2 + $0x1b0] sm:$0xff]
      %v2164 = vld [vmem:[#allocation2 + $0x1b8] sm:$0xff]
      %v2165 = vld [vmem:[#allocation2 + $0x1c0] sm:$0xff]
      %v2166 = vld [vmem:[#allocation2 + $0x1c8] sm:$0xff]
      %v2167 = vld [vmem:[#allocation2 + $0x1d0] sm:$0xff]
      %v2168 = vld [vmem:[#allocation2 + $0x1d8] sm:$0xff]
      %v2169 = vld [vmem:[#allocation2 + $0x1e0] sm:$0xff]
      %v2170 = vld [vmem:[#allocation2 + $0x1e8] sm:$0xff]
      %v2171 = vld [vmem:[#allocation2 + $0x1f0] sm:$0xff]
      %v2172 = vld [vmem:[#allocation2 + $0x1f8] sm:$0xff]
      %s2173 = scalar_lea.vmem %s3, 16
      %v2174 = vld [vmem:[%s2173] sm:$0xff]
      %2176 = vset.pattern.permute.xlu0 0
      %2177 = vperm.xlu0 %2176, %v2174
      %v2178 = vpop.permute.xlu0 %2177
      %2180 = vmatprep.subr.mxu0 %v2140
      %2181 = vmatpush1.msra.mxu0 %v2139
      %2182 = vmatprep.subr.mxu0 %v2138
      %2183 = vmatpush1.msra.mxu0 %v2137
      %2184 = vmatprep.subr.mxu0 %v2136
      %2185 = vmatpush1.msra.mxu0 %v2135
      %2186 = vmatprep.subr.mxu0 %v2134
      %2187 = vmatpush1.msra.mxu0 %v2133
      %2188 = vmatprep.subr.mxu0 %v2132
      %2189 = vmatpush1.msra.mxu0 %v2131
      %2190 = vmatprep.subr.mxu0 %v2130
      %2191 = vmatpush1.msra.mxu0 %v2129
      %2192 = vmatprep.subr.mxu0 %v2128
      %2193 = vmatpush1.msra.mxu0 %v2127
      %2194 = vmatprep.subr.mxu0 %v2126
      %2195 = vmatpush1.msra.mxu0 %v2125
      %2196 = vmatprep.subr.mxu0 %v2124
      %2197 = vmatpush1.msra.mxu0 %v2123
      %2198 = vmatprep.subr.mxu0 %v2122
      %2199 = vmatpush1.msra.mxu0 %v2121
      %2200 = vmatprep.subr.mxu0 %v2120
      %2201 = vmatpush1.msra.mxu0 %v2119
      %2202 = vmatprep.subr.mxu0 %v2118
      %2203 = vmatpush1.msra.mxu0 %v2117
      %2204 = vmatprep.subr.mxu0 %v2116
      %2205 = vmatpush1.msra.mxu0 %v2115
      %2206 = vmatprep.subr.mxu0 %v2114
      %2207 = vmatpush1.msra.mxu0 %v2113
      %2208 = vmatprep.subr.mxu0 %v2112
      %2209 = vmatpush1.msra.mxu0 %v2111
      %2210 = vmatprep.subr.mxu0 %v2110
      %2211 = vmatpush1.msra.mxu0 %v2109
      %2212 = vmatprep.subr.mxu0 %v2172
      %2213 = vmatpush2.msra.mxu0 %v2171
      %2214 = vmatprep.subr.mxu0 %v2170
      %2215 = vmatpush2.msra.mxu0 %v2169
      %2216 = vmatprep.subr.mxu0 %v2168
      %2217 = vmatpush2.msra.mxu0 %v2167
      %2218 = vmatprep.subr.mxu0 %v2166
      %2219 = vmatpush2.msra.mxu0 %v2165
      %2220 = vmatprep.subr.mxu0 %v2164
      %2221 = vmatpush2.msra.mxu0 %v2163
      %2222 = vmatprep.subr.mxu0 %v2162
      %2223 = vmatpush2.msra.mxu0 %v2161
      %2224 = vmatprep.subr.mxu0 %v2160
      %2225 = vmatpush2.msra.mxu0 %v2159
      %2226 = vmatprep.subr.mxu0 %v2158
      %2227 = vmatpush2.msra.mxu0 %v2157
      %2228 = vmatprep.subr.mxu0 %v2156
      %2229 = vmatpush2.msra.mxu0 %v2155
      %2230 = vmatprep.subr.mxu0 %v2154
      %2231 = vmatpush2.msra.mxu0 %v2153
      %2232 = vmatprep.subr.mxu0 %v2152
      %2233 = vmatpush2.msra.mxu0 %v2151
      %2234 = vmatprep.subr.mxu0 %v2150
      %2235 = vmatpush2.msra.mxu0 %v2149
      %2236 = vmatprep.subr.mxu0 %v2148
      %2237 = vmatpush2.msra.mxu0 %v2147
      %2238 = vmatprep.subr.mxu0 %v2146
      %2239 = vmatpush2.msra.mxu0 %v2145
      %2240 = vmatprep.subr.mxu0 %v2144
      %2241 = vmatpush2.msra.mxu0 %v2143
      %2242 = vmatprep.subr.mxu0 %v2142
      %2243 = vmatpush2.msra.mxu0 %v2141
      %2244 = vmatprep.mubr.f32.mxu0 %v2108
      %2245 = vmatmul.mubr.f32.gmra.mxu0 %v2107
      %v2246 = vpop.f32.mrf.mxu0
      %v2247 = vadd.f32 %v2178, %v2246
      %v2248 = vpop.f32.mrf.mxu0
      %v2249 = vadd.f32 %v2178, %v2248
      %2250 = vdwg.mxu0
      %v2251 = vmax.f32 %v2247, 0.0
      %v2252 = vmax.f32 %v2249, 0.0
      %2253 = vrot.lane.b32.xlu0 %v2251, 73
      %v2254 = vpop.permute.xlu0 %2253
      %2255 = vrot.lane.b32.xlu0 %v2252, 73
      %v2256 = vpop.permute.xlu0 %2255
      %v2257 = vsel %vm216, %v2254, %v2256
      %v2258 = vsel %vm216, %v2256, %v2254
      %v2259 = vld [vmem:[%s0] ss:$8 sm:$0x3]
      %v2261 = vlaneseq
      %v2262 = vshrl.u32 %v2261, 7
      %v2263 = vsub.s32 0, %v2262
      %v2264 = vrot.slane %v2259, %v2263
      %v2265 = vlaneseq
      %v2266 = vshrl.u32 %v2265, 7
      %v2267 = vsub.s32 1, %v2266
      %v2268 = vrot.slane %v2259, %v2267
      %v2271 = vmul.f32 %v2258, %v2264
      %v2272 = vmul.f32 %v2257, %v2268
      %2273 = vst [vmem:[#allocation2] sm:$0xff] %v2271
      %2274 = vst [vmem:[#allocation2 + $0x8] sm:$0xff] %v2272
      %2275 = vrot.lane.b32.xlu0 %v2251, 72
      %v2276 = vpop.permute.xlu0 %2275
      %2277 = vrot.lane.b32.xlu0 %v2252, 72
      %v2278 = vpop.permute.xlu0 %2277
      %v2279 = vsel %vm239, %v2276, %v2278
      %v2280 = vsel %vm239, %v2278, %v2276
      %v2281 = vld [vmem:[%s242] ss:$8 sm:$0x3]
      %v2283 = vlaneseq
      %v2284 = vshrl.u32 %v2283, 7
      %v2285 = vsub.s32 0, %v2284
      %v2286 = vrot.slane %v2281, %v2285
      %v2287 = vlaneseq
      %v2288 = vshrl.u32 %v2287, 7
      %v2289 = vsub.s32 1, %v2288
      %v2290 = vrot.slane %v2281, %v2289
      %v2293 = vmul.f32 %v2280, %v2286
      %v2294 = vmul.f32 %v2279, %v2290
      %2295 = vst [vmem:[#allocation2 + $0x10] sm:$0xff] %v2293
      %2296 = vst [vmem:[#allocation2 + $0x18] sm:$0xff] %v2294
      %2297 = vrot.lane.b32.xlu0 %v2251, 71
      %v2298 = vpop.permute.xlu0 %2297
      %2299 = vrot.lane.b32.xlu0 %v2252, 71
      %v2300 = vpop.permute.xlu0 %2299
      %v2301 = vsel %vm263, %v2298, %v2300
      %v2302 = vsel %vm263, %v2300, %v2298
      %v2303 = vld [vmem:[%s266] ss:$8 sm:$0x3]
      %v2305 = vlaneseq
      %v2306 = vshrl.u32 %v2305, 7
      %v2307 = vsub.s32 0, %v2306
      %v2308 = vrot.slane %v2303, %v2307
      %v2309 = vlaneseq
      %v2310 = vshrl.u32 %v2309, 7
      %v2311 = vsub.s32 1, %v2310
      %v2312 = vrot.slane %v2303, %v2311
      %v2315 = vmul.f32 %v2302, %v2308
      %v2316 = vmul.f32 %v2301, %v2312
      %2317 = vst [vmem:[#allocation2 + $0x20] sm:$0xff] %v2315
      %2318 = vst [vmem:[#allocation2 + $0x28] sm:$0xff] %v2316
      %2319 = vrot.lane.b32.xlu0 %v2251, 65
      %v2320 = vpop.permute.xlu0 %2319
      %2321 = vrot.lane.b32.xlu0 %v2252, 65
      %v2322 = vpop.permute.xlu0 %2321
      %v2323 = vsel %vm287, %v2320, %v2322
      %v2324 = vsel %vm287, %v2322, %v2320
      %v2325 = vld [vmem:[%s290] ss:$8 sm:$0x3]
      %v2327 = vlaneseq
      %v2328 = vshrl.u32 %v2327, 7
      %v2329 = vsub.s32 0, %v2328
      %v2330 = vrot.slane %v2325, %v2329
      %v2331 = vlaneseq
      %v2332 = vshrl.u32 %v2331, 7
      %v2333 = vsub.s32 1, %v2332
      %v2334 = vrot.slane %v2325, %v2333
      %v2337 = vmul.f32 %v2324, %v2330
      %v2338 = vmul.f32 %v2323, %v2334
      %2339 = vst [vmem:[#allocation2 + $0x30] sm:$0xff] %v2337
      %2340 = vst [vmem:[#allocation2 + $0x38] sm:$0xff] %v2338
      %2341 = vrot.lane.b32.xlu0 %v2251, 64
      %v2342 = vpop.permute.xlu0 %2341
      %2343 = vrot.lane.b32.xlu0 %v2252, 64
      %v2344 = vpop.permute.xlu0 %2343
      %v2345 = vsel %vm311, %v2342, %v2344
      %v2346 = vsel %vm311, %v2344, %v2342
      %v2347 = vld [vmem:[%s314] ss:$8 sm:$0x3]
      %v2349 = vlaneseq
      %v2350 = vshrl.u32 %v2349, 7
      %v2351 = vsub.s32 0, %v2350
      %v2352 = vrot.slane %v2347, %v2351
      %v2353 = vlaneseq
      %v2354 = vshrl.u32 %v2353, 7
      %v2355 = vsub.s32 1, %v2354
      %v2356 = vrot.slane %v2347, %v2355
      %v2359 = vmul.f32 %v2346, %v2352
      %v2360 = vmul.f32 %v2345, %v2356
      %2361 = vst [vmem:[#allocation2 + $0x40] sm:$0xff] %v2359
      %2362 = vst [vmem:[#allocation2 + $0x48] sm:$0xff] %v2360
      %2363 = vrot.lane.b32.xlu0 %v2251, 63
      %v2364 = vpop.permute.xlu0 %2363
      %2365 = vrot.lane.b32.xlu0 %v2252, 63
      %v2366 = vpop.permute.xlu0 %2365
      %v2367 = vsel %vm335, %v2364, %v2366
      %v2368 = vsel %vm335, %v2366, %v2364
      %v2369 = vld [vmem:[%s338] ss:$8 sm:$0x3]
      %v2371 = vlaneseq
      %v2372 = vshrl.u32 %v2371, 7
      %v2373 = vsub.s32 0, %v2372
      %v2374 = vrot.slane %v2369, %v2373
      %v2375 = vlaneseq
      %v2376 = vshrl.u32 %v2375, 7
      %v2377 = vsub.s32 1, %v2376
      %v2378 = vrot.slane %v2369, %v2377
      %v2381 = vmul.f32 %v2368, %v2374
      %v2382 = vmul.f32 %v2367, %v2378
      %2383 = vst [vmem:[#allocation2 + $0x50] sm:$0xff] %v2381
      %2384 = vst [vmem:[#allocation2 + $0x58] sm:$0xff] %v2382
      %2385 = vrot.lane.b32.xlu0 %v2251, 57
      %v2386 = vpop.permute.xlu0 %2385
      %2387 = vrot.lane.b32.xlu0 %v2252, 57
      %v2388 = vpop.permute.xlu0 %2387
      %v2389 = vsel %vm359, %v2386, %v2388
      %v2390 = vsel %vm359, %v2388, %v2386
      %v2391 = vld [vmem:[%s362] ss:$8 sm:$0x3]
      %v2393 = vlaneseq
      %v2394 = vshrl.u32 %v2393, 7
      %v2395 = vsub.s32 0, %v2394
      %v2396 = vrot.slane %v2391, %v2395
      %v2397 = vlaneseq
      %v2398 = vshrl.u32 %v2397, 7
      %v2399 = vsub.s32 1, %v2398
      %v2400 = vrot.slane %v2391, %v2399
      %v2403 = vmul.f32 %v2390, %v2396
      %v2404 = vmul.f32 %v2389, %v2400
      %2405 = vst [vmem:[#allocation2 + $0x60] sm:$0xff] %v2403
      %2406 = vst [vmem:[#allocation2 + $0x68] sm:$0xff] %v2404
      %2407 = vrot.lane.b32.xlu0 %v2251, 56
      %v2408 = vpop.permute.xlu0 %2407
      %2409 = vrot.lane.b32.xlu0 %v2252, 56
      %v2410 = vpop.permute.xlu0 %2409
      %v2411 = vsel %vm383, %v2408, %v2410
      %v2412 = vsel %vm383, %v2410, %v2408
      %v2413 = vld [vmem:[%s386] ss:$8 sm:$0x3]
      %v2415 = vlaneseq
      %v2416 = vshrl.u32 %v2415, 7
      %v2417 = vsub.s32 0, %v2416
      %v2418 = vrot.slane %v2413, %v2417
      %v2419 = vlaneseq
      %v2420 = vshrl.u32 %v2419, 7
      %v2421 = vsub.s32 1, %v2420
      %v2422 = vrot.slane %v2413, %v2421
      %v2425 = vmul.f32 %v2412, %v2418
      %v2426 = vmul.f32 %v2411, %v2422
      %2427 = vst [vmem:[#allocation2 + $0x70] sm:$0xff] %v2425
      %2428 = vst [vmem:[#allocation2 + $0x78] sm:$0xff] %v2426
      %2429 = vrot.lane.b32.xlu0 %v2251, 55
      %v2430 = vpop.permute.xlu0 %2429
      %2431 = vrot.lane.b32.xlu0 %v2252, 55
      %v2432 = vpop.permute.xlu0 %2431
      %v2433 = vsel %vm407, %v2430, %v2432
      %v2434 = vsel %vm407, %v2432, %v2430
      %v2435 = vld [vmem:[%s410] ss:$8 sm:$0x3]
      %v2437 = vlaneseq
      %v2438 = vshrl.u32 %v2437, 7
      %v2439 = vsub.s32 0, %v2438
      %v2440 = vrot.slane %v2435, %v2439
      %v2441 = vlaneseq
      %v2442 = vshrl.u32 %v2441, 7
      %v2443 = vsub.s32 1, %v2442
      %v2444 = vrot.slane %v2435, %v2443
      %v2447 = vmul.f32 %v2434, %v2440
      %v2448 = vmul.f32 %v2433, %v2444
      %2449 = vst [vmem:[#allocation2 + $0x80] sm:$0xff] %v2447
      %2450 = vst [vmem:[#allocation2 + $0x88] sm:$0xff] %v2448
      %2451 = vrot.lane.b32.xlu0 %v2251, 9
      %v2452 = vpop.permute.xlu0 %2451
      %2453 = vrot.lane.b32.xlu0 %v2252, 9
      %v2454 = vpop.permute.xlu0 %2453
      %v2455 = vsel %vm431, %v2452, %v2454
      %v2456 = vsel %vm431, %v2454, %v2452
      %v2457 = vld [vmem:[%s434] ss:$8 sm:$0x3]
      %v2459 = vlaneseq
      %v2460 = vshrl.u32 %v2459, 7
      %v2461 = vsub.s32 0, %v2460
      %v2462 = vrot.slane %v2457, %v2461
      %v2463 = vlaneseq
      %v2464 = vshrl.u32 %v2463, 7
      %v2465 = vsub.s32 1, %v2464
      %v2466 = vrot.slane %v2457, %v2465
      %v2469 = vmul.f32 %v2456, %v2462
      %v2470 = vmul.f32 %v2455, %v2466
      %2471 = vst [vmem:[#allocation2 + $0x90] sm:$0xff] %v2469
      %2472 = vst [vmem:[#allocation2 + $0x98] sm:$0xff] %v2470
      %2473 = vrot.lane.b32.xlu0 %v2251, 8
      %v2474 = vpop.permute.xlu0 %2473
      %2475 = vrot.lane.b32.xlu0 %v2252, 8
      %v2476 = vpop.permute.xlu0 %2475
      %v2477 = vsel %vm455, %v2474, %v2476
      %v2478 = vsel %vm455, %v2476, %v2474
      %v2479 = vld [vmem:[%s458] ss:$8 sm:$0x3]
      %v2481 = vlaneseq
      %v2482 = vshrl.u32 %v2481, 7
      %v2483 = vsub.s32 0, %v2482
      %v2484 = vrot.slane %v2479, %v2483
      %v2485 = vlaneseq
      %v2486 = vshrl.u32 %v2485, 7
      %v2487 = vsub.s32 1, %v2486
      %v2488 = vrot.slane %v2479, %v2487
      %v2491 = vmul.f32 %v2478, %v2484
      %v2492 = vmul.f32 %v2477, %v2488
      %2493 = vst [vmem:[#allocation2 + $0xa0] sm:$0xff] %v2491
      %2494 = vst [vmem:[#allocation2 + $0xa8] sm:$0xff] %v2492
      %2495 = vrot.lane.b32.xlu0 %v2251, 7
      %v2496 = vpop.permute.xlu0 %2495
      %2497 = vrot.lane.b32.xlu0 %v2252, 7
      %v2498 = vpop.permute.xlu0 %2497
      %v2499 = vsel %vm479, %v2496, %v2498
      %v2500 = vsel %vm479, %v2498, %v2496
      %v2501 = vld [vmem:[%s482] ss:$8 sm:$0x3]
      %v2503 = vlaneseq
      %v2504 = vshrl.u32 %v2503, 7
      %v2505 = vsub.s32 0, %v2504
      %v2506 = vrot.slane %v2501, %v2505
      %v2507 = vlaneseq
      %v2508 = vshrl.u32 %v2507, 7
      %v2509 = vsub.s32 1, %v2508
      %v2510 = vrot.slane %v2501, %v2509
      %v2513 = vmul.f32 %v2500, %v2506
      %v2514 = vmul.f32 %v2499, %v2510
      %2515 = vst [vmem:[#allocation2 + $0xb0] sm:$0xff] %v2513
      %2516 = vst [vmem:[#allocation2 + $0xb8] sm:$0xff] %v2514
      %2517 = vrot.lane.b32.xlu0 %v2251, 1
      %v2518 = vpop.permute.xlu0 %2517
      %2519 = vrot.lane.b32.xlu0 %v2252, 1
      %v2520 = vpop.permute.xlu0 %2519
      %v2521 = vsel %vm503, %v2518, %v2520
      %v2522 = vsel %vm503, %v2520, %v2518
      %v2523 = vld [vmem:[%s506] ss:$8 sm:$0x3]
      %v2525 = vlaneseq
      %v2526 = vshrl.u32 %v2525, 7
      %v2527 = vsub.s32 0, %v2526
      %v2528 = vrot.slane %v2523, %v2527
      %v2529 = vlaneseq
      %v2530 = vshrl.u32 %v2529, 7
      %v2531 = vsub.s32 1, %v2530
      %v2532 = vrot.slane %v2523, %v2531
      %v2535 = vmul.f32 %v2522, %v2528
      %v2536 = vmul.f32 %v2521, %v2532
      %2537 = vst [vmem:[#allocation2 + $0xc0] sm:$0xff] %v2535
      %2538 = vst [vmem:[#allocation2 + $0xc8] sm:$0xff] %v2536
      %2539 = vst [vmem:[#allocation2 + $0xd0] sm:$0xff] %v2251
      %2540 = vst [vmem:[#allocation2 + $0xd8] sm:$0xff] %v2252
      %2541 = vrot.lane.b32.xlu0 %v2251, 127
      %v2542 = vpop.permute.xlu0 %2541
      %2543 = vrot.lane.b32.xlu0 %v2252, 127
      %v2544 = vpop.permute.xlu0 %2543
      %v2545 = vsel %vm529, %v2542, %v2544
      %v2546 = vsel %vm529, %v2544, %v2542
      %v2547 = vld [vmem:[%s532] ss:$8 sm:$0x3]
      %v2549 = vlaneseq
      %v2550 = vshrl.u32 %v2549, 7
      %v2551 = vsub.s32 0, %v2550
      %v2552 = vrot.slane %v2547, %v2551
      %v2553 = vlaneseq
      %v2554 = vshrl.u32 %v2553, 7
      %v2555 = vsub.s32 1, %v2554
      %v2556 = vrot.slane %v2547, %v2555
      %v2559 = vmul.f32 %v2545, %v2552
      %v2560 = vmul.f32 %v2546, %v2556
      %2561 = vst [vmem:[#allocation2 + $0xe0] sm:$0xff] %v2559
      %2562 = vst [vmem:[#allocation2 + $0xe8] sm:$0xff] %v2560
      %2563 = vrot.lane.b32.xlu0 %v2251, 121
      %v2564 = vpop.permute.xlu0 %2563
      %2565 = vrot.lane.b32.xlu0 %v2252, 121
      %v2566 = vpop.permute.xlu0 %2565
      %v2567 = vsel %vm553, %v2564, %v2566
      %v2568 = vsel %vm553, %v2566, %v2564
      %v2569 = vld [vmem:[%s556] ss:$8 sm:$0x3]
      %v2571 = vlaneseq
      %v2572 = vshrl.u32 %v2571, 7
      %v2573 = vsub.s32 0, %v2572
      %v2574 = vrot.slane %v2569, %v2573
      %v2575 = vlaneseq
      %v2576 = vshrl.u32 %v2575, 7
      %v2577 = vsub.s32 1, %v2576
      %v2578 = vrot.slane %v2569, %v2577
      %v2581 = vmul.f32 %v2567, %v2574
      %v2582 = vmul.f32 %v2568, %v2578
      %2583 = vst [vmem:[#allocation2 + $0xf0] sm:$0xff] %v2581
      %2584 = vst [vmem:[#allocation2 + $0xf8] sm:$0xff] %v2582
      %2585 = vrot.lane.b32.xlu0 %v2251, 120
      %v2586 = vpop.permute.xlu0 %2585
      %2587 = vrot.lane.b32.xlu0 %v2252, 120
      %v2588 = vpop.permute.xlu0 %2587
      %v2589 = vsel %vm577, %v2586, %v2588
      %v2590 = vsel %vm577, %v2588, %v2586
      %v2591 = vld [vmem:[%s580] ss:$8 sm:$0x3]
      %v2593 = vlaneseq
      %v2594 = vshrl.u32 %v2593, 7
      %v2595 = vsub.s32 0, %v2594
      %v2596 = vrot.slane %v2591, %v2595
      %v2597 = vlaneseq
      %v2598 = vshrl.u32 %v2597, 7
      %v2599 = vsub.s32 1, %v2598
      %v2600 = vrot.slane %v2591, %v2599
      %v2603 = vmul.f32 %v2589, %v2596
      %v2604 = vmul.f32 %v2590, %v2600
      %2605 = vst [vmem:[#allocation2 + $0x100] sm:$0xff] %v2603
      %2606 = vst [vmem:[#allocation2 + $0x108] sm:$0xff] %v2604
      %2607 = vrot.lane.b32.xlu0 %v2251, 119
      %v2608 = vpop.permute.xlu0 %2607
      %2609 = vrot.lane.b32.xlu0 %v2252, 119
      %v2610 = vpop.permute.xlu0 %2609
      %v2611 = vsel %vm601, %v2608, %v2610
      %v2612 = vsel %vm601, %v2610, %v2608
      %v2613 = vld [vmem:[%s604] ss:$8 sm:$0x3]
      %v2615 = vlaneseq
      %v2616 = vshrl.u32 %v2615, 7
      %v2617 = vsub.s32 0, %v2616
      %v2618 = vrot.slane %v2613, %v2617
      %v2619 = vlaneseq
      %v2620 = vshrl.u32 %v2619, 7
      %v2621 = vsub.s32 1, %v2620
      %v2622 = vrot.slane %v2613, %v2621
      %v2625 = vmul.f32 %v2611, %v2618
      %v2626 = vmul.f32 %v2612, %v2622
      %2627 = vst [vmem:[#allocation2 + $0x110] sm:$0xff] %v2625
      %2628 = vst [vmem:[#allocation2 + $0x118] sm:$0xff] %v2626
      %v2629 = vld [vmem:[%s621] ss:$8 sm:$0x3]
      %v2631 = vlaneseq
      %v2632 = vshrl.u32 %v2631, 7
      %v2633 = vsub.s32 0, %v2632
      %v2634 = vrot.slane %v2629, %v2633
      %v2635 = vlaneseq
      %v2636 = vshrl.u32 %v2635, 7
      %v2637 = vsub.s32 1, %v2636
      %v2638 = vrot.slane %v2629, %v2637
      %v2641 = vmul.f32 %v2257, %v2634
      %v2642 = vmul.f32 %v2258, %v2638
      %2643 = vst [vmem:[#allocation2 + $0x120] sm:$0xff] %v2641
      %2644 = vst [vmem:[#allocation2 + $0x128] sm:$0xff] %v2642
      %v2645 = vld [vmem:[%s638] ss:$8 sm:$0x3]
      %v2647 = vlaneseq
      %v2648 = vshrl.u32 %v2647, 7
      %v2649 = vsub.s32 0, %v2648
      %v2650 = vrot.slane %v2645, %v2649
      %v2651 = vlaneseq
      %v2652 = vshrl.u32 %v2651, 7
      %v2653 = vsub.s32 1, %v2652
      %v2654 = vrot.slane %v2645, %v2653
      %v2657 = vmul.f32 %v2279, %v2650
      %v2658 = vmul.f32 %v2280, %v2654
      %2659 = vst [vmem:[#allocation2 + $0x130] sm:$0xff] %v2657
      %2660 = vst [vmem:[#allocation2 + $0x138] sm:$0xff] %v2658
      %v2661 = vld [vmem:[%s655] ss:$8 sm:$0x3]
      %v2663 = vlaneseq
      %v2664 = vshrl.u32 %v2663, 7
      %v2665 = vsub.s32 0, %v2664
      %v2666 = vrot.slane %v2661, %v2665
      %v2667 = vlaneseq
      %v2668 = vshrl.u32 %v2667, 7
      %v2669 = vsub.s32 1, %v2668
      %v2670 = vrot.slane %v2661, %v2669
      %v2673 = vmul.f32 %v2301, %v2666
      %v2674 = vmul.f32 %v2302, %v2670
      %2675 = vst [vmem:[#allocation2 + $0x140] sm:$0xff] %v2673
      %2676 = vst [vmem:[#allocation2 + $0x148] sm:$0xff] %v2674
      %v2677 = vld [vmem:[%s672] ss:$8 sm:$0x3]
      %v2679 = vlaneseq
      %v2680 = vshrl.u32 %v2679, 7
      %v2681 = vsub.s32 0, %v2680
      %v2682 = vrot.slane %v2677, %v2681
      %v2683 = vlaneseq
      %v2684 = vshrl.u32 %v2683, 7
      %v2685 = vsub.s32 1, %v2684
      %v2686 = vrot.slane %v2677, %v2685
      %v2689 = vmul.f32 %v2323, %v2682
      %v2690 = vmul.f32 %v2324, %v2686
      %2691 = vst [vmem:[#allocation2 + $0x150] sm:$0xff] %v2689
      %2692 = vst [vmem:[#allocation2 + $0x158] sm:$0xff] %v2690
      %v2693 = vld [vmem:[%s689] ss:$8 sm:$0x3]
      %v2695 = vlaneseq
      %v2696 = vshrl.u32 %v2695, 7
      %v2697 = vsub.s32 0, %v2696
      %v2698 = vrot.slane %v2693, %v2697
      %v2699 = vlaneseq
      %v2700 = vshrl.u32 %v2699, 7
      %v2701 = vsub.s32 1, %v2700
      %v2702 = vrot.slane %v2693, %v2701
      %v2705 = vmul.f32 %v2345, %v2698
      %v2706 = vmul.f32 %v2346, %v2702
      %2707 = vst [vmem:[#allocation2 + $0x160] sm:$0xff] %v2705
      %2708 = vst [vmem:[#allocation2 + $0x168] sm:$0xff] %v2706
      %v2709 = vld [vmem:[%s706] ss:$8 sm:$0x3]
      %v2711 = vlaneseq
      %v2712 = vshrl.u32 %v2711, 7
      %v2713 = vsub.s32 0, %v2712
      %v2714 = vrot.slane %v2709, %v2713
      %v2715 = vlaneseq
      %v2716 = vshrl.u32 %v2715, 7
      %v2717 = vsub.s32 1, %v2716
      %v2718 = vrot.slane %v2709, %v2717
      %v2721 = vmul.f32 %v2367, %v2714
      %v2722 = vmul.f32 %v2368, %v2718
      %2723 = vst [vmem:[#allocation2 + $0x170] sm:$0xff] %v2721
      %2724 = vst [vmem:[#allocation2 + $0x178] sm:$0xff] %v2722
      %v2725 = vld [vmem:[%s723] ss:$8 sm:$0x3]
      %v2727 = vlaneseq
      %v2728 = vshrl.u32 %v2727, 7
      %v2729 = vsub.s32 0, %v2728
      %v2730 = vrot.slane %v2725, %v2729
      %v2731 = vlaneseq
      %v2732 = vshrl.u32 %v2731, 7
      %v2733 = vsub.s32 1, %v2732
      %v2734 = vrot.slane %v2725, %v2733
      %v2737 = vmul.f32 %v2389, %v2730
      %v2738 = vmul.f32 %v2390, %v2734
      %2739 = vst [vmem:[#allocation2 + $0x180] sm:$0xff] %v2737
      %2740 = vst [vmem:[#allocation2 + $0x188] sm:$0xff] %v2738
      %v2741 = vld [vmem:[%s740] ss:$8 sm:$0x3]
      %v2743 = vlaneseq
      %v2744 = vshrl.u32 %v2743, 7
      %v2745 = vsub.s32 0, %v2744
      %v2746 = vrot.slane %v2741, %v2745
      %v2747 = vlaneseq
      %v2748 = vshrl.u32 %v2747, 7
      %v2749 = vsub.s32 1, %v2748
      %v2750 = vrot.slane %v2741, %v2749
      %v2753 = vmul.f32 %v2411, %v2746
      %v2754 = vmul.f32 %v2412, %v2750
      %2755 = vst [vmem:[#allocation2 + $0x190] sm:$0xff] %v2753
      %2756 = vst [vmem:[#allocation2 + $0x198] sm:$0xff] %v2754
      %v2757 = vld [vmem:[%s757] ss:$8 sm:$0x3]
      %v2759 = vlaneseq
      %v2760 = vshrl.u32 %v2759, 7
      %v2761 = vsub.s32 0, %v2760
      %v2762 = vrot.slane %v2757, %v2761
      %v2763 = vlaneseq
      %v2764 = vshrl.u32 %v2763, 7
      %v2765 = vsub.s32 1, %v2764
      %v2766 = vrot.slane %v2757, %v2765
      %v2769 = vmul.f32 %v2433, %v2762
      %v2770 = vmul.f32 %v2434, %v2766
      %2771 = vst [vmem:[#allocation2 + $0x1a0] sm:$0xff] %v2769
      %2772 = vst [vmem:[#allocation2 + $0x1a8] sm:$0xff] %v2770
      %s2773 = scalar_lea.vmem %s2, 48
      %v2774 = vld [vmem:[%s2773] sm:$0xff]
      %v2775 = vld [vmem:[%s2773 + $0x8] sm:$0xff]
      %v2776 = vld [vmem:[#allocation2] sm:$0xff]
      %v2777 = vld [vmem:[#allocation2 + $0x8] sm:$0xff]
      %v2778 = vld [vmem:[#allocation2 + $0x10] sm:$0xff]
      %v2779 = vld [vmem:[#allocation2 + $0x18] sm:$0xff]
      %v2780 = vld [vmem:[#allocation2 + $0x20] sm:$0xff]
      %v2781 = vld [vmem:[#allocation2 + $0x28] sm:$0xff]
      %v2782 = vld [vmem:[#allocation2 + $0x30] sm:$0xff]
      %v2783 = vld [vmem:[#allocation2 + $0x38] sm:$0xff]
      %v2784 = vld [vmem:[#allocation2 + $0x40] sm:$0xff]
      %v2785 = vld [vmem:[#allocation2 + $0x48] sm:$0xff]
      %v2786 = vld [vmem:[#allocation2 + $0x50] sm:$0xff]
      %v2787 = vld [vmem:[#allocation2 + $0x58] sm:$0xff]
      %v2788 = vld [vmem:[#allocation2 + $0x60] sm:$0xff]
      %v2789 = vld [vmem:[#allocation2 + $0x68] sm:$0xff]
      %v2790 = vld [vmem:[#allocation2 + $0x70] sm:$0xff]
      %v2791 = vld [vmem:[#allocation2 + $0x78] sm:$0xff]
      %v2792 = vld [vmem:[#allocation2 + $0x80] sm:$0xff]
      %v2793 = vld [vmem:[#allocation2 + $0x88] sm:$0xff]
      %v2794 = vld [vmem:[#allocation2 + $0x90] sm:$0xff]
      %v2795 = vld [vmem:[#allocation2 + $0x98] sm:$0xff]
      %v2796 = vld [vmem:[#allocation2 + $0xa0] sm:$0xff]
      %v2797 = vld [vmem:[#allocation2 + $0xa8] sm:$0xff]
      %v2798 = vld [vmem:[#allocation2 + $0xb0] sm:$0xff]
      %v2799 = vld [vmem:[#allocation2 + $0xb8] sm:$0xff]
      %v2800 = vld [vmem:[#allocation2 + $0xc0] sm:$0xff]
      %v2801 = vld [vmem:[#allocation2 + $0xc8] sm:$0xff]
      %v2802 = vld [vmem:[#allocation2 + $0xd0] sm:$0xff]
      %v2803 = vld [vmem:[#allocation2 + $0xd8] sm:$0xff]
      %v2804 = vld [vmem:[#allocation2 + $0xe0] sm:$0xff]
      %v2805 = vld [vmem:[#allocation2 + $0xe8] sm:$0xff]
      %v2806 = vld [vmem:[#allocation2 + $0xf0] sm:$0xff]
      %v2807 = vld [vmem:[#allocation2 + $0xf8] sm:$0xff]
      %v2808 = vld [vmem:[#allocation2 + $0x100] sm:$0xff]
      %v2809 = vld [vmem:[#allocation2 + $0x108] sm:$0xff]
      %v2810 = vld [vmem:[#allocation2 + $0x110] sm:$0xff]
      %v2811 = vld [vmem:[#allocation2 + $0x118] sm:$0xff]
      %v2812 = vld [vmem:[#allocation2 + $0x120] sm:$0xff]
      %v2813 = vld [vmem:[#allocation2 + $0x128] sm:$0xff]
      %v2814 = vld [vmem:[#allocation2 + $0x130] sm:$0xff]
      %v2815 = vld [vmem:[#allocation2 + $0x138] sm:$0xff]
      %v2816 = vld [vmem:[#allocation2 + $0x140] sm:$0xff]
      %v2817 = vld [vmem:[#allocation2 + $0x148] sm:$0xff]
      %v2818 = vld [vmem:[#allocation2 + $0x150] sm:$0xff]
      %v2819 = vld [vmem:[#allocation2 + $0x158] sm:$0xff]
      %v2820 = vld [vmem:[#allocation2 + $0x160] sm:$0xff]
      %v2821 = vld [vmem:[#allocation2 + $0x168] sm:$0xff]
      %v2822 = vld [vmem:[#allocation2 + $0x170] sm:$0xff]
      %v2823 = vld [vmem:[#allocation2 + $0x178] sm:$0xff]
      %v2824 = vld [vmem:[#allocation2 + $0x180] sm:$0xff]
      %v2825 = vld [vmem:[#allocation2 + $0x188] sm:$0xff]
      %v2826 = vld [vmem:[#allocation2 + $0x190] sm:$0xff]
      %v2827 = vld [vmem:[#allocation2 + $0x198] sm:$0xff]
      %v2828 = vld [vmem:[#allocation2 + $0x1a0] sm:$0xff]
      %v2829 = vld [vmem:[#allocation2 + $0x1a8] sm:$0xff]
      %v2830 = vld [vmem:[#allocation2 + $0x1b0] sm:$0xff]
      %v2831 = vld [vmem:[#allocation2 + $0x1b8] sm:$0xff]
      %v2832 = vld [vmem:[#allocation2 + $0x1c0] sm:$0xff]
      %v2833 = vld [vmem:[#allocation2 + $0x1c8] sm:$0xff]
      %v2834 = vld [vmem:[#allocation2 + $0x1d0] sm:$0xff]
      %v2835 = vld [vmem:[#allocation2 + $0x1d8] sm:$0xff]
      %v2836 = vld [vmem:[#allocation2 + $0x1e0] sm:$0xff]
      %v2837 = vld [vmem:[#allocation2 + $0x1e8] sm:$0xff]
      %v2838 = vld [vmem:[#allocation2 + $0x1f0] sm:$0xff]
      %v2839 = vld [vmem:[#allocation2 + $0x1f8] sm:$0xff]
      %s2840 = scalar_lea.vmem %s3, 24
      %v2841 = vld [vmem:[%s2840] sm:$0xff]
      %2843 = vset.pattern.permute.xlu0 0
      %2844 = vperm.xlu0 %2843, %v2841
      %v2845 = vpop.permute.xlu0 %2844
      %2847 = vmatprep.subr.mxu0 %v2807
      %2848 = vmatpush1.msra.mxu0 %v2806
      %2849 = vmatprep.subr.mxu0 %v2805
      %2850 = vmatpush1.msra.mxu0 %v2804
      %2851 = vmatprep.subr.mxu0 %v2803
      %2852 = vmatpush1.msra.mxu0 %v2802
      %2853 = vmatprep.subr.mxu0 %v2801
      %2854 = vmatpush1.msra.mxu0 %v2800
      %2855 = vmatprep.subr.mxu0 %v2799
      %2856 = vmatpush1.msra.mxu0 %v2798
      %2857 = vmatprep.subr.mxu0 %v2797
      %2858 = vmatpush1.msra.mxu0 %v2796
      %2859 = vmatprep.subr.mxu0 %v2795
      %2860 = vmatpush1.msra.mxu0 %v2794
      %2861 = vmatprep.subr.mxu0 %v2793
      %2862 = vmatpush1.msra.mxu0 %v2792
      %2863 = vmatprep.subr.mxu0 %v2791
      %2864 = vmatpush1.msra.mxu0 %v2790
      %2865 = vmatprep.subr.mxu0 %v2789
      %2866 = vmatpush1.msra.mxu0 %v2788
      %2867 = vmatprep.subr.mxu0 %v2787
      %2868 = vmatpush1.msra.mxu0 %v2786
      %2869 = vmatprep.subr.mxu0 %v2785
      %2870 = vmatpush1.msra.mxu0 %v2784
      %2871 = vmatprep.subr.mxu0 %v2783
      %2872 = vmatpush1.msra.mxu0 %v2782
      %2873 = vmatprep.subr.mxu0 %v2781
      %2874 = vmatpush1.msra.mxu0 %v2780
      %2875 = vmatprep.subr.mxu0 %v2779
      %2876 = vmatpush1.msra.mxu0 %v2778
      %2877 = vmatprep.subr.mxu0 %v2777
      %2878 = vmatpush1.msra.mxu0 %v2776
      %2879 = vmatprep.subr.mxu0 %v2839
      %2880 = vmatpush2.msra.mxu0 %v2838
      %2881 = vmatprep.subr.mxu0 %v2837
      %2882 = vmatpush2.msra.mxu0 %v2836
      %2883 = vmatprep.subr.mxu0 %v2835
      %2884 = vmatpush2.msra.mxu0 %v2834
      %2885 = vmatprep.subr.mxu0 %v2833
      %2886 = vmatpush2.msra.mxu0 %v2832
      %2887 = vmatprep.subr.mxu0 %v2831
      %2888 = vmatpush2.msra.mxu0 %v2830
      %2889 = vmatprep.subr.mxu0 %v2829
      %2890 = vmatpush2.msra.mxu0 %v2828
      %2891 = vmatprep.subr.mxu0 %v2827
      %2892 = vmatpush2.msra.mxu0 %v2826
      %2893 = vmatprep.subr.mxu0 %v2825
      %2894 = vmatpush2.msra.mxu0 %v2824
      %2895 = vmatprep.subr.mxu0 %v2823
      %2896 = vmatpush2.msra.mxu0 %v2822
      %2897 = vmatprep.subr.mxu0 %v2821
      %2898 = vmatpush2.msra.mxu0 %v2820
      %2899 = vmatprep.subr.mxu0 %v2819
      %2900 = vmatpush2.msra.mxu0 %v2818
      %2901 = vmatprep.subr.mxu0 %v2817
      %2902 = vmatpush2.msra.mxu0 %v2816
      %2903 = vmatprep.subr.mxu0 %v2815
      %2904 = vmatpush2.msra.mxu0 %v2814
      %2905 = vmatprep.subr.mxu0 %v2813
      %2906 = vmatpush2.msra.mxu0 %v2812
      %2907 = vmatprep.subr.mxu0 %v2811
      %2908 = vmatpush2.msra.mxu0 %v2810
      %2909 = vmatprep.subr.mxu0 %v2809
      %2910 = vmatpush2.msra.mxu0 %v2808
      %2911 = vmatprep.mubr.f32.mxu0 %v2775
      %2912 = vmatmul.mubr.f32.gmra.mxu0 %v2774
      %v2913 = vpop.f32.mrf.mxu0
      %v2914 = vadd.f32 %v2845, %v2913
      %v2915 = vpop.f32.mrf.mxu0
      %v2916 = vadd.f32 %v2845, %v2915
      %2917 = vdwg.mxu0
      %v2918 = vmax.f32 %v2914, 0.0
      %v2919 = vmax.f32 %v2916, 0.0
      %v2920 = vadd.f32 %v1584, %v2918
      %v2921 = vadd.f32 %v1585, %v2919
      %2922 = vrot.lane.b32.xlu0 %v2920, 73
      %v2923 = vpop.permute.xlu0 %2922
      %2924 = vrot.lane.b32.xlu0 %v2921, 73
      %v2925 = vpop.permute.xlu0 %2924
      %v2926 = vsel %vm216, %v2923, %v2925
      %v2927 = vsel %vm216, %v2925, %v2923
      %v2928 = vld [vmem:[%s0] ss:$8 sm:$0x3]
      %v2930 = vlaneseq
      %v2931 = vshrl.u32 %v2930, 7
      %v2932 = vsub.s32 0, %v2931
      %v2933 = vrot.slane %v2928, %v2932
      %v2934 = vlaneseq
      %v2935 = vshrl.u32 %v2934, 7
      %v2936 = vsub.s32 1, %v2935
      %v2937 = vrot.slane %v2928, %v2936
      %v2940 = vmul.f32 %v2927, %v2933
      %v2941 = vmul.f32 %v2926, %v2937
      %2942 = vst [vmem:[#allocation2] sm:$0xff] %v2940
      %2943 = vst [vmem:[#allocation2 + $0x8] sm:$0xff] %v2941
      %2944 = vrot.lane.b32.xlu0 %v2920, 72
      %v2945 = vpop.permute.xlu0 %2944
      %2946 = vrot.lane.b32.xlu0 %v2921, 72
      %v2947 = vpop.permute.xlu0 %2946
      %v2948 = vsel %vm239, %v2945, %v2947
      %v2949 = vsel %vm239, %v2947, %v2945
      %v2950 = vld [vmem:[%s242] ss:$8 sm:$0x3]
      %v2952 = vlaneseq
      %v2953 = vshrl.u32 %v2952, 7
      %v2954 = vsub.s32 0, %v2953
      %v2955 = vrot.slane %v2950, %v2954
      %v2956 = vlaneseq
      %v2957 = vshrl.u32 %v2956, 7
      %v2958 = vsub.s32 1, %v2957
      %v2959 = vrot.slane %v2950, %v2958
      %v2962 = vmul.f32 %v2949, %v2955
      %v2963 = vmul.f32 %v2948, %v2959
      %2964 = vst [vmem:[#allocation2 + $0x10] sm:$0xff] %v2962
      %2965 = vst [vmem:[#allocation2 + $0x18] sm:$0xff] %v2963
      %2966 = vrot.lane.b32.xlu0 %v2920, 71
      %v2967 = vpop.permute.xlu0 %2966
      %2968 = vrot.lane.b32.xlu0 %v2921, 71
      %v2969 = vpop.permute.xlu0 %2968
      %v2970 = vsel %vm263, %v2967, %v2969
      %v2971 = vsel %vm263, %v2969, %v2967
      %v2972 = vld [vmem:[%s266] ss:$8 sm:$0x3]
      %v2974 = vlaneseq
      %v2975 = vshrl.u32 %v2974, 7
      %v2976 = vsub.s32 0, %v2975
      %v2977 = vrot.slane %v2972, %v2976
      %v2978 = vlaneseq
      %v2979 = vshrl.u32 %v2978, 7
      %v2980 = vsub.s32 1, %v2979
      %v2981 = vrot.slane %v2972, %v2980
      %v2984 = vmul.f32 %v2971, %v2977
      %v2985 = vmul.f32 %v2970, %v2981
      %2986 = vst [vmem:[#allocation2 + $0x20] sm:$0xff] %v2984
      %2987 = vst [vmem:[#allocation2 + $0x28] sm:$0xff] %v2985
      %2988 = vrot.lane.b32.xlu0 %v2920, 65
      %v2989 = vpop.permute.xlu0 %2988
      %2990 = vrot.lane.b32.xlu0 %v2921, 65
      %v2991 = vpop.permute.xlu0 %2990
      %v2992 = vsel %vm287, %v2989, %v2991
      %v2993 = vsel %vm287, %v2991, %v2989
      %v2994 = vld [vmem:[%s290] ss:$8 sm:$0x3]
      %v2996 = vlaneseq
      %v2997 = vshrl.u32 %v2996, 7
      %v2998 = vsub.s32 0, %v2997
      %v2999 = vrot.slane %v2994, %v2998
      %v3000 = vlaneseq
      %v3001 = vshrl.u32 %v3000, 7
      %v3002 = vsub.s32 1, %v3001
      %v3003 = vrot.slane %v2994, %v3002
      %v3006 = vmul.f32 %v2993, %v2999
      %v3007 = vmul.f32 %v2992, %v3003
      %3008 = vst [vmem:[#allocation2 + $0x30] sm:$0xff] %v3006
      %3009 = vst [vmem:[#allocation2 + $0x38] sm:$0xff] %v3007
      %3010 = vrot.lane.b32.xlu0 %v2920, 64
      %v3011 = vpop.permute.xlu0 %3010
      %3012 = vrot.lane.b32.xlu0 %v2921, 64
      %v3013 = vpop.permute.xlu0 %3012
      %v3014 = vsel %vm311, %v3011, %v3013
      %v3015 = vsel %vm311, %v3013, %v3011
      %v3016 = vld [vmem:[%s314] ss:$8 sm:$0x3]
      %v3018 = vlaneseq
      %v3019 = vshrl.u32 %v3018, 7
      %v3020 = vsub.s32 0, %v3019
      %v3021 = vrot.slane %v3016, %v3020
      %v3022 = vlaneseq
      %v3023 = vshrl.u32 %v3022, 7
      %v3024 = vsub.s32 1, %v3023
      %v3025 = vrot.slane %v3016, %v3024
      %v3028 = vmul.f32 %v3015, %v3021
      %v3029 = vmul.f32 %v3014, %v3025
      %3030 = vst [vmem:[#allocation2 + $0x40] sm:$0xff] %v3028
      %3031 = vst [vmem:[#allocation2 + $0x48] sm:$0xff] %v3029
      %3032 = vrot.lane.b32.xlu0 %v2920, 63
      %v3033 = vpop.permute.xlu0 %3032
      %3034 = vrot.lane.b32.xlu0 %v2921, 63
      %v3035 = vpop.permute.xlu0 %3034
      %v3036 = vsel %vm335, %v3033, %v3035
      %v3037 = vsel %vm335, %v3035, %v3033
      %v3038 = vld [vmem:[%s338] ss:$8 sm:$0x3]
      %v3040 = vlaneseq
      %v3041 = vshrl.u32 %v3040, 7
      %v3042 = vsub.s32 0, %v3041
      %v3043 = vrot.slane %v3038, %v3042
      %v3044 = vlaneseq
      %v3045 = vshrl.u32 %v3044, 7
      %v3046 = vsub.s32 1, %v3045
      %v3047 = vrot.slane %v3038, %v3046
      %v3050 = vmul.f32 %v3037, %v3043
      %v3051 = vmul.f32 %v3036, %v3047
      %3052 = vst [vmem:[#allocation2 + $0x50] sm:$0xff] %v3050
      %3053 = vst [vmem:[#allocation2 + $0x58] sm:$0xff] %v3051
      %3054 = vrot.lane.b32.xlu0 %v2920, 57
      %v3055 = vpop.permute.xlu0 %3054
      %3056 = vrot.lane.b32.xlu0 %v2921, 57
      %v3057 = vpop.permute.xlu0 %3056
      %v3058 = vsel %vm359, %v3055, %v3057
      %v3059 = vsel %vm359, %v3057, %v3055
      %v3060 = vld [vmem:[%s362] ss:$8 sm:$0x3]
      %v3062 = vlaneseq
      %v3063 = vshrl.u32 %v3062, 7
      %v3064 = vsub.s32 0, %v3063
      %v3065 = vrot.slane %v3060, %v3064
      %v3066 = vlaneseq
      %v3067 = vshrl.u32 %v3066, 7
      %v3068 = vsub.s32 1, %v3067
      %v3069 = vrot.slane %v3060, %v3068
      %v3072 = vmul.f32 %v3059, %v3065
      %v3073 = vmul.f32 %v3058, %v3069
      %3074 = vst [vmem:[#allocation2 + $0x60] sm:$0xff] %v3072
      %3075 = vst [vmem:[#allocation2 + $0x68] sm:$0xff] %v3073
      %3076 = vrot.lane.b32.xlu0 %v2920, 56
      %v3077 = vpop.permute.xlu0 %3076
      %3078 = vrot.lane.b32.xlu0 %v2921, 56
      %v3079 = vpop.permute.xlu0 %3078
      %v3080 = vsel %vm383, %v3077, %v3079
      %v3081 = vsel %vm383, %v3079, %v3077
      %v3082 = vld [vmem:[%s386] ss:$8 sm:$0x3]
      %v3084 = vlaneseq
      %v3085 = vshrl.u32 %v3084, 7
      %v3086 = vsub.s32 0, %v3085
      %v3087 = vrot.slane %v3082, %v3086
      %v3088 = vlaneseq
      %v3089 = vshrl.u32 %v3088, 7
      %v3090 = vsub.s32 1, %v3089
      %v3091 = vrot.slane %v3082, %v3090
      %v3094 = vmul.f32 %v3081, %v3087
      %v3095 = vmul.f32 %v3080, %v3091
      %3096 = vst [vmem:[#allocation2 + $0x70] sm:$0xff] %v3094
      %3097 = vst [vmem:[#allocation2 + $0x78] sm:$0xff] %v3095
      %3098 = vrot.lane.b32.xlu0 %v2920, 55
      %v3099 = vpop.permute.xlu0 %3098
      %3100 = vrot.lane.b32.xlu0 %v2921, 55
      %v3101 = vpop.permute.xlu0 %3100
      %v3102 = vsel %vm407, %v3099, %v3101
      %v3103 = vsel %vm407, %v3101, %v3099
      %v3104 = vld [vmem:[%s410] ss:$8 sm:$0x3]
      %v3106 = vlaneseq
      %v3107 = vshrl.u32 %v3106, 7
      %v3108 = vsub.s32 0, %v3107
      %v3109 = vrot.slane %v3104, %v3108
      %v3110 = vlaneseq
      %v3111 = vshrl.u32 %v3110, 7
      %v3112 = vsub.s32 1, %v3111
      %v3113 = vrot.slane %v3104, %v3112
      %v3116 = vmul.f32 %v3103, %v3109
      %v3117 = vmul.f32 %v3102, %v3113
      %3118 = vst [vmem:[#allocation2 + $0x80] sm:$0xff] %v3116
      %3119 = vst [vmem:[#allocation2 + $0x88] sm:$0xff] %v3117
      %3120 = vrot.lane.b32.xlu0 %v2920, 9
      %v3121 = vpop.permute.xlu0 %3120
      %3122 = vrot.lane.b32.xlu0 %v2921, 9
      %v3123 = vpop.permute.xlu0 %3122
      %v3124 = vsel %vm431, %v3121, %v3123
      %v3125 = vsel %vm431, %v3123, %v3121
      %v3126 = vld [vmem:[%s434] ss:$8 sm:$0x3]
      %v3128 = vlaneseq
      %v3129 = vshrl.u32 %v3128, 7
      %v3130 = vsub.s32 0, %v3129
      %v3131 = vrot.slane %v3126, %v3130
      %v3132 = vlaneseq
      %v3133 = vshrl.u32 %v3132, 7
      %v3134 = vsub.s32 1, %v3133
      %v3135 = vrot.slane %v3126, %v3134
      %v3138 = vmul.f32 %v3125, %v3131
      %v3139 = vmul.f32 %v3124, %v3135
      %3140 = vst [vmem:[#allocation2 + $0x90] sm:$0xff] %v3138
      %3141 = vst [vmem:[#allocation2 + $0x98] sm:$0xff] %v3139
      %3142 = vrot.lane.b32.xlu0 %v2920, 8
      %v3143 = vpop.permute.xlu0 %3142
      %3144 = vrot.lane.b32.xlu0 %v2921, 8
      %v3145 = vpop.permute.xlu0 %3144
      %v3146 = vsel %vm455, %v3143, %v3145
      %v3147 = vsel %vm455, %v3145, %v3143
      %v3148 = vld [vmem:[%s458] ss:$8 sm:$0x3]
      %v3150 = vlaneseq
      %v3151 = vshrl.u32 %v3150, 7
      %v3152 = vsub.s32 0, %v3151
      %v3153 = vrot.slane %v3148, %v3152
      %v3154 = vlaneseq
      %v3155 = vshrl.u32 %v3154, 7
      %v3156 = vsub.s32 1, %v3155
      %v3157 = vrot.slane %v3148, %v3156
      %v3160 = vmul.f32 %v3147, %v3153
      %v3161 = vmul.f32 %v3146, %v3157
      %3162 = vst [vmem:[#allocation2 + $0xa0] sm:$0xff] %v3160
      %3163 = vst [vmem:[#allocation2 + $0xa8] sm:$0xff] %v3161
      %3164 = vrot.lane.b32.xlu0 %v2920, 7
      %v3165 = vpop.permute.xlu0 %3164
      %3166 = vrot.lane.b32.xlu0 %v2921, 7
      %v3167 = vpop.permute.xlu0 %3166
      %v3168 = vsel %vm479, %v3165, %v3167
      %v3169 = vsel %vm479, %v3167, %v3165
      %v3170 = vld [vmem:[%s482] ss:$8 sm:$0x3]
      %v3172 = vlaneseq
      %v3173 = vshrl.u32 %v3172, 7
      %v3174 = vsub.s32 0, %v3173
      %v3175 = vrot.slane %v3170, %v3174
      %v3176 = vlaneseq
      %v3177 = vshrl.u32 %v3176, 7
      %v3178 = vsub.s32 1, %v3177
      %v3179 = vrot.slane %v3170, %v3178
      %v3182 = vmul.f32 %v3169, %v3175
      %v3183 = vmul.f32 %v3168, %v3179
      %3184 = vst [vmem:[#allocation2 + $0xb0] sm:$0xff] %v3182
      %3185 = vst [vmem:[#allocation2 + $0xb8] sm:$0xff] %v3183
      %3186 = vrot.lane.b32.xlu0 %v2920, 1
      %v3187 = vpop.permute.xlu0 %3186
      %3188 = vrot.lane.b32.xlu0 %v2921, 1
      %v3189 = vpop.permute.xlu0 %3188
      %v3190 = vsel %vm503, %v3187, %v3189
      %v3191 = vsel %vm503, %v3189, %v3187
      %v3192 = vld [vmem:[%s506] ss:$8 sm:$0x3]
      %v3194 = vlaneseq
      %v3195 = vshrl.u32 %v3194, 7
      %v3196 = vsub.s32 0, %v3195
      %v3197 = vrot.slane %v3192, %v3196
      %v3198 = vlaneseq
      %v3199 = vshrl.u32 %v3198, 7
      %v3200 = vsub.s32 1, %v3199
      %v3201 = vrot.slane %v3192, %v3200
      %v3204 = vmul.f32 %v3191, %v3197
      %v3205 = vmul.f32 %v3190, %v3201
      %3206 = vst [vmem:[#allocation2 + $0xc0] sm:$0xff] %v3204
      %3207 = vst [vmem:[#allocation2 + $0xc8] sm:$0xff] %v3205
      %3208 = vst [vmem:[#allocation2 + $0xd0] sm:$0xff] %v2920
      %3209 = vst [vmem:[#allocation2 + $0xd8] sm:$0xff] %v2921
      %3210 = vrot.lane.b32.xlu0 %v2920, 127
      %v3211 = vpop.permute.xlu0 %3210
      %3212 = vrot.lane.b32.xlu0 %v2921, 127
      %v3213 = vpop.permute.xlu0 %3212
      %v3214 = vsel %vm529, %v3211, %v3213
      %v3215 = vsel %vm529, %v3213, %v3211
      %v3216 = vld [vmem:[%s532] ss:$8 sm:$0x3]
      %v3218 = vlaneseq
      %v3219 = vshrl.u32 %v3218, 7
      %v3220 = vsub.s32 0, %v3219
      %v3221 = vrot.slane %v3216, %v3220
      %v3222 = vlaneseq
      %v3223 = vshrl.u32 %v3222, 7
      %v3224 = vsub.s32 1, %v3223
      %v3225 = vrot.slane %v3216, %v3224
      %v3228 = vmul.f32 %v3214, %v3221
      %v3229 = vmul.f32 %v3215, %v3225
      %3230 = vst [vmem:[#allocation2 + $0xe0] sm:$0xff] %v3228
      %3231 = vst [vmem:[#allocation2 + $0xe8] sm:$0xff] %v3229
      %3232 = vrot.lane.b32.xlu0 %v2920, 121
      %v3233 = vpop.permute.xlu0 %3232
      %3234 = vrot.lane.b32.xlu0 %v2921, 121
      %v3235 = vpop.permute.xlu0 %3234
      %v3236 = vsel %vm553, %v3233, %v3235
      %v3237 = vsel %vm553, %v3235, %v3233
      %v3238 = vld [vmem:[%s556] ss:$8 sm:$0x3]
      %v3240 = vlaneseq
      %v3241 = vshrl.u32 %v3240, 7
      %v3242 = vsub.s32 0, %v3241
      %v3243 = vrot.slane %v3238, %v3242
      %v3244 = vlaneseq
      %v3245 = vshrl.u32 %v3244, 7
      %v3246 = vsub.s32 1, %v3245
      %v3247 = vrot.slane %v3238, %v3246
      %v3250 = vmul.f32 %v3236, %v3243
      %v3251 = vmul.f32 %v3237, %v3247
      %3252 = vst [vmem:[#allocation2 + $0xf0] sm:$0xff] %v3250
      %3253 = vst [vmem:[#allocation2 + $0xf8] sm:$0xff] %v3251
      %3254 = vrot.lane.b32.xlu0 %v2920, 120
      %v3255 = vpop.permute.xlu0 %3254
      %3256 = vrot.lane.b32.xlu0 %v2921, 120
      %v3257 = vpop.permute.xlu0 %3256
      %v3258 = vsel %vm577, %v3255, %v3257
      %v3259 = vsel %vm577, %v3257, %v3255
      %v3260 = vld [vmem:[%s580] ss:$8 sm:$0x3]
      %v3262 = vlaneseq
      %v3263 = vshrl.u32 %v3262, 7
      %v3264 = vsub.s32 0, %v3263
      %v3265 = vrot.slane %v3260, %v3264
      %v3266 = vlaneseq
      %v3267 = vshrl.u32 %v3266, 7
      %v3268 = vsub.s32 1, %v3267
      %v3269 = vrot.slane %v3260, %v3268
      %v3272 = vmul.f32 %v3258, %v3265
      %v3273 = vmul.f32 %v3259, %v3269
      %3274 = vst [vmem:[#allocation2 + $0x100] sm:$0xff] %v3272
      %3275 = vst [vmem:[#allocation2 + $0x108] sm:$0xff] %v3273
      %3276 = vrot.lane.b32.xlu0 %v2920, 119
      %v3277 = vpop.permute.xlu0 %3276
      %3278 = vrot.lane.b32.xlu0 %v2921, 119
      %v3279 = vpop.permute.xlu0 %3278
      %v3280 = vsel %vm601, %v3277, %v3279
      %v3281 = vsel %vm601, %v3279, %v3277
      %v3282 = vld [vmem:[%s604] ss:$8 sm:$0x3]
      %v3284 = vlaneseq
      %v3285 = vshrl.u32 %v3284, 7
      %v3286 = vsub.s32 0, %v3285
      %v3287 = vrot.slane %v3282, %v3286
      %v3288 = vlaneseq
      %v3289 = vshrl.u32 %v3288, 7
      %v3290 = vsub.s32 1, %v3289
      %v3291 = vrot.slane %v3282, %v3290
      %v3294 = vmul.f32 %v3280, %v3287
      %v3295 = vmul.f32 %v3281, %v3291
      %3296 = vst [vmem:[#allocation2 + $0x110] sm:$0xff] %v3294
      %3297 = vst [vmem:[#allocation2 + $0x118] sm:$0xff] %v3295
      %v3298 = vld [vmem:[%s621] ss:$8 sm:$0x3]
      %v3300 = vlaneseq
      %v3301 = vshrl.u32 %v3300, 7
      %v3302 = vsub.s32 0, %v3301
      %v3303 = vrot.slane %v3298, %v3302
      %v3304 = vlaneseq
      %v3305 = vshrl.u32 %v3304, 7
      %v3306 = vsub.s32 1, %v3305
      %v3307 = vrot.slane %v3298, %v3306
      %v3310 = vmul.f32 %v2926, %v3303
      %v3311 = vmul.f32 %v2927, %v3307
      %3312 = vst [vmem:[#allocation2 + $0x120] sm:$0xff] %v3310
      %3313 = vst [vmem:[#allocation2 + $0x128] sm:$0xff] %v3311
      %v3314 = vld [vmem:[%s638] ss:$8 sm:$0x3]
      %v3316 = vlaneseq
      %v3317 = vshrl.u32 %v3316, 7
      %v3318 = vsub.s32 0, %v3317
      %v3319 = vrot.slane %v3314, %v3318
      %v3320 = vlaneseq
      %v3321 = vshrl.u32 %v3320, 7
      %v3322 = vsub.s32 1, %v3321
      %v3323 = vrot.slane %v3314, %v3322
      %v3326 = vmul.f32 %v2948, %v3319
      %v3327 = vmul.f32 %v2949, %v3323
      %3328 = vst [vmem:[#allocation2 + $0x130] sm:$0xff] %v3326
      %3329 = vst [vmem:[#allocation2 + $0x138] sm:$0xff] %v3327
      %v3330 = vld [vmem:[%s655] ss:$8 sm:$0x3]
      %v3332 = vlaneseq
      %v3333 = vshrl.u32 %v3332, 7
      %v3334 = vsub.s32 0, %v3333
      %v3335 = vrot.slane %v3330, %v3334
      %v3336 = vlaneseq
      %v3337 = vshrl.u32 %v3336, 7
      %v3338 = vsub.s32 1, %v3337
      %v3339 = vrot.slane %v3330, %v3338
      %v3342 = vmul.f32 %v2970, %v3335
      %v3343 = vmul.f32 %v2971, %v3339
      %3344 = vst [vmem:[#allocation2 + $0x140] sm:$0xff] %v3342
      %3345 = vst [vmem:[#allocation2 + $0x148] sm:$0xff] %v3343
      %v3346 = vld [vmem:[%s672] ss:$8 sm:$0x3]
      %v3348 = vlaneseq
      %v3349 = vshrl.u32 %v3348, 7
      %v3350 = vsub.s32 0, %v3349
      %v3351 = vrot.slane %v3346, %v3350
      %v3352 = vlaneseq
      %v3353 = vshrl.u32 %v3352, 7
      %v3354 = vsub.s32 1, %v3353
      %v3355 = vrot.slane %v3346, %v3354
      %v3358 = vmul.f32 %v2992, %v3351
      %v3359 = vmul.f32 %v2993, %v3355
      %3360 = vst [vmem:[#allocation2 + $0x150] sm:$0xff] %v3358
      %3361 = vst [vmem:[#allocation2 + $0x158] sm:$0xff] %v3359
      %v3362 = vld [vmem:[%s689] ss:$8 sm:$0x3]
      %v3364 = vlaneseq
      %v3365 = vshrl.u32 %v3364, 7
      %v3366 = vsub.s32 0, %v3365
      %v3367 = vrot.slane %v3362, %v3366
      %v3368 = vlaneseq
      %v3369 = vshrl.u32 %v3368, 7
      %v3370 = vsub.s32 1, %v3369
      %v3371 = vrot.slane %v3362, %v3370
      %v3374 = vmul.f32 %v3014, %v3367
      %v3375 = vmul.f32 %v3015, %v3371
      %3376 = vst [vmem:[#allocation2 + $0x160] sm:$0xff] %v3374
      %3377 = vst [vmem:[#allocation2 + $0x168] sm:$0xff] %v3375
      %v3378 = vld [vmem:[%s706] ss:$8 sm:$0x3]
      %v3380 = vlaneseq
      %v3381 = vshrl.u32 %v3380, 7
      %v3382 = vsub.s32 0, %v3381
      %v3383 = vrot.slane %v3378, %v3382
      %v3384 = vlaneseq
      %v3385 = vshrl.u32 %v3384, 7
      %v3386 = vsub.s32 1, %v3385
      %v3387 = vrot.slane %v3378, %v3386
      %v3390 = vmul.f32 %v3036, %v3383
      %v3391 = vmul.f32 %v3037, %v3387
      %3392 = vst [vmem:[#allocation2 + $0x170] sm:$0xff] %v3390
      %3393 = vst [vmem:[#allocation2 + $0x178] sm:$0xff] %v3391
      %v3394 = vld [vmem:[%s723] ss:$8 sm:$0x3]
      %v3396 = vlaneseq
      %v3397 = vshrl.u32 %v3396, 7
      %v3398 = vsub.s32 0, %v3397
      %v3399 = vrot.slane %v3394, %v3398
      %v3400 = vlaneseq
      %v3401 = vshrl.u32 %v3400, 7
      %v3402 = vsub.s32 1, %v3401
      %v3403 = vrot.slane %v3394, %v3402
      %v3406 = vmul.f32 %v3058, %v3399
      %v3407 = vmul.f32 %v3059, %v3403
      %3408 = vst [vmem:[#allocation2 + $0x180] sm:$0xff] %v3406
      %3409 = vst [vmem:[#allocation2 + $0x188] sm:$0xff] %v3407
      %v3410 = vld [vmem:[%s740] ss:$8 sm:$0x3]
      %v3412 = vlaneseq
      %v3413 = vshrl.u32 %v3412, 7
      %v3414 = vsub.s32 0, %v3413
      %v3415 = vrot.slane %v3410, %v3414
      %v3416 = vlaneseq
      %v3417 = vshrl.u32 %v3416, 7
      %v3418 = vsub.s32 1, %v3417
      %v3419 = vrot.slane %v3410, %v3418
      %v3422 = vmul.f32 %v3080, %v3415
      %v3423 = vmul.f32 %v3081, %v3419
      %3424 = vst [vmem:[#allocation2 + $0x190] sm:$0xff] %v3422
      %3425 = vst [vmem:[#allocation2 + $0x198] sm:$0xff] %v3423
      %v3426 = vld [vmem:[%s757] ss:$8 sm:$0x3]
      %v3428 = vlaneseq
      %v3429 = vshrl.u32 %v3428, 7
      %v3430 = vsub.s32 0, %v3429
      %v3431 = vrot.slane %v3426, %v3430
      %v3432 = vlaneseq
      %v3433 = vshrl.u32 %v3432, 7
      %v3434 = vsub.s32 1, %v3433
      %v3435 = vrot.slane %v3426, %v3434
      %v3438 = vmul.f32 %v3102, %v3431
      %v3439 = vmul.f32 %v3103, %v3435
      %3440 = vst [vmem:[#allocation2 + $0x1a0] sm:$0xff] %v3438
      %3441 = vst [vmem:[#allocation2 + $0x1a8] sm:$0xff] %v3439
      %s3442 = scalar_lea.vmem %s2, 64
      %v3443 = vld [vmem:[%s3442] sm:$0xff]
      %v3444 = vld [vmem:[%s3442 + $0x8] sm:$0xff]
      %v3445 = vld [vmem:[#allocation2] sm:$0xff]
      %v3446 = vld [vmem:[#allocation2 + $0x8] sm:$0xff]
      %v3447 = vld [vmem:[#allocation2 + $0x10] sm:$0xff]
      %v3448 = vld [vmem:[#allocation2 + $0x18] sm:$0xff]
      %v3449 = vld [vmem:[#allocation2 + $0x20] sm:$0xff]
      %v3450 = vld [vmem:[#allocation2 + $0x28] sm:$0xff]
      %v3451 = vld [vmem:[#allocation2 + $0x30] sm:$0xff]
      %v3452 = vld [vmem:[#allocation2 + $0x38] sm:$0xff]
      %v3453 = vld [vmem:[#allocation2 + $0x40] sm:$0xff]
      %v3454 = vld [vmem:[#allocation2 + $0x48] sm:$0xff]
      %v3455 = vld [vmem:[#allocation2 + $0x50] sm:$0xff]
      %v3456 = vld [vmem:[#allocation2 + $0x58] sm:$0xff]
      %v3457 = vld [vmem:[#allocation2 + $0x60] sm:$0xff]
      %v3458 = vld [vmem:[#allocation2 + $0x68] sm:$0xff]
      %v3459 = vld [vmem:[#allocation2 + $0x70] sm:$0xff]
      %v3460 = vld [vmem:[#allocation2 + $0x78] sm:$0xff]
      %v3461 = vld [vmem:[#allocation2 + $0x80] sm:$0xff]
      %v3462 = vld [vmem:[#allocation2 + $0x88] sm:$0xff]
      %v3463 = vld [vmem:[#allocation2 + $0x90] sm:$0xff]
      %v3464 = vld [vmem:[#allocation2 + $0x98] sm:$0xff]
      %v3465 = vld [vmem:[#allocation2 + $0xa0] sm:$0xff]
      %v3466 = vld [vmem:[#allocation2 + $0xa8] sm:$0xff]
      %v3467 = vld [vmem:[#allocation2 + $0xb0] sm:$0xff]
      %v3468 = vld [vmem:[#allocation2 + $0xb8] sm:$0xff]
      %v3469 = vld [vmem:[#allocation2 + $0xc0] sm:$0xff]
      %v3470 = vld [vmem:[#allocation2 + $0xc8] sm:$0xff]
      %v3471 = vld [vmem:[#allocation2 + $0xd0] sm:$0xff]
      %v3472 = vld [vmem:[#allocation2 + $0xd8] sm:$0xff]
      %v3473 = vld [vmem:[#allocation2 + $0xe0] sm:$0xff]
      %v3474 = vld [vmem:[#allocation2 + $0xe8] sm:$0xff]
      %v3475 = vld [vmem:[#allocation2 + $0xf0] sm:$0xff]
      %v3476 = vld [vmem:[#allocation2 + $0xf8] sm:$0xff]
      %v3477 = vld [vmem:[#allocation2 + $0x100] sm:$0xff]
      %v3478 = vld [vmem:[#allocation2 + $0x108] sm:$0xff]
      %v3479 = vld [vmem:[#allocation2 + $0x110] sm:$0xff]
      %v3480 = vld [vmem:[#allocation2 + $0x118] sm:$0xff]
      %v3481 = vld [vmem:[#allocation2 + $0x120] sm:$0xff]
      %v3482 = vld [vmem:[#allocation2 + $0x128] sm:$0xff]
      %v3483 = vld [vmem:[#allocation2 + $0x130] sm:$0xff]
      %v3484 = vld [vmem:[#allocation2 + $0x138] sm:$0xff]
      %v3485 = vld [vmem:[#allocation2 + $0x140] sm:$0xff]
      %v3486 = vld [vmem:[#allocation2 + $0x148] sm:$0xff]
      %v3487 = vld [vmem:[#allocation2 + $0x150] sm:$0xff]
      %v3488 = vld [vmem:[#allocation2 + $0x158] sm:$0xff]
      %v3489 = vld [vmem:[#allocation2 + $0x160] sm:$0xff]
      %v3490 = vld [vmem:[#allocation2 + $0x168] sm:$0xff]
      %v3491 = vld [vmem:[#allocation2 + $0x170] sm:$0xff]
      %v3492 = vld [vmem:[#allocation2 + $0x178] sm:$0xff]
      %v3493 = vld [vmem:[#allocation2 + $0x180] sm:$0xff]
      %v3494 = vld [vmem:[#allocation2 + $0x188] sm:$0xff]
      %v3495 = vld [vmem:[#allocation2 + $0x190] sm:$0xff]
      %v3496 = vld [vmem:[#allocation2 + $0x198] sm:$0xff]
      %v3497 = vld [vmem:[#allocation2 + $0x1a0] sm:$0xff]
      %v3498 = vld [vmem:[#allocation2 + $0x1a8] sm:$0xff]
      %v3499 = vld [vmem:[#allocation2 + $0x1b0] sm:$0xff]
      %v3500 = vld [vmem:[#allocation2 + $0x1b8] sm:$0xff]
      %v3501 = vld [vmem:[#allocation2 + $0x1c0] sm:$0xff]
      %v3502 = vld [vmem:[#allocation2 + $0x1c8] sm:$0xff]
      %v3503 = vld [vmem:[#allocation2 + $0x1d0] sm:$0xff]
      %v3504 = vld [vmem:[#allocation2 + $0x1d8] sm:$0xff]
      %v3505 = vld [vmem:[#allocation2 + $0x1e0] sm:$0xff]
      %v3506 = vld [vmem:[#allocation2 + $0x1e8] sm:$0xff]
      %v3507 = vld [vmem:[#allocation2 + $0x1f0] sm:$0xff]
      %v3508 = vld [vmem:[#allocation2 + $0x1f8] sm:$0xff]
      %s3509 = scalar_lea.vmem %s3, 32
      %v3510 = vld [vmem:[%s3509] sm:$0xff]
      %3512 = vset.pattern.permute.xlu0 0
      %3513 = vperm.xlu0 %3512, %v3510
      %v3514 = vpop.permute.xlu0 %3513
      %3516 = vmatprep.subr.mxu0 %v3476
      %3517 = vmatpush1.msra.mxu0 %v3475
      %3518 = vmatprep.subr.mxu0 %v3474
      %3519 = vmatpush1.msra.mxu0 %v3473
      %3520 = vmatprep.subr.mxu0 %v3472
      %3521 = vmatpush1.msra.mxu0 %v3471
      %3522 = vmatprep.subr.mxu0 %v3470
      %3523 = vmatpush1.msra.mxu0 %v3469
      %3524 = vmatprep.subr.mxu0 %v3468
      %3525 = vmatpush1.msra.mxu0 %v3467
      %3526 = vmatprep.subr.mxu0 %v3466
      %3527 = vmatpush1.msra.mxu0 %v3465
      %3528 = vmatprep.subr.mxu0 %v3464
      %3529 = vmatpush1.msra.mxu0 %v3463
      %3530 = vmatprep.subr.mxu0 %v3462
      %3531 = vmatpush1.msra.mxu0 %v3461
      %3532 = vmatprep.subr.mxu0 %v3460
      %3533 = vmatpush1.msra.mxu0 %v3459
      %3534 = vmatprep.subr.mxu0 %v3458
      %3535 = vmatpush1.msra.mxu0 %v3457
      %3536 = vmatprep.subr.mxu0 %v3456
      %3537 = vmatpush1.msra.mxu0 %v3455
      %3538 = vmatprep.subr.mxu0 %v3454
      %3539 = vmatpush1.msra.mxu0 %v3453
      %3540 = vmatprep.subr.mxu0 %v3452
      %3541 = vmatpush1.msra.mxu0 %v3451
      %3542 = vmatprep.subr.mxu0 %v3450
      %3543 = vmatpush1.msra.mxu0 %v3449
      %3544 = vmatprep.subr.mxu0 %v3448
      %3545 = vmatpush1.msra.mxu0 %v3447
      %3546 = vmatprep.subr.mxu0 %v3446
      %3547 = vmatpush1.msra.mxu0 %v3445
      %3548 = vmatprep.subr.mxu0 %v3508
      %3549 = vmatpush2.msra.mxu0 %v3507
      %3550 = vmatprep.subr.mxu0 %v3506
      %3551 = vmatpush2.msra.mxu0 %v3505
      %3552 = vmatprep.subr.mxu0 %v3504
      %3553 = vmatpush2.msra.mxu0 %v3503
      %3554 = vmatprep.subr.mxu0 %v3502
      %3555 = vmatpush2.msra.mxu0 %v3501
      %3556 = vmatprep.subr.mxu0 %v3500
      %3557 = vmatpush2.msra.mxu0 %v3499
      %3558 = vmatprep.subr.mxu0 %v3498
      %3559 = vmatpush2.msra.mxu0 %v3497
      %3560 = vmatprep.subr.mxu0 %v3496
      %3561 = vmatpush2.msra.mxu0 %v3495
      %3562 = vmatprep.subr.mxu0 %v3494
      %3563 = vmatpush2.msra.mxu0 %v3493
      %3564 = vmatprep.subr.mxu0 %v3492
      %3565 = vmatpush2.msra.mxu0 %v3491
      %3566 = vmatprep.subr.mxu0 %v3490
      %3567 = vmatpush2.msra.mxu0 %v3489
      %3568 = vmatprep.subr.mxu0 %v3488
      %3569 = vmatpush2.msra.mxu0 %v3487
      %3570 = vmatprep.subr.mxu0 %v3486
      %3571 = vmatpush2.msra.mxu0 %v3485
      %3572 = vmatprep.subr.mxu0 %v3484
      %3573 = vmatpush2.msra.mxu0 %v3483
      %3574 = vmatprep.subr.mxu0 %v3482
      %3575 = vmatpush2.msra.mxu0 %v3481
      %3576 = vmatprep.subr.mxu0 %v3480
      %3577 = vmatpush2.msra.mxu0 %v3479
      %3578 = vmatprep.subr.mxu0 %v3478
      %3579 = vmatpush2.msra.mxu0 %v3477
      %3580 = vmatprep.mubr.f32.mxu0 %v3444
      %3581 = vmatmul.mubr.f32.gmra.mxu0 %v3443
      %v3582 = vpop.f32.mrf.mxu0
      %v3583 = vadd.f32 %v3514, %v3582
      %v3584 = vpop.f32.mrf.mxu0
      %v3585 = vadd.f32 %v3514, %v3584
      %3586 = vdwg.mxu0
      %3587 = vst [vmem:[%s197] sm:$0xff] %v3583
      %3588 = vst [vmem:[%s197 + $0x8] sm:$0xff] %v3585
      %p3589 = scmp.lt.s32.totalorder %s15, 1
      %s3590 = scalar_select %p3589, %s15, 1
      %s3591 = smul.addr %s3590, 2
      %s3592 = smul.addr %s3591, 8
      %s3593 = scalar_lea.vmem %s4, %s3592
      // Predicated region
      $region37: #{flownet_bk_forward.1} parent=35 // pred_check
        %p3594 = pneg %p122
      $region38: #{flownet_bk_forward.1} parent=35 // pred_check_branch
        %3596 = sbr.rel (%p3594) target = $region40
      $region39: #{flownet_bk_forward.1} parent=35 // pred_region
        _
      $region40: #{flownet_bk_forward.1} parent=35 // pred_fallthru
        _
    $region36: #{flownet_bk_forward.1} parent=5 // pred_fallthru
      _
    %p3597 = scmp.le.s32.totalorder 2, %s10
    // Predicated region
    $region41: #{flownet_bk_forward.1} parent=5 // pred_check
      %p3598 = pneg %p3597
    $region42: #{flownet_bk_forward.1} parent=5 // pred_check_branch
      %3600 = sbr.rel (%p3598) target = $region44
    $region43: #{flownet_bk_forward.1} parent=5 // pred_region
      %s3601 = ssub.s32 %s10, 2
      // Predicated region
      $region45: #{flownet_bk_forward.1} parent=43 // pred_check
        %p3602 = pneg %p128
      $region46: #{flownet_bk_forward.1} parent=43 // pred_check_branch
        %3604 = sbr.rel (%p3602) target = $region48
      $region47: #{flownet_bk_forward.1} parent=43 // pred_region
        %p3605 = scmp.lt.s32.totalorder %s16, 1
        %s3606 = scalar_select %p3605, %s16, 1
        %s3607 = smul.addr %s3606, 2
        %s3608 = smul.addr %s3607, 8
        %s3609 = scalar_lea.vmem %s4, %s3608
      $region48: #{flownet_bk_forward.1} parent=43 // pred_fallthru
        _
    $region44: #{flownet_bk_forward.1} parent=5 // pred_fallthru
      _
  $region6: #{flownet_bk_forward.1} parent=0 // loop_footer
    %s14 = sadd.s32 1, %s10
  $region7: #{flownet_bk_forward.1} parent=0 // loop_footer_branch
    %9 = sbr.rel target = $region3
  $region8: #{flownet_bk_forward.1} parent=0 // loop_exit
    _

</llo_original>
